<compile_context>
chip_gen: v6e
topology: v6e:2x2x1
jax: 0.10.0
libtpu: 0.0.40
codegen_flags: <defaults>
</compile_context>

<pallas_src>
import functools

import jax
import jax.numpy as jnp
from jax.experimental import pallas as pl
from jax.experimental.pallas import tpu as pltpu


# ---------------------------------------------------------------------------
# Kernel 1: fused conv1_1+relu -> conv1_2+relu -> pool1 -> conv2_1+relu
#           -> conv2_2+relu -> pool2.  One batch element per grid step.
# ---------------------------------------------------------------------------
def _pad_h(x):
    """(h, w, c) -> (h+2, w, c): one zero row of halo at top and bottom (leading-dim concat)."""
    zrow = jnp.zeros((1,) + x.shape[1:], x.dtype)
    return jnp.concatenate([zrow, x, zrow], axis=0)


def _conv3x3_relu(xpadh, w_ref, b_ref, h, w):
    """3x3 conv (padding=1) + bias + ReLU as ONE MXU matmul with K = 9*Cin.

    xpadh: (h+2, w, cin) f32, zero rows at top/bottom (H halo only; W halo via roll+mask)
    w_ref: (9*cin, cout) bf16, rows ordered (kh, kw, cin)   b_ref: (1, cout) f32
    returns (h*w, cout) f32.
    """
    cin = xpadh.shape[-1]
    colidx = jax.lax.broadcasted_iota(jnp.int32, xpadh.shape, 1)
    zero = jnp.zeros_like(xpadh)
    # Width-direction neighbor taps via XLU sublane rolls + edge masking
    # (pltpu.roll follows jnp.roll semantics: out[j] = in[(j - shift) mod w]).
    left = jnp.where(colidx == 0, zero, pltpu.roll(xpadh, shift=1, axis=1))      # in[:, x-1]
    right = jnp.where(colidx == w - 1, zero, pltpu.roll(xpadh, shift=w - 1, axis=1))  # in[:, x+1]
    taps = (left, xpadh, right)                                                  # kw = 0, 1, 2
    # im2col: 9 taps concatenated on the lane axis -> single matmul, K = 9*cin.
    cols = [taps[kw][kh:kh + h, :, :] for kh in range(3) for kw in range(3)]
    patch = jnp.concatenate(cols, axis=-1).reshape(h * w, 9 * cin)
    acc = jnp.dot(patch.astype(jnp.bfloat16), w_ref[...],
                  preferred_element_type=jnp.float32)
    return jnp.maximum(acc + b_ref[...], 0.0)


def _maxpool2x2(y, h, w, scratch_ref):
    """2x2/stride-2 max pool.  y: (h*w, c) f32, row = r*w + col -> (h//2*w//2, c) f32."""
    c = y.shape[-1]
    ho, wo = h // 2, w // 2
    # H direction: free leading-dim split (w is a multiple of 8).
    yr = y.reshape(ho, 2, w, c)
    hmax = jnp.maximum(yr[:, 0], yr[:, 1])                 # (ho, w, c)
    # W direction: stride-2 sublane reads from VMEM scratch.
    scratch_ref[...] = hmax.reshape(ho * w, c)
    even = scratch_ref[pl.ds(0, ho * wo, 2), :]
    odd = scratch_ref[pl.ds(1, ho * wo, 2), :]
    return jnp.maximum(even, odd)                          # (ho*wo, c), row = r*wo + col


def _fused_conv_kernel(x_ref, w1_ref, b1_ref, w2_ref, b2_ref, w3_ref, b3_ref,
                       w4_ref, b4_ref, o_ref, p1_ref, p2_ref, *, H, W):
    c1 = w1_ref.shape[-1]          # 64
    c2 = w3_ref.shape[-1]          # 128
    H2, W2 = H // 2, W // 2

    a = _conv3x3_relu(_pad_h(x_ref[...]), w1_ref, b1_ref, H, W)                 # (H*W, c1)
    a = _conv3x3_relu(_pad_h(a.reshape(H, W, c1)), w2_ref, b2_ref, H, W)        # (H*W, c1)
    a = _maxpool2x2(a, H, W, p1_ref)                                            # (H2*W2, c1)
    a = _conv3x3_relu(_pad_h(a.reshape(H2, W2, c1)), w3_ref, b3_ref, H2, W2)    # (H2*W2, c2)
    a = _conv3x3_relu(_pad_h(a.reshape(H2, W2, c2)), w4_ref, b4_ref, H2, W2)    # (H2*W2, c2)
    a = _maxpool2x2(a, H2, W2, p2_ref)                                          # (H4*W4, c2)
    o_ref[...] = a.astype(o_ref.dtype)                     # NHWC flatten order (spatial, channel)


def fused_conv_block(x, w1, b1, w2, b2, w3, b3, w4, b4, *, H, W):
    """x: (N, H, W, cin) f32 NHWC.  Weights already (9*cin, cout) bf16, biases (1, cout) f32.
    Returns (N, (H//4)*(W//4), c_out) f32."""
    assert H % 4 == 0 and W % 16 == 0, "toy-size constraint: W and W//2 must be sublane-aligned"
    N, _, _, cin = x.shape
    c1, c2 = w1.shape[-1], w3.shape[-1]
    S4 = (H // 4) * (W // 4)

    kernel = functools.partial(_fused_conv_kernel, H=H, W=W)
    full = lambda a: pl.BlockSpec(a.shape, lambda n: (0,) * a.ndim)   # resident whole-array block
    return pl.pallas_call(
        kernel,
        out_shape=jax.ShapeDtypeStruct((N, S4, c2), jnp.float32),
        grid=(N,),
        in_specs=[
            pl.BlockSpec((pl.Squeezed(), H, W, cin), lambda n: (n, 0, 0, 0)),
            full(w1), full(b1), full(w2), full(b2),
            full(w3), full(b3), full(w4), full(b4),
        ],
        out_specs=pl.BlockSpec((pl.Squeezed(), S4, c2), lambda n: (n, 0, 0)),
        scratch_shapes=[
            pltpu.VMEM(((H // 2) * W, c1), jnp.float32),        # pool1 W-step scratch
            pltpu.VMEM(((H // 4) * (W // 2), c2), jnp.float32), # pool2 W-step scratch
        ],
        compiler_params=pltpu.CompilerParams(dimension_semantics=("parallel",)),
    )(x, w1, b1, w2, b2, w3, b3, w4, b4)


# ---------------------------------------------------------------------------
# Kernel 2: fc1 (K-tiled, f32 accumulator) + ReLU + fc2 + softmax(dim=1).
# ---------------------------------------------------------------------------
def _mlp_head_kernel(x_ref, w1_ref, b1_ref, w2_ref, b2_ref, o_ref, acc_ref):
    k = pl.program_id(0)

    @pl.when(k == 0)
    def _():
        acc_ref[...] = jnp.zeros_like(acc_ref)

    acc_ref[...] += jnp.dot(x_ref[...], w1_ref[...],
                            preferred_element_type=jnp.float32)

    @pl.when(k == pl.num_programs(0) - 1)
    def _():
        h = jnp.maximum(acc_ref[...] + b1_ref[...], 0.0)                       # fc1 bias + ReLU
        logits = jnp.dot(h, w2_ref[...],
                         preferred_element_type=jnp.float32) + b2_ref[...]     # fc2
        m = jnp.max(logits, axis=-1, keepdims=True)                            # stable softmax
        e = jnp.exp(logits - m)
        o_ref[...] = (e / jnp.sum(e, axis=-1, keepdims=True)).astype(o_ref.dtype)


def mlp_head(x, w1, b1, w2, b2, *, tk=512):
    N, F = x.shape
    hidden = w1.shape[1]
    n_out = w2.shape[1]
    tk = tk if F % tk == 0 else F
    nk = F // tk
    return pl.pallas_call(
        _mlp_head_kernel,
        out_shape=jax.ShapeDtypeStruct((N, n_out), jnp.float32),
        grid=(nk,),
        in_specs=[
            pl.BlockSpec((N, tk), lambda k: (0, k)),
            pl.BlockSpec((tk, hidden), lambda k: (k, 0)),
            pl.BlockSpec((1, hidden), lambda k: (0, 0)),
            pl.BlockSpec((w2.shape[0], n_out), lambda k: (0, 0)),
            pl.BlockSpec((1, n_out), lambda k: (0, 0)),
        ],
        out_specs=pl.BlockSpec((N, n_out), lambda k: (0, 0)),
        scratch_shapes=[pltpu.VMEM((N, hidden), jnp.float32)],
        compiler_params=pltpu.CompilerParams(dimension_semantics=("arbitrary",)),
    )(x, w1, b1, w2, b2)


# ---------------------------------------------------------------------------
# One-time parameter layout prep + full forward pass (mirrors Net.forward)
# ---------------------------------------------------------------------------
def prepare_params(raw, H, W):
    """Conv weights HWIO -> (9*Cin, Cout) bf16, biases -> (1, C) f32, fc1 rows permuted
    once from PyTorch NCHW-flatten order to NHWC-flatten order (so no transpose at runtime)."""
    H4, W4 = H // 4, W // 4
    p = {}
    for name in ("11", "12", "21", "22"):
        w = raw["w" + name]                                   # (3, 3, cin, cout) HWIO
        cin, cout = w.shape[2], w.shape[3]
        p["w" + name] = w.reshape(9 * cin, cout).astype(jnp.bfloat16)
        p["b" + name] = raw["b" + name].reshape(1, cout).astype(jnp.float32)
    c2 = raw["w22"].shape[3]
    wf1 = raw["wf1"]                                          # (c2*H4*W4, 128), rows = (c, h, w)
    wf1 = jnp.transpose(wf1.reshape(c2, H4, W4, -1), (1, 2, 0, 3)).reshape(c2 * H4 * W4, -1)
    p["wf1"] = wf1.astype(jnp.bfloat16)                       # rows now = (h, w, c) = NHWC flatten
    p["bf1"] = raw["bf1"].reshape(1, -1).astype(jnp.float32)
    p["wf2"] = raw["wf2"].astype(jnp.float32)
    p["bf2"] = raw["bf2"].reshape(1, -1).astype(jnp.float32)
    return p


@jax.jit
def net_forward(x_nchw, params):
    x = jnp.transpose(x_nchw, (0, 2, 3, 1))                   # NCHW -> NHWC (once, at the input)
    N, H, W, _ = x.shape
    feats = fused_conv_block(
        x, params["w11"], params["b11"], params["w12"], params["b12"],
        params["w21"], params["b21"], params["w22"], params["b22"], H=H, W=W)
    flat = feats.reshape(N, -1).astype(jnp.bfloat16)          # NHWC flatten; wf1 rows pre-permuted
    return mlp_head(flat, params["wf1"], params["bf1"], params["wf2"], params["bf2"])


# ---------------------------------------------------------------------------
# Deterministic parameter init + smoke test
# ---------------------------------------------------------------------------
if __name__ == "__main__":
    key = jax.random.PRNGKey(0)
    keys = jax.random.split(key, 7)

    N, CIN, H, W = 2, 3, 16, 16          # small stand-in for the (1, 3, 300, 300) original
    feat = 128 * (H // 4) * (W // 4)     # analogue of 128 * 75 * 75

    def init_conv(k, cin, cout):
        kw, kb = jax.random.split(k)
        w = jax.random.normal(kw, (3, 3, cin, cout), jnp.float32) / jnp.sqrt(9.0 * cin)
        b = 0.01 * jax.random.normal(kb, (cout,), jnp.float32)
        return w, b

    def init_fc(k, fin, fout):
        kw, kb = jax.random.split(k)
        w = jax.random.normal(kw, (fin, fout), jnp.float32) / jnp.sqrt(float(fin))
        b = 0.01 * jax.random.normal(kb, (fout,), jnp.float32)
        return w, b

    raw = {}
    raw["w11"], raw["b11"] = init_conv(keys[0], CIN, 64)
    raw["w12"], raw["b12"] = init_conv(keys[1], 64, 64)
    raw["w21"], raw["b21"] = init_conv(keys[2], 64, 128)
    raw["w22"], raw["b22"] = init_conv(keys[3], 128, 128)
    raw["wf1"], raw["bf1"] = init_fc(keys[4], feat, 128)
    raw["wf2"], raw["bf2"] = init_fc(keys[5], 128, 5)

    params = prepare_params(raw, H, W)
    x = jax.random.normal(keys[6], (N, CIN, H, W), jnp.float32)   # NCHW like PyTorch

    out = jax.block_until_ready(net_forward(x, params))

    assert out.shape == (N, 5), out.shape
    assert bool(jnp.all(jnp.isfinite(out)))
    # softmax rows must sum to 1
    assert jnp.allclose(jnp.sum(out, axis=1), jnp.ones((N,)), atol=1e-4)
    print("KERNEL_OK")
</pallas_src>

<mosaic_0001>
module attributes {stable_mosaic.version = 11 : i64} {
  func.func @_fused_conv_kernel(%arg0: i32, %arg1: memref<1x16x16x3xf32, #tpu.memory_space<vmem>>, %arg2: memref<27x64xbf16, #tpu.memory_space<vmem>>, %arg3: memref<1x64xf32, #tpu.memory_space<vmem>>, %arg4: memref<576x64xbf16, #tpu.memory_space<vmem>>, %arg5: memref<1x64xf32, #tpu.memory_space<vmem>>, %arg6: memref<576x128xbf16, #tpu.memory_space<vmem>>, %arg7: memref<1x128xf32, #tpu.memory_space<vmem>>, %arg8: memref<1152x128xbf16, #tpu.memory_space<vmem>>, %arg9: memref<1x128xf32, #tpu.memory_space<vmem>>, %arg10: memref<1x16x128xf32, #tpu.memory_space<vmem>>, %arg11: memref<128x64xf32, #tpu.memory_space<vmem>>, %arg12: memref<32x128xf32, #tpu.memory_space<vmem>>) attributes {dimension_semantics = [#tpu.dimension_semantics<parallel>], iteration_bounds = array<i64: 2>, scalar_prefetch = 0 : i64, scratch_operands = 2 : i64, tpu.core_type = #tpu.core_type<tc>, window_params = [{transform_indices = @transform_0, window_bounds = array<i64: 1, 16, 16, 3>}, {pipeline_mode = #tpu.pipeline_mode<synchronous>, transform_indices = @transform_1, window_bounds = array<i64: 27, 64>}, {pipeline_mode = #tpu.pipeline_mode<synchronous>, transform_indices = @transform_2, window_bounds = array<i64: 1, 64>}, {pipeline_mode = #tpu.pipeline_mode<synchronous>, transform_indices = @transform_3, window_bounds = array<i64: 576, 64>}, {pipeline_mode = #tpu.pipeline_mode<synchronous>, transform_indices = @transform_4, window_bounds = array<i64: 1, 64>}, {pipeline_mode = #tpu.pipeline_mode<synchronous>, transform_indices = @transform_5, window_bounds = array<i64: 576, 128>}, {pipeline_mode = #tpu.pipeline_mode<synchronous>, transform_indices = @transform_6, window_bounds = array<i64: 1, 128>}, {pipeline_mode = #tpu.pipeline_mode<synchronous>, transform_indices = @transform_7, window_bounds = array<i64: 1152, 128>}, {pipeline_mode = #tpu.pipeline_mode<synchronous>, transform_indices = @transform_8, window_bounds = array<i64: 1, 128>}, {transform_indices = @transform_9, window_bounds = array<i64: 1, 16, 128>}]} {
    %c0 = arith.constant 0 : index
    %c0_0 = arith.constant 0 : index
    %c0_1 = arith.constant 0 : index
    %c0_2 = arith.constant 0 : index
    %0 = vector.load %arg1[%c0, %c0_0, %c0_1, %c0_2] : memref<1x16x16x3xf32, #tpu.memory_space<vmem>>, vector<1x16x16x3xf32>
    %1 = vector.shape_cast %0 : vector<1x16x16x3xf32> to vector<16x16x3xf32>
    %cst = arith.constant 0.000000e+00 : f32
    %2 = vector.broadcast %cst : f32 to vector<1x16x3xf32>
    %3 = tpu.concatenate %2, %1, %2 in 0 : vector<1x16x3xf32>, vector<16x16x3xf32>, vector<1x16x3xf32> -> vector<18x16x3xf32>
    %4 = tpu.iota {dimensions = array<i32: 1>} : vector<18x16x3xi32>
    %cst_3 = arith.constant 0.000000e+00 : f32
    %5 = vector.broadcast %cst_3 : f32 to vector<18x16x3xf32>
    %c0_i32 = arith.constant 0 : i32
    %6 = vector.broadcast %c0_i32 : i32 to vector<18x16x3xi32>
    %7 = arith.cmpi eq, %4, %6 : vector<18x16x3xi32>
    %c1_i32 = arith.constant 1 : i32
    %8 = tpu.dynamic_rotate %3 by %c1_i32 dim 1 : vector<18x16x3xf32>, i32 -> vector<18x16x3xf32>
    %9 = arith.select %7, %5, %8 : vector<18x16x3xi1>, vector<18x16x3xf32>
    %c15_i32 = arith.constant 15 : i32
    %10 = vector.broadcast %c15_i32 : i32 to vector<18x16x3xi32>
    %11 = arith.cmpi eq, %4, %10 : vector<18x16x3xi32>
    %c15_i32_4 = arith.constant 15 : i32
    %12 = tpu.dynamic_rotate %3 by %c15_i32_4 dim 1 : vector<18x16x3xf32>, i32 -> vector<18x16x3xf32>
    %13 = arith.select %11, %5, %12 : vector<18x16x3xi1>, vector<18x16x3xf32>
    %14 = vector.extract_strided_slice %9 {offsets = [0, 0, 0], sizes = [16, 16, 3], strides = [1, 1, 1]} : vector<18x16x3xf32> to vector<16x16x3xf32>
    %15 = vector.extract_strided_slice %3 {offsets = [0, 0, 0], sizes = [16, 16, 3], strides = [1, 1, 1]} : vector<18x16x3xf32> to vector<16x16x3xf32>
    %16 = vector.extract_strided_slice %13 {offsets = [0, 0, 0], sizes = [16, 16, 3], strides = [1, 1, 1]} : vector<18x16x3xf32> to vector<16x16x3xf32>
    %17 = vector.extract_strided_slice %9 {offsets = [1, 0, 0], sizes = [16, 16, 3], strides = [1, 1, 1]} : vector<18x16x3xf32> to vector<16x16x3xf32>
    %18 = vector.extract_strided_slice %3 {offsets = [1, 0, 0], sizes = [16, 16, 3], strides = [1, 1, 1]} : vector<18x16x3xf32> to vector<16x16x3xf32>
    %19 = vector.extract_strided_slice %13 {offsets = [1, 0, 0], sizes = [16, 16, 3], strides = [1, 1, 1]} : vector<18x16x3xf32> to vector<16x16x3xf32>
    %20 = vector.extract_strided_slice %9 {offsets = [2, 0, 0], sizes = [16, 16, 3], strides = [1, 1, 1]} : vector<18x16x3xf32> to vector<16x16x3xf32>
    %21 = vector.extract_strided_slice %3 {offsets = [2, 0, 0], sizes = [16, 16, 3], strides = [1, 1, 1]} : vector<18x16x3xf32> to vector<16x16x3xf32>
    %22 = vector.extract_strided_slice %13 {offsets = [2, 0, 0], sizes = [16, 16, 3], strides = [1, 1, 1]} : vector<18x16x3xf32> to vector<16x16x3xf32>
    %23 = tpu.concatenate %14, %15, %16, %17, %18, %19, %20, %21, %22 in 2 : vector<16x16x3xf32>, vector<16x16x3xf32>, vector<16x16x3xf32>, vector<16x16x3xf32>, vector<16x16x3xf32>, vector<16x16x3xf32>, vector<16x16x3xf32>, vector<16x16x3xf32>, vector<16x16x3xf32> -> vector<16x16x27xf32>
    %24 = vector.shape_cast %23 : vector<16x16x27xf32> to vector<256x27xf32>
    %25 = arith.truncf %24 : vector<256x27xf32> to vector<256x27xbf16>
    %c0_5 = arith.constant 0 : index
    %c0_6 = arith.constant 0 : index
    %26 = vector.load %arg2[%c0_5, %c0_6] : memref<27x64xbf16, #tpu.memory_space<vmem>>, vector<27x64xbf16>
    %cst_7 = arith.constant dense<0.000000e+00> : vector<256x64xf32>
    %27 = tpu.matmul %25, %26, %cst_7 {dimension_numbers = #tpu.dot_dimension_numbers<[1], [0], [0], [1], [0, 0, 1, 1], [], []>} : vector<256x27xbf16>, vector<27x64xbf16>, vector<256x64xf32> -> vector<256x64xf32>
    %c0_8 = arith.constant 0 : index
    %c0_9 = arith.constant 0 : index
    %28 = vector.load %arg3[%c0_8, %c0_9] : memref<1x64xf32, #tpu.memory_space<vmem>>, vector<1x64xf32>
    %29 = vector.broadcast %28 : vector<1x64xf32> to vector<256x64xf32>
    %30 = arith.addf %27, %29 : vector<256x64xf32>
    %cst_10 = arith.constant 0.000000e+00 : f32
    %31 = vector.broadcast %cst_10 : f32 to vector<256x64xf32>
    %32 = arith.maximumf %30, %31 : vector<256x64xf32>
    %33 = vector.shape_cast %32 : vector<256x64xf32> to vector<16x16x64xf32>
    %cst_11 = arith.constant 0.000000e+00 : f32
    %34 = vector.broadcast %cst_11 : f32 to vector<1x16x64xf32>
    %35 = tpu.concatenate %34, %33, %34 in 0 : vector<1x16x64xf32>, vector<16x16x64xf32>, vector<1x16x64xf32> -> vector<18x16x64xf32>
    %36 = tpu.iota {dimensions = array<i32: 1>} : vector<18x16x64xi32>
    %cst_12 = arith.constant 0.000000e+00 : f32
    %37 = vector.broadcast %cst_12 : f32 to vector<18x16x64xf32>
    %c0_i32_13 = arith.constant 0 : i32
    %38 = vector.broadcast %c0_i32_13 : i32 to vector<18x16x64xi32>
    %39 = arith.cmpi eq, %36, %38 : vector<18x16x64xi32>
    %c1_i32_14 = arith.constant 1 : i32
    %40 = tpu.dynamic_rotate %35 by %c1_i32_14 dim 1 : vector<18x16x64xf32>, i32 -> vector<18x16x64xf32>
    %41 = arith.select %39, %37, %40 : vector<18x16x64xi1>, vector<18x16x64xf32>
    %c15_i32_15 = arith.constant 15 : i32
    %42 = vector.broadcast %c15_i32_15 : i32 to vector<18x16x64xi32>
    %43 = arith.cmpi eq, %36, %42 : vector<18x16x64xi32>
    %c15_i32_16 = arith.constant 15 : i32
    %44 = tpu.dynamic_rotate %35 by %c15_i32_16 dim 1 : vector<18x16x64xf32>, i32 -> vector<18x16x64xf32>
    %45 = arith.select %43, %37, %44 : vector<18x16x64xi1>, vector<18x16x64xf32>
    %46 = vector.extract_strided_slice %41 {offsets = [0, 0, 0], sizes = [16, 16, 64], strides = [1, 1, 1]} : vector<18x16x64xf32> to vector<16x16x64xf32>
    %47 = vector.extract_strided_slice %35 {offsets = [0, 0, 0], sizes = [16, 16, 64], strides = [1, 1, 1]} : vector<18x16x64xf32> to vector<16x16x64xf32>
    %48 = vector.extract_strided_slice %45 {offsets = [0, 0, 0], sizes = [16, 16, 64], strides = [1, 1, 1]} : vector<18x16x64xf32> to vector<16x16x64xf32>
    %49 = vector.extract_strided_slice %41 {offsets = [1, 0, 0], sizes = [16, 16, 64], strides = [1, 1, 1]} : vector<18x16x64xf32> to vector<16x16x64xf32>
    %50 = vector.extract_strided_slice %35 {offsets = [1, 0, 0], sizes = [16, 16, 64], strides = [1, 1, 1]} : vector<18x16x64xf32> to vector<16x16x64xf32>
    %51 = vector.extract_strided_slice %45 {offsets = [1, 0, 0], sizes = [16, 16, 64], strides = [1, 1, 1]} : vector<18x16x64xf32> to vector<16x16x64xf32>
    %52 = vector.extract_strided_slice %41 {offsets = [2, 0, 0], sizes = [16, 16, 64], strides = [1, 1, 1]} : vector<18x16x64xf32> to vector<16x16x64xf32>
    %53 = vector.extract_strided_slice %35 {offsets = [2, 0, 0], sizes = [16, 16, 64], strides = [1, 1, 1]} : vector<18x16x64xf32> to vector<16x16x64xf32>
    %54 = vector.extract_strided_slice %45 {offsets = [2, 0, 0], sizes = [16, 16, 64], strides = [1, 1, 1]} : vector<18x16x64xf32> to vector<16x16x64xf32>
    %55 = tpu.concatenate %46, %47, %48, %49, %50, %51, %52, %53, %54 in 2 : vector<16x16x64xf32>, vector<16x16x64xf32>, vector<16x16x64xf32>, vector<16x16x64xf32>, vector<16x16x64xf32>, vector<16x16x64xf32>, vector<16x16x64xf32>, vector<16x16x64xf32>, vector<16x16x64xf32> -> vector<16x16x576xf32>
    %56 = vector.shape_cast %55 : vector<16x16x576xf32> to vector<256x576xf32>
    %57 = arith.truncf %56 : vector<256x576xf32> to vector<256x576xbf16>
    %c0_17 = arith.constant 0 : index
    %c0_18 = arith.constant 0 : index
    %58 = vector.load %arg4[%c0_17, %c0_18] : memref<576x64xbf16, #tpu.memory_space<vmem>>, vector<576x64xbf16>
    %cst_19 = arith.constant dense<0.000000e+00> : vector<256x64xf32>
    %59 = tpu.matmul %57, %58, %cst_19 {dimension_numbers = #tpu.dot_dimension_numbers<[1], [0], [0], [1], [0, 0, 1, 1], [], []>} : vector<256x576xbf16>, vector<576x64xbf16>, vector<256x64xf32> -> vector<256x64xf32>
    %c0_20 = arith.constant 0 : index
    %c0_21 = arith.constant 0 : index
    %60 = vector.load %arg5[%c0_20, %c0_21] : memref<1x64xf32, #tpu.memory_space<vmem>>, vector<1x64xf32>
    %61 = vector.broadcast %60 : vector<1x64xf32> to vector<256x64xf32>
    %62 = arith.addf %59, %61 : vector<256x64xf32>
    %cst_22 = arith.constant 0.000000e+00 : f32
    %63 = vector.broadcast %cst_22 : f32 to vector<256x64xf32>
    %64 = arith.maximumf %62, %63 : vector<256x64xf32>
    %65 = vector.shape_cast %64 : vector<256x64xf32> to vector<8x2x16x64xf32>
    %66 = vector.extract_strided_slice %65 {offsets = [0, 0, 0, 0], sizes = [8, 1, 16, 64], strides = [1, 1, 1, 1]} : vector<8x2x16x64xf32> to vector<8x1x16x64xf32>
    %67 = vector.shape_cast %66 : vector<8x1x16x64xf32> to vector<8x16x64xf32>
    %68 = vector.extract_strided_slice %65 {offsets = [0, 1, 0, 0], sizes = [8, 1, 16, 64], strides = [1, 1, 1, 1]} : vector<8x2x16x64xf32> to vector<8x1x16x64xf32>
    %69 = vector.shape_cast %68 : vector<8x1x16x64xf32> to vector<8x16x64xf32>
    %70 = arith.maximumf %67, %69 : vector<8x16x64xf32>
    %71 = vector.shape_cast %70 : vector<8x16x64xf32> to vector<128x64xf32>
    %c0_23 = arith.constant 0 : index
    %c0_24 = arith.constant 0 : index
    %72 = vector.load %arg11[%c0_23, %c0_24] : memref<128x64xf32, #tpu.memory_space<vmem>>, vector<128x64xf32>
    tpu.vector_store %arg11[%c0_23, %c0_24], %71 {strides = array<i32>} : memref<128x64xf32, #tpu.memory_space<vmem>>, vector<128x64xf32>,
    %c0_25 = arith.constant 0 : index
    %c0_26 = arith.constant 0 : index
    %73 = tpu.strided_load %arg11[%c0_25, %c0_26] {strides = array<i32: 2, 1>} : memref<128x64xf32, #tpu.memory_space<vmem>>, vector<64x64xf32>
    %c1 = arith.constant 1 : index
    %c0_27 = arith.constant 0 : index
    %74 = tpu.strided_load %arg11[%c1, %c0_27] {strides = array<i32: 2, 1>} : memref<128x64xf32, #tpu.memory_space<vmem>>, vector<64x64xf32>
    %75 = arith.maximumf %73, %74 : vector<64x64xf32>
    %76 = vector.shape_cast %75 : vector<64x64xf32> to vector<8x8x64xf32>
    %cst_28 = arith.constant 0.000000e+00 : f32
    %77 = vector.broadcast %cst_28 : f32 to vector<1x8x64xf32>
    %78 = tpu.concatenate %77, %76, %77 in 0 : vector<1x8x64xf32>, vector<8x8x64xf32>, vector<1x8x64xf32> -> vector<10x8x64xf32>
    %79 = tpu.iota {dimensions = array<i32: 1>} : vector<10x8x64xi32>
    %cst_29 = arith.constant 0.000000e+00 : f32
    %80 = vector.broadcast %cst_29 : f32 to vector<10x8x64xf32>
    %c0_i32_30 = arith.constant 0 : i32
    %81 = vector.broadcast %c0_i32_30 : i32 to vector<10x8x64xi32>
    %82 = arith.cmpi eq, %79, %81 : vector<10x8x64xi32>
    %c1_i32_31 = arith.constant 1 : i32
    %83 = tpu.dynamic_rotate %78 by %c1_i32_31 dim 1 : vector<10x8x64xf32>, i32 -> vector<10x8x64xf32>
    %84 = arith.select %82, %80, %83 : vector<10x8x64xi1>, vector<10x8x64xf32>
    %c7_i32 = arith.constant 7 : i32
    %85 = vector.broadcast %c7_i32 : i32 to vector<10x8x64xi32>
    %86 = arith.cmpi eq, %79, %85 : vector<10x8x64xi32>
    %c7_i32_32 = arith.constant 7 : i32
    %87 = tpu.dynamic_rotate %78 by %c7_i32_32 dim 1 : vector<10x8x64xf32>, i32 -> vector<10x8x64xf32>
    %88 = arith.select %86, %80, %87 : vector<10x8x64xi1>, vector<10x8x64xf32>
    %89 = vector.extract_strided_slice %84 {offsets = [0, 0, 0], sizes = [8, 8, 64], strides = [1, 1, 1]} : vector<10x8x64xf32> to vector<8x8x64xf32>
    %90 = vector.extract_strided_slice %78 {offsets = [0, 0, 0], sizes = [8, 8, 64], strides = [1, 1, 1]} : vector<10x8x64xf32> to vector<8x8x64xf32>
    %91 = vector.extract_strided_slice %88 {offsets = [0, 0, 0], sizes = [8, 8, 64], strides = [1, 1, 1]} : vector<10x8x64xf32> to vector<8x8x64xf32>
    %92 = vector.extract_strided_slice %84 {offsets = [1, 0, 0], sizes = [8, 8, 64], strides = [1, 1, 1]} : vector<10x8x64xf32> to vector<8x8x64xf32>
    %93 = vector.extract_strided_slice %78 {offsets = [1, 0, 0], sizes = [8, 8, 64], strides = [1, 1, 1]} : vector<10x8x64xf32> to vector<8x8x64xf32>
    %94 = vector.extract_strided_slice %88 {offsets = [1, 0, 0], sizes = [8, 8, 64], strides = [1, 1, 1]} : vector<10x8x64xf32> to vector<8x8x64xf32>
    %95 = vector.extract_strided_slice %84 {offsets = [2, 0, 0], sizes = [8, 8, 64], strides = [1, 1, 1]} : vector<10x8x64xf32> to vector<8x8x64xf32>
    %96 = vector.extract_strided_slice %78 {offsets = [2, 0, 0], sizes = [8, 8, 64], strides = [1, 1, 1]} : vector<10x8x64xf32> to vector<8x8x64xf32>
    %97 = vector.extract_strided_slice %88 {offsets = [2, 0, 0], sizes = [8, 8, 64], strides = [1, 1, 1]} : vector<10x8x64xf32> to vector<8x8x64xf32>
    %98 = tpu.concatenate %89, %90, %91, %92, %93, %94, %95, %96, %97 in 2 : vector<8x8x64xf32>, vector<8x8x64xf32>, vector<8x8x64xf32>, vector<8x8x64xf32>, vector<8x8x64xf32>, vector<8x8x64xf32>, vector<8x8x64xf32>, vector<8x8x64xf32>, vector<8x8x64xf32> -> vector<8x8x576xf32>
    %99 = vector.shape_cast %98 : vector<8x8x576xf32> to vector<64x576xf32>
    %100 = arith.truncf %99 : vector<64x576xf32> to vector<64x576xbf16>
    %c0_33 = arith.constant 0 : index
    %c0_34 = arith.constant 0 : index
    %101 = vector.load %arg6[%c0_33, %c0_34] : memref<576x128xbf16, #tpu.memory_space<vmem>>, vector<576x128xbf16>
    %cst_35 = arith.constant dense<0.000000e+00> : vector<64x128xf32>
    %102 = tpu.matmul %100, %101, %cst_35 {dimension_numbers = #tpu.dot_dimension_numbers<[1], [0], [0], [1], [0, 0, 1, 1], [], []>} : vector<64x576xbf16>, vector<576x128xbf16>, vector<64x128xf32> -> vector<64x128xf32>
    %c0_36 = arith.constant 0 : index
    %c0_37 = arith.constant 0 : index
    %103 = vector.load %arg7[%c0_36, %c0_37] : memref<1x128xf32, #tpu.memory_space<vmem>>, vector<1x128xf32>
    %104 = vector.broadcast %103 : vector<1x128xf32> to vector<64x128xf32>
    %105 = arith.addf %102, %104 : vector<64x128xf32>
    %cst_38 = arith.constant 0.000000e+00 : f32
    %106 = vector.broadcast %cst_38 : f32 to vector<64x128xf32>
    %107 = arith.maximumf %105, %106 : vector<64x128xf32>
    %108 = vector.shape_cast %107 : vector<64x128xf32> to vector<8x8x128xf32>
    %cst_39 = arith.constant 0.000000e+00 : f32
    %109 = vector.broadcast %cst_39 : f32 to vector<1x8x128xf32>
    %110 = tpu.concatenate %109, %108, %109 in 0 : vector<1x8x128xf32>, vector<8x8x128xf32>, vector<1x8x128xf32> -> vector<10x8x128xf32>
    %111 = tpu.iota {dimensions = array<i32: 1>} : vector<10x8x128xi32>
    %cst_40 = arith.constant 0.000000e+00 : f32
    %112 = vector.broadcast %cst_40 : f32 to vector<10x8x128xf32>
    %c0_i32_41 = arith.constant 0 : i32
    %113 = vector.broadcast %c0_i32_41 : i32 to vector<10x8x128xi32>
    %114 = arith.cmpi eq, %111, %113 : vector<10x8x128xi32>
    %c1_i32_42 = arith.constant 1 : i32
    %115 = tpu.dynamic_rotate %110 by %c1_i32_42 dim 1 : vector<10x8x128xf32>, i32 -> vector<10x8x128xf32>
    %116 = arith.select %114, %112, %115 : vector<10x8x128xi1>, vector<10x8x128xf32>
    %c7_i32_43 = arith.constant 7 : i32
    %117 = vector.broadcast %c7_i32_43 : i32 to vector<10x8x128xi32>
    %118 = arith.cmpi eq, %111, %117 : vector<10x8x128xi32>
    %c7_i32_44 = arith.constant 7 : i32
    %119 = tpu.dynamic_rotate %110 by %c7_i32_44 dim 1 : vector<10x8x128xf32>, i32 -> vector<10x8x128xf32>
    %120 = arith.select %118, %112, %119 : vector<10x8x128xi1>, vector<10x8x128xf32>
    %121 = vector.extract_strided_slice %116 {offsets = [0, 0, 0], sizes = [8, 8, 128], strides = [1, 1, 1]} : vector<10x8x128xf32> to vector<8x8x128xf32>
    %122 = vector.extract_strided_slice %110 {offsets = [0, 0, 0], sizes = [8, 8, 128], strides = [1, 1, 1]} : vector<10x8x128xf32> to vector<8x8x128xf32>
    %123 = vector.extract_strided_slice %120 {offsets = [0, 0, 0], sizes = [8, 8, 128], strides = [1, 1, 1]} : vector<10x8x128xf32> to vector<8x8x128xf32>
    %124 = vector.extract_strided_slice %116 {offsets = [1, 0, 0], sizes = [8, 8, 128], strides = [1, 1, 1]} : vector<10x8x128xf32> to vector<8x8x128xf32>
    %125 = vector.extract_strided_slice %110 {offsets = [1, 0, 0], sizes = [8, 8, 128], strides = [1, 1, 1]} : vector<10x8x128xf32> to vector<8x8x128xf32>
    %126 = vector.extract_strided_slice %120 {offsets = [1, 0, 0], sizes = [8, 8, 128], strides = [1, 1, 1]} : vector<10x8x128xf32> to vector<8x8x128xf32>
    %127 = vector.extract_strided_slice %116 {offsets = [2, 0, 0], sizes = [8, 8, 128], strides = [1, 1, 1]} : vector<10x8x128xf32> to vector<8x8x128xf32>
    %128 = vector.extract_strided_slice %110 {offsets = [2, 0, 0], sizes = [8, 8, 128], strides = [1, 1, 1]} : vector<10x8x128xf32> to vector<8x8x128xf32>
    %129 = vector.extract_strided_slice %120 {offsets = [2, 0, 0], sizes = [8, 8, 128], strides = [1, 1, 1]} : vector<10x8x128xf32> to vector<8x8x128xf32>
    %130 = tpu.concatenate %121, %122, %123, %124, %125, %126, %127, %128, %129 in 2 : vector<8x8x128xf32>, vector<8x8x128xf32>, vector<8x8x128xf32>, vector<8x8x128xf32>, vector<8x8x128xf32>, vector<8x8x128xf32>, vector<8x8x128xf32>, vector<8x8x128xf32>, vector<8x8x128xf32> -> vector<8x8x1152xf32>
    %131 = vector.shape_cast %130 : vector<8x8x1152xf32> to vector<64x1152xf32>
    %132 = arith.truncf %131 : vector<64x1152xf32> to vector<64x1152xbf16>
    %c0_45 = arith.constant 0 : index
    %c0_46 = arith.constant 0 : index
    %133 = vector.load %arg8[%c0_45, %c0_46] : memref<1152x128xbf16, #tpu.memory_space<vmem>>, vector<1152x128xbf16>
    %cst_47 = arith.constant dense<0.000000e+00> : vector<64x128xf32>
    %134 = tpu.matmul %132, %133, %cst_47 {dimension_numbers = #tpu.dot_dimension_numbers<[1], [0], [0], [1], [0, 0, 1, 1], [], []>} : vector<64x1152xbf16>, vector<1152x128xbf16>, vector<64x128xf32> -> vector<64x128xf32>
    %c0_48 = arith.constant 0 : index
    %c0_49 = arith.constant 0 : index
    %135 = vector.load %arg9[%c0_48, %c0_49] : memref<1x128xf32, #tpu.memory_space<vmem>>, vector<1x128xf32>
    %136 = vector.broadcast %135 : vector<1x128xf32> to vector<64x128xf32>
    %137 = arith.addf %134, %136 : vector<64x128xf32>
    %cst_50 = arith.constant 0.000000e+00 : f32
    %138 = vector.broadcast %cst_50 : f32 to vector<64x128xf32>
    %139 = arith.maximumf %137, %138 : vector<64x128xf32>
    %140 = vector.shape_cast %139 : vector<64x128xf32> to vector<4x2x8x128xf32>
    %141 = vector.extract_strided_slice %140 {offsets = [0, 0, 0, 0], sizes = [4, 1, 8, 128], strides = [1, 1, 1, 1]} : vector<4x2x8x128xf32> to vector<4x1x8x128xf32>
    %142 = vector.shape_cast %141 : vector<4x1x8x128xf32> to vector<4x8x128xf32>
    %143 = vector.extract_strided_slice %140 {offsets = [0, 1, 0, 0], sizes = [4, 1, 8, 128], strides = [1, 1, 1, 1]} : vector<4x2x8x128xf32> to vector<4x1x8x128xf32>
    %144 = vector.shape_cast %143 : vector<4x1x8x128xf32> to vector<4x8x128xf32>
    %145 = arith.maximumf %142, %144 : vector<4x8x128xf32>
    %146 = vector.shape_cast %145 : vector<4x8x128xf32> to vector<32x128xf32>
    %c0_51 = arith.constant 0 : index
    %c0_52 = arith.constant 0 : index
    %147 = vector.load %arg12[%c0_51, %c0_52] : memref<32x128xf32, #tpu.memory_space<vmem>>, vector<32x128xf32>
    tpu.vector_store %arg12[%c0_51, %c0_52], %146 {strides = array<i32>} : memref<32x128xf32, #tpu.memory_space<vmem>>, vector<32x128xf32>,
    %c0_53 = arith.constant 0 : index
    %c0_54 = arith.constant 0 : index
    %148 = tpu.strided_load %arg12[%c0_53, %c0_54] {strides = array<i32: 2, 1>} : memref<32x128xf32, #tpu.memory_space<vmem>>, vector<16x128xf32>
    %c1_55 = arith.constant 1 : index
    %c0_56 = arith.constant 0 : index
    %149 = tpu.strided_load %arg12[%c1_55, %c0_56] {strides = array<i32: 2, 1>} : memref<32x128xf32, #tpu.memory_space<vmem>>, vector<16x128xf32>
    %150 = arith.maximumf %148, %149 : vector<16x128xf32>
    %c0_57 = arith.constant 0 : index
    %c0_58 = arith.constant 0 : index
    %c0_59 = arith.constant 0 : index
    %151 = vector.load %arg10[%c0_57, %c0_58, %c0_59] : memref<1x16x128xf32, #tpu.memory_space<vmem>>, vector<1x16x128xf32>
    %152 = vector.shape_cast %151 : vector<1x16x128xf32> to vector<16x128xf32>
    %153 = vector.shape_cast %150 : vector<16x128xf32> to vector<1x16x128xf32>
    tpu.vector_store %arg10[%c0_57, %c0_58, %c0_59], %153 {strides = array<i32>} : memref<1x16x128xf32, #tpu.memory_space<vmem>>, vector<1x16x128xf32>,
    return
  }
  func.func @transform_0(%arg0: i32) -> (i32, i32, i32, i32) {
    %c0_i32 = arith.constant 0 : i32
    %c0_i32_0 = arith.constant 0 : i32
    %c0_i32_1 = arith.constant 0 : i32
    %c0_i32_2 = arith.constant 0 : i32
    return %arg0, %c0_i32, %c0_i32_0, %c0_i32_1 : i32, i32, i32, i32
  }
  func.func @transform_1(%arg0: i32) -> (i32, i32) {
    %c0_i32 = arith.constant 0 : i32
    %c0_i32_0 = arith.constant 0 : i32
    %c0_i32_1 = arith.constant 0 : i32
    return %c0_i32, %c0_i32_0 : i32, i32
  }
  func.func @transform_2(%arg0: i32) -> (i32, i32) {
    %c0_i32 = arith.constant 0 : i32
    %c0_i32_0 = arith.constant 0 : i32
    %c0_i32_1 = arith.constant 0 : i32
    return %c0_i32, %c0_i32_0 : i32, i32
  }
  func.func @transform_3(%arg0: i32) -> (i32, i32) {
    %c0_i32 = arith.constant 0 : i32
    %c0_i32_0 = arith.constant 0 : i32
    %c0_i32_1 = arith.constant 0 : i32
    return %c0_i32, %c0_i32_0 : i32, i32
  }
  func.func @transform_4(%arg0: i32) -> (i32, i32) {
    %c0_i32 = arith.constant 0 : i32
    %c0_i32_0 = arith.constant 0 : i32
    %c0_i32_1 = arith.constant 0 : i32
    return %c0_i32, %c0_i32_0 : i32, i32
  }
  func.func @transform_5(%arg0: i32) -> (i32, i32) {
    %c0_i32 = arith.constant 0 : i32
    %c0_i32_0 = arith.constant 0 : i32
    %c0_i32_1 = arith.constant 0 : i32
    return %c0_i32, %c0_i32_0 : i32, i32
  }
  func.func @transform_6(%arg0: i32) -> (i32, i32) {
    %c0_i32 = arith.constant 0 : i32
    %c0_i32_0 = arith.constant 0 : i32
    %c0_i32_1 = arith.constant 0 : i32
    return %c0_i32, %c0_i32_0 : i32, i32
  }
  func.func @transform_7(%arg0: i32) -> (i32, i32) {
    %c0_i32 = arith.constant 0 : i32
    %c0_i32_0 = arith.constant 0 : i32
    %c0_i32_1 = arith.constant 0 : i32
    return %c0_i32, %c0_i32_0 : i32, i32
  }
  func.func @transform_8(%arg0: i32) -> (i32, i32) {
    %c0_i32 = arith.constant 0 : i32
    %c0_i32_0 = arith.constant 0 : i32
    %c0_i32_1 = arith.constant 0 : i32
    return %c0_i32, %c0_i32_0 : i32, i32
  }
  func.func @transform_9(%arg0: i32) -> (i32, i32, i32) {
    %c0_i32 = arith.constant 0 : i32
    %c0_i32_0 = arith.constant 0 : i32
    %c0_i32_1 = arith.constant 0 : i32
    return %arg0, %c0_i32, %c0_i32_0 : i32, i32, i32
  }
}

module attributes {stable_mosaic.version = 11 : i64} {
  func.func @_mlp_head_kernel(%arg0: i32, %arg1: memref<2x512xbf16, #tpu.memory_space<vmem>>, %arg2: memref<512x128xbf16, #tpu.memory_space<vmem>>, %arg3: memref<1x128xf32, #tpu.memory_space<vmem>>, %arg4: memref<128x5xf32, #tpu.memory_space<vmem>>, %arg5: memref<1x5xf32, #tpu.memory_space<vmem>>, %arg6: memref<2x5xf32, #tpu.memory_space<vmem>>, %arg7: memref<2x128xf32, #tpu.memory_space<vmem>>) attributes {dimension_semantics = [#tpu.dimension_semantics<arbitrary>], iteration_bounds = array<i64: 4>, scalar_prefetch = 0 : i64, scratch_operands = 1 : i64, tpu.core_type = #tpu.core_type<tc>, window_params = [{transform_indices = @transform_0, window_bounds = array<i64: 2, 512>}, {transform_indices = @transform_1, window_bounds = array<i64: 512, 128>}, {pipeline_mode = #tpu.pipeline_mode<synchronous>, transform_indices = @transform_2, window_bounds = array<i64: 1, 128>}, {pipeline_mode = #tpu.pipeline_mode<synchronous>, transform_indices = @transform_3, window_bounds = array<i64: 128, 5>}, {pipeline_mode = #tpu.pipeline_mode<synchronous>, transform_indices = @transform_4, window_bounds = array<i64: 1, 5>}, {pipeline_mode = #tpu.pipeline_mode<synchronous>, transform_indices = @transform_5, window_bounds = array<i64: 2, 5>}]} {
    %c0_i32 = arith.constant 0 : i32
    %0 = arith.cmpi eq, %arg0, %c0_i32 : i32
    %1 = arith.extui %0 : i1 to i32
    %c0_i32_0 = arith.constant 0 : i32
    %2 = arith.cmpi ne, %1, %c0_i32_0 : i32
    scf.if %2 {
      %cst_9 = arith.constant 0.000000e+00 : f32
      %12 = vector.broadcast %cst_9 : f32 to vector<2x128xf32>
      %c0_10 = arith.constant 0 : index
      %c0_11 = arith.constant 0 : index
      %13 = vector.load %arg7[%c0_10, %c0_11] : memref<2x128xf32, #tpu.memory_space<vmem>>, vector<2x128xf32>
      tpu.vector_store %arg7[%c0_10, %c0_11], %12 {strides = array<i32>} : memref<2x128xf32, #tpu.memory_space<vmem>>, vector<2x128xf32>,
    } else {
    }
    %c0 = arith.constant 0 : index
    %c0_1 = arith.constant 0 : index
    %3 = vector.load %arg7[%c0, %c0_1] : memref<2x128xf32, #tpu.memory_space<vmem>>, vector<2x128xf32>
    %c0_2 = arith.constant 0 : index
    %c0_3 = arith.constant 0 : index
    %4 = vector.load %arg1[%c0_2, %c0_3] : memref<2x512xbf16, #tpu.memory_space<vmem>>, vector<2x512xbf16>
    %c0_4 = arith.constant 0 : index
    %c0_5 = arith.constant 0 : index
    %5 = vector.load %arg2[%c0_4, %c0_5] : memref<512x128xbf16, #tpu.memory_space<vmem>>, vector<512x128xbf16>
    %cst = arith.constant dense<0.000000e+00> : vector<2x128xf32>
    %6 = tpu.matmul %4, %5, %cst {dimension_numbers = #tpu.dot_dimension_numbers<[1], [0], [0], [1], [0, 0, 1, 1], [], []>} : vector<2x512xbf16>, vector<512x128xbf16>, vector<2x128xf32> -> vector<2x128xf32>
    %7 = arith.addf %3, %6 : vector<2x128xf32>
    %c0_6 = arith.constant 0 : index
    %c0_7 = arith.constant 0 : index
    %8 = vector.load %arg7[%c0_6, %c0_7] : memref<2x128xf32, #tpu.memory_space<vmem>>, vector<2x128xf32>
    tpu.vector_store %arg7[%c0_6, %c0_7], %7 {strides = array<i32>} : memref<2x128xf32, #tpu.memory_space<vmem>>, vector<2x128xf32>,
    %c3_i32 = arith.constant 3 : i32
    %9 = arith.cmpi eq, %arg0, %c3_i32 : i32
    %10 = arith.extui %9 : i1 to i32
    %c0_i32_8 = arith.constant 0 : i32
    %11 = arith.cmpi ne, %10, %c0_i32_8 : i32
    scf.if %11 {
      %c0_9 = arith.constant 0 : index
      %c0_10 = arith.constant 0 : index
      %12 = vector.load %arg7[%c0_9, %c0_10] : memref<2x128xf32, #tpu.memory_space<vmem>>, vector<2x128xf32>
      %c0_11 = arith.constant 0 : index
      %c0_12 = arith.constant 0 : index
      %13 = vector.load %arg3[%c0_11, %c0_12] : memref<1x128xf32, #tpu.memory_space<vmem>>, vector<1x128xf32>
      %14 = vector.broadcast %13 : vector<1x128xf32> to vector<2x128xf32>
      %15 = arith.addf %12, %14 : vector<2x128xf32>
      %cst_13 = arith.constant 0.000000e+00 : f32
      %16 = vector.broadcast %cst_13 : f32 to vector<2x128xf32>
      %17 = arith.maximumf %15, %16 : vector<2x128xf32>
      %c0_14 = arith.constant 0 : index
      %c0_15 = arith.constant 0 : index
      %18 = vector.load %arg4[%c0_14, %c0_15] : memref<128x5xf32, #tpu.memory_space<vmem>>, vector<128x5xf32>
      %cst_16 = arith.constant dense<0.000000e+00> : vector<2x5xf32>
      %19 = tpu.matmul %17, %18, %cst_16 {dimension_numbers = #tpu.dot_dimension_numbers<[1], [0], [0], [1], [0, 0, 1, 1], [], []>} : vector<2x128xf32>, vector<128x5xf32>, vector<2x5xf32> -> vector<2x5xf32>
      %c0_17 = arith.constant 0 : index
      %c0_18 = arith.constant 0 : index
      %20 = vector.load %arg5[%c0_17, %c0_18] : memref<1x5xf32, #tpu.memory_space<vmem>>, vector<1x5xf32>
      %21 = vector.broadcast %20 : vector<1x5xf32> to vector<2x5xf32>
      %22 = arith.addf %19, %21 : vector<2x5xf32>
      %cst_19 = arith.constant dense<0xFF800000> : vector<2xf32>
      %23 = vector.multi_reduction <maximumf>, %22, %cst_19 [1] : vector<2x5xf32> to vector<2xf32>
      %24 = vector.shape_cast %23 : vector<2xf32> to vector<2x1xf32>
      %25 = vector.broadcast %24 : vector<2x1xf32> to vector<2x5xf32>
      %26 = arith.subf %22, %25 : vector<2x5xf32>
      %27 = math.exp %26 : vector<2x5xf32>
      %cst_20 = arith.constant dense<0.000000e+00> : vector<2xf32>
      %28 = vector.multi_reduction <add>, %27, %cst_20 [1] : vector<2x5xf32> to vector<2xf32>
      %29 = vector.shape_cast %28 : vector<2xf32> to vector<2x1xf32>
      %30 = vector.broadcast %29 : vector<2x1xf32> to vector<2x5xf32>
      %31 = arith.divf %27, %30 : vector<2x5xf32>
      %c0_21 = arith.constant 0 : index
      %c0_22 = arith.constant 0 : index
      %32 = vector.load %arg6[%c0_21, %c0_22] : memref<2x5xf32, #tpu.memory_space<vmem>>, vector<2x5xf32>
      tpu.vector_store %arg6[%c0_21, %c0_22], %31 {strides = array<i32>} : memref<2x5xf32, #tpu.memory_space<vmem>>, vector<2x5xf32>,
    } else {
    }
    return
  }
  func.func @transform_0(%arg0: i32) -> (i32, i32) {
    %c0_i32 = arith.constant 0 : i32
    %c0_i32_0 = arith.constant 0 : i32
    return %c0_i32, %arg0 : i32, i32
  }
  func.func @transform_1(%arg0: i32) -> (i32, i32) {
    %c0_i32 = arith.constant 0 : i32
    %c0_i32_0 = arith.constant 0 : i32
    return %arg0, %c0_i32 : i32, i32
  }
  func.func @transform_2(%arg0: i32) -> (i32, i32) {
    %c0_i32 = arith.constant 0 : i32
    %c0_i32_0 = arith.constant 0 : i32
    %c0_i32_1 = arith.constant 0 : i32
    return %c0_i32, %c0_i32_0 : i32, i32
  }
  func.func @transform_3(%arg0: i32) -> (i32, i32) {
    %c0_i32 = arith.constant 0 : i32
    %c0_i32_0 = arith.constant 0 : i32
    %c0_i32_1 = arith.constant 0 : i32
    return %c0_i32, %c0_i32_0 : i32, i32
  }
  func.func @transform_4(%arg0: i32) -> (i32, i32) {
    %c0_i32 = arith.constant 0 : i32
    %c0_i32_0 = arith.constant 0 : i32
    %c0_i32_1 = arith.constant 0 : i32
    return %c0_i32, %c0_i32_0 : i32, i32
  }
  func.func @transform_5(%arg0: i32) -> (i32, i32) {
    %c0_i32 = arith.constant 0 : i32
    %c0_i32_0 = arith.constant 0 : i32
    %c0_i32_1 = arith.constant 0 : i32
    return %c0_i32, %c0_i32_0 : i32, i32
  }
}

</mosaic_0001>

<llo_original>
// kernel: net_forward.3
$region0: #{net_forward.3}
  #allocation0 [shape = 'u32[]', space=smem, size = 0x4, offset = 0x4, fixed_abs, tag = 'smem constant byte address 0x4 - core index']
  #allocation1 [shape = 'u32[144,128]{1,0:T(1,128)}', space=vmem, size = 0x12000, scoped, tag = 'internal scratch']
  #allocation2 [shape = 'f32[2,128]{1,0:T(2,128)}', space=vmem, size = 0x400, scoped, tag = 'scratch operand']
  %s0 = inlined_call_operand.vmem [shape: bf16[2,2048], index: 0, kind: input, shape index: {}]
  %s1 = inlined_call_operand.vmem [shape: bf16[2048,128], index: 1, kind: input, shape index: {}]
  %s2 = inlined_call_operand.vmem [shape: f32[1,128], index: 2, kind: input, shape index: {}]
  %s3 = inlined_call_operand.vmem [shape: f32[128,5], index: 3, kind: input, shape index: {}]
  %s4 = inlined_call_operand.vmem [shape: f32[1,5], index: 4, kind: input, shape index: {}]
  %s5 = inlined_call_operand.hbm [shape: f32[2,5], index: 5, kind: output, shape index: {}]
  %s6 = sld [smem:[#allocation0]]
  $region61: #{net_forward.3} parent=0
    _
  %s8 = ssub.s32 1, %s6
  %s9 = scalar_select 0, %s8, %s6
  $region1: #{net_forward.3} parent=0
    #allocation3 [shape = 'u8[1024]{0}', space=vmem, size = 0x400, scoped, tag = 'output window, operand 0, single buffered']
    #allocation4 [shape = 's32[2]{0}', space=sflag, size = 0x8, scoped, tag = 'scoped memory for net_forward.3']
    %10 = vsyncpa [#allocation4], 0
    loop: start=0, step=1, limit=6
    $region2: #{net_forward.3} parent=1 // loop_pre_header
      _
    $region3: #{net_forward.3} parent=1 // loop_header
      %s12 = sphi 0, %s16
      %p13 = scmp.ge.s32.totalorder %s12, 6
      %s22 = sphi 0, %s24
      %s25 = sphi 0, %s22
      %s26 = sphi 0, %s25
      %s42 = sphi 0, %s26
      %s48 = sphi 0, %s50
      %s51 = sphi 0, %s48
      %s52 = sphi 0, %s51
      %s68 = sphi 0, %s52
      %s72 = sphi 0, %s72
      %s74 = sphi 0, %s72
      %s75 = sphi 0, %s74
      %s89 = sphi 0, %s75
      %s93 = sphi 0, %s93
      %s95 = sphi 0, %s93
      %s96 = sphi 0, %s95
      %s110 = sphi 0, %s96
      %s114 = sphi 0, %s114
      %s116 = sphi 0, %s114
      %s117 = sphi 0, %s116
      %s131 = sphi 0, %s117
      %s135 = sphi 0, %s135
      %s137 = sphi 0, %s135
      %s138 = sphi 0, %s137
      %s152 = sphi 0, %s138
    $region4: #{net_forward.3} parent=1 // loop_header_branch
      %15 = sbr.rel (%p13) target = $region8
    $region5: #{net_forward.3} parent=1 // loop_body
      %s17 = ssub.s32 %s12, 1
      %s18 = ssub.s32 %s12, 2
      %s19 = sadd.s32 %s12, 1
      %s20 = ssub.s32 %s12, %s19
      %p21 = scmp.eq.s32.totalorder %s20, 0
      %s23 = sadd.s32 %s22, 1
      %s24 = scalar_select %p21, %s22, %s23
      %p27 = pneg %p21
      %p28 = scmp.eq.s32.totalorder %s12, 3
      %p29 = por %p27, %p28
      %p30 = scmp.ne.s32.totalorder %s22, %s25
      %p31 = scmp.eq.s32.totalorder %s12, 0
      %p32 = por %p30, %p31
      %p33 = scmp.ne.s32.totalorder %s22, %s25
      %p34 = scmp.eq.s32.totalorder %s17, 3
      %p35 = por %p33, %p34
      %p36 = scmp.ne.s32.totalorder %s25, %s26
      %p37 = scmp.eq.s32.totalorder %s17, 0
      %p38 = por %p36, %p37
      %p39 = scmp.ne.s32.totalorder %s25, %s26
      %p40 = scmp.eq.s32.totalorder %s18, 3
      %p41 = por %p39, %p40
      %p43 = scmp.ne.s32.totalorder %s26, %s42
      %p44 = scmp.eq.s32.totalorder %s18, 0
      %p45 = por %p43, %p44
      %s46 = ssub.s32 %s12, %s19
      %p47 = scmp.eq.s32.totalorder %s46, 0
      %s49 = sadd.s32 %s48, 1
      %s50 = scalar_select %p47, %s48, %s49
      %p53 = pneg %p47
      %p54 = scmp.eq.s32.totalorder %s12, 3
      %p55 = por %p53, %p54
      %p56 = scmp.ne.s32.totalorder %s48, %s51
      %p57 = scmp.eq.s32.totalorder %s12, 0
      %p58 = por %p56, %p57
      %p59 = scmp.ne.s32.totalorder %s48, %s51
      %p60 = scmp.eq.s32.totalorder %s17, 3
      %p61 = por %p59, %p60
      %p62 = scmp.ne.s32.totalorder %s51, %s52
      %p63 = scmp.eq.s32.totalorder %s17, 0
      %p64 = por %p62, %p63
      %p65 = scmp.ne.s32.totalorder %s51, %s52
      %p66 = scmp.eq.s32.totalorder %s18, 3
      %p67 = por %p65, %p66
      %p69 = scmp.ne.s32.totalorder %s52, %s68
      %p70 = scmp.eq.s32.totalorder %s18, 0
      %p71 = por %p69, %p70
      %s73 = sadd.s32 %s72, 1
      %p76 = scmp.eq.s32.totalorder %s12, 3
      %p77 = scmp.ne.s32.totalorder %s72, %s74
      %p78 = scmp.eq.s32.totalorder %s12, 0
      %p79 = por %p77, %p78
      %p80 = scmp.ne.s32.totalorder %s72, %s74
      %p81 = scmp.eq.s32.totalorder %s17, 3
      %p82 = por %p80, %p81
      %p83 = scmp.ne.s32.totalorder %s74, %s75
      %p84 = scmp.eq.s32.totalorder %s17, 0
      %p85 = por %p83, %p84
      %p86 = scmp.ne.s32.totalorder %s74, %s75
      %p87 = scmp.eq.s32.totalorder %s18, 3
      %p88 = por %p86, %p87
      %p90 = scmp.ne.s32.totalorder %s75, %s89
      %p91 = scmp.eq.s32.totalorder %s18, 0
      %p92 = por %p90, %p91
      %s94 = sadd.s32 %s93, 1
      %p97 = scmp.eq.s32.totalorder %s12, 3
      %p98 = scmp.ne.s32.totalorder %s93, %s95
      %p99 = scmp.eq.s32.totalorder %s12, 0
      %p100 = por %p98, %p99
      %p101 = scmp.ne.s32.totalorder %s93, %s95
      %p102 = scmp.eq.s32.totalorder %s17, 3
      %p103 = por %p101, %p102
      %p104 = scmp.ne.s32.totalorder %s95, %s96
      %p105 = scmp.eq.s32.totalorder %s17, 0
      %p106 = por %p104, %p105
      %p107 = scmp.ne.s32.totalorder %s95, %s96
      %p108 = scmp.eq.s32.totalorder %s18, 3
      %p109 = por %p107, %p108
      %p111 = scmp.ne.s32.totalorder %s96, %s110
      %p112 = scmp.eq.s32.totalorder %s18, 0
      %p113 = por %p111, %p112
      %s115 = sadd.s32 %s114, 1
      %p118 = scmp.eq.s32.totalorder %s12, 3
      %p119 = scmp.ne.s32.totalorder %s114, %s116
      %p120 = scmp.eq.s32.totalorder %s12, 0
      %p121 = por %p119, %p120
      %p122 = scmp.ne.s32.totalorder %s114, %s116
      %p123 = scmp.eq.s32.totalorder %s17, 3
      %p124 = por %p122, %p123
      %p125 = scmp.ne.s32.totalorder %s116, %s117
      %p126 = scmp.eq.s32.totalorder %s17, 0
      %p127 = por %p125, %p126
      %p128 = scmp.ne.s32.totalorder %s116, %s117
      %p129 = scmp.eq.s32.totalorder %s18, 3
      %p130 = por %p128, %p129
      %p132 = scmp.ne.s32.totalorder %s117, %s131
      %p133 = scmp.eq.s32.totalorder %s18, 0
      %p134 = por %p132, %p133
      %s136 = sadd.s32 %s135, 1
      %p139 = scmp.eq.s32.totalorder %s12, 3
      %p140 = scmp.ne.s32.totalorder %s135, %s137
      %p141 = scmp.eq.s32.totalorder %s12, 0
      %p142 = por %p140, %p141
      %p143 = scmp.ne.s32.totalorder %s135, %s137
      %p144 = scmp.eq.s32.totalorder %s17, 3
      %p145 = por %p143, %p144
      %p146 = scmp.ne.s32.totalorder %s137, %s138
      %p147 = scmp.eq.s32.totalorder %s17, 0
      %p148 = por %p146, %p147
      %p149 = scmp.ne.s32.totalorder %s137, %s138
      %p150 = scmp.eq.s32.totalorder %s18, 3
      %p151 = por %p149, %p150
      %p153 = scmp.ne.s32.totalorder %s138, %s152
      %p154 = scmp.eq.s32.totalorder %s18, 0
      %p155 = por %p153, %p154
      %p156 = scmp.le.s32.totalorder 1, %s12
      %p157 = scmp.lt.s32.totalorder %s12, 5
      %p158 = pnand %p156, %p157
      %p159 = pneg %p158
      // Predicated region
      $region9: #{net_forward.3} parent=5 // pred_check
        _
      $region10: #{net_forward.3} parent=5 // pred_check_branch
        %161 = sbr.rel (%p158) target = $region12
      $region11: #{net_forward.3} parent=5 // pred_region
        %s162 = ssub.s32 %s12, 1
        // Predicated region
        $region13: #{net_forward.3} parent=11 // pred_check
          %p163 = pneg %p85
        $region14: #{net_forward.3} parent=11 // pred_check_branch
          %165 = sbr.rel (%p163) target = $region16
        $region15: #{net_forward.3} parent=11 // pred_region
          _
        $region16: #{net_forward.3} parent=11 // pred_fallthru
          _
        // Predicated region
        $region17: #{net_forward.3} parent=11 // pred_check
          %p166 = pneg %p106
        $region18: #{net_forward.3} parent=11 // pred_check_branch
          %168 = sbr.rel (%p166) target = $region20
        $region19: #{net_forward.3} parent=11 // pred_region
          _
        $region20: #{net_forward.3} parent=11 // pred_fallthru
          _
        // Predicated region
        $region21: #{net_forward.3} parent=11 // pred_check
          %p169 = pneg %p127
        $region22: #{net_forward.3} parent=11 // pred_check_branch
          %171 = sbr.rel (%p169) target = $region24
        $region23: #{net_forward.3} parent=11 // pred_region
          _
        $region24: #{net_forward.3} parent=11 // pred_fallthru
          _
      $region12: #{net_forward.3} parent=5 // pred_fallthru
        _
      %p172 = scmp.lt.s32.totalorder %s12, 4
      // Predicated region
      $region25: #{net_forward.3} parent=5 // pred_check
        %p173 = pneg %p172
      $region26: #{net_forward.3} parent=5 // pred_check_branch
        %175 = sbr.rel (%p173) target = $region28
      $region27: #{net_forward.3} parent=5 // pred_region
        // Predicated region
        $region29: #{net_forward.3} parent=27 // pred_check
          %p176 = pneg %p32
        $region30: #{net_forward.3} parent=27 // pred_check_branch
          %178 = sbr.rel (%p176) target = $region32
        $region31: #{net_forward.3} parent=27 // pred_region
          %s179 = smul.u32 4, %s12
          %p180 = scmp.lt.s32.totalorder %s179, 15
          %s181 = scalar_select %p180, %s179, 15
          %s182 = scalar_lea.vmem %s0, %s181
          %s183 = smul.u32 4, %s12
        $region32: #{net_forward.3} parent=27 // pred_fallthru
          _
        // Predicated region
        $region33: #{net_forward.3} parent=27 // pred_check
          %p184 = pneg %p58
        $region34: #{net_forward.3} parent=27 // pred_check_branch
          %186 = sbr.rel (%p184) target = $region36
        $region35: #{net_forward.3} parent=27 // pred_region
          %s187 = smul.u32 64, %s12
          %p188 = scmp.lt.s32.totalorder %s187, 255
          %s189 = scalar_select %p188, %s187, 255
          %s190 = smul.addr %s189, 4
          %s191 = scalar_lea.vmem %s1, %s190
          %s192 = smul.u32 64, %s12
        $region36: #{net_forward.3} parent=27 // pred_fallthru
          _
      $region28: #{net_forward.3} parent=5 // pred_fallthru
        _
      %p193 = scmp.le.s32.totalorder 1, %s12
      %p194 = scmp.lt.s32.totalorder %s12, 5
      %p195 = pnand %p193, %p194
      %p196 = pneg %p195
      // Predicated region
      $region37: #{net_forward.3} parent=5 // pred_check
        _
      $region38: #{net_forward.3} parent=5 // pred_check_branch
        %198 = sbr.rel (%p195) target = $region40
      $region39: #{net_forward.3} parent=5 // pred_region
        %s199 = ssub.s32 %s12, 1
        %s200 = smul.u32 4, %s17
        %p201 = scmp.lt.s32.totalorder %s200, 15
        %s202 = scalar_select %p201, %s200, 15
        %s203 = scalar_lea.vmem %s0, %s202
        %p204 = pneg %p38
        %p205 = pneg %p35
        %s206 = smul.u32 64, %s17
        %p207 = scmp.lt.s32.totalorder %s206, 255
        %s208 = scalar_select %p207, %s206, 255
        %s209 = smul.addr %s208, 4
        %s210 = scalar_lea.vmem %s1, %s209
        %p211 = pneg %p64
        %p212 = pneg %p61
        %p213 = pneg %p85
        %p214 = pneg %p82
        %p215 = pneg %p106
        %p216 = pneg %p103
        %p217 = pneg %p127
        %p218 = pneg %p124
        %p219 = pneg %p148
        %p220 = pneg %p145
        %s221 = smul.u32 4, %s17
        %p222 = scmp.lt.s32.totalorder %s221, 15
        %s223 = scalar_select %p222, %s221, 15
        %s224 = scalar_lea.vmem %s0, %s223
        %s225 = smul.u32 4, %s17
        %s226 = smul.u32 64, %s17
        %p227 = scmp.lt.s32.totalorder %s226, 255
        %s228 = scalar_select %p227, %s226, 255
        %s229 = smul.addr %s228, 4
        %s230 = scalar_lea.vmem %s1, %s229
        %s231 = smul.u32 64, %s17
        %p233 = scmp.eq.s32.totalorder %s17, 0
        // Predicated region
        $region41: #{net_forward.3} parent=39 // pred_check
          %p234 = pneg %p233
        $region42: #{net_forward.3} parent=39 // pred_check_branch
          %236 = sbr.rel (%p234) target = $region44
        $region43: #{net_forward.3} parent=39 // pred_region
          %237 = vst [vmem:[#allocation2] sm:$0x3] 0.0
        $region44: #{net_forward.3} parent=39 // pred_fallthru
          _
        %v238 = vld [vmem:[#allocation2] sm:$0x3]
        %v239 = vld [vmem:[%s224] sm:$0xf]
        %v240 = vld [vmem:[%s230] sm:$0xf]
        %v241 = vld [vmem:[%s230 + $0x4] sm:$0xf]
        %v242 = vld [vmem:[%s230 + $0x8] sm:$0xf]
        %v243 = vld [vmem:[%s230 + $0xc] sm:$0xf]
        %v244 = vld [vmem:[%s230 + $0x10] sm:$0xf]
        %v245 = vld [vmem:[%s230 + $0x14] sm:$0xf]
        %v246 = vld [vmem:[%s230 + $0x18] sm:$0xf]
        %v247 = vld [vmem:[%s230 + $0x1c] sm:$0xf]
        %v248 = vld [vmem:[%s230 + $0x20] sm:$0xf]
        %v249 = vld [vmem:[%s230 + $0x24] sm:$0xf]
        %v250 = vld [vmem:[%s230 + $0x28] sm:$0xf]
        %v251 = vld [vmem:[%s230 + $0x2c] sm:$0xf]
        %v252 = vld [vmem:[%s230 + $0x30] sm:$0xf]
        %v253 = vld [vmem:[%s230 + $0x34] sm:$0xf]
        %v254 = vld [vmem:[%s230 + $0x38] sm:$0xf]
        %v255 = vld [vmem:[%s230 + $0x3c] sm:$0xf]
        %v256 = vld [vmem:[%s230 + $0x40] sm:$0xf]
        %v257 = vld [vmem:[%s230 + $0x44] sm:$0xf]
        %v258 = vld [vmem:[%s230 + $0x48] sm:$0xf]
        %v259 = vld [vmem:[%s230 + $0x4c] sm:$0xf]
        %v260 = vld [vmem:[%s230 + $0x50] sm:$0xf]
        %v261 = vld [vmem:[%s230 + $0x54] sm:$0xf]
        %v262 = vld [vmem:[%s230 + $0x58] sm:$0xf]
        %v263 = vld [vmem:[%s230 + $0x5c] sm:$0xf]
        %v264 = vld [vmem:[%s230 + $0x60] sm:$0xf]
        %v265 = vld [vmem:[%s230 + $0x64] sm:$0xf]
        %v266 = vld [vmem:[%s230 + $0x68] sm:$0xf]
        %v267 = vld [vmem:[%s230 + $0x6c] sm:$0xf]
        %v268 = vld [vmem:[%s230 + $0x70] sm:$0xf]
        %v269 = vld [vmem:[%s230 + $0x74] sm:$0xf]
        %v270 = vld [vmem:[%s230 + $0x78] sm:$0xf]
        %v271 = vld [vmem:[%s230 + $0x7c] sm:$0xf]
        %v272 = vld [vmem:[%s230 + $0x80] sm:$0xf]
        %v273 = vld [vmem:[%s230 + $0x84] sm:$0xf]
        %v274 = vld [vmem:[%s230 + $0x88] sm:$0xf]
        %v275 = vld [vmem:[%s230 + $0x8c] sm:$0xf]
        %v276 = vld [vmem:[%s230 + $0x90] sm:$0xf]
        %v277 = vld [vmem:[%s230 + $0x94] sm:$0xf]
        %v278 = vld [vmem:[%s230 + $0x98] sm:$0xf]
        %v279 = vld [vmem:[%s230 + $0x9c] sm:$0xf]
        %v280 = vld [vmem:[%s230 + $0xa0] sm:$0xf]
        %v281 = vld [vmem:[%s230 + $0xa4] sm:$0xf]
        %v282 = vld [vmem:[%s230 + $0xa8] sm:$0xf]
        %v283 = vld [vmem:[%s230 + $0xac] sm:$0xf]
        %v284 = vld [vmem:[%s230 + $0xb0] sm:$0xf]
        %v285 = vld [vmem:[%s230 + $0xb4] sm:$0xf]
        %v286 = vld [vmem:[%s230 + $0xb8] sm:$0xf]
        %v287 = vld [vmem:[%s230 + $0xbc] sm:$0xf]
        %v288 = vld [vmem:[%s230 + $0xc0] sm:$0xf]
        %v289 = vld [vmem:[%s230 + $0xc4] sm:$0xf]
        %v290 = vld [vmem:[%s230 + $0xc8] sm:$0xf]
        %v291 = vld [vmem:[%s230 + $0xcc] sm:$0xf]
        %v292 = vld [vmem:[%s230 + $0xd0] sm:$0xf]
        %v293 = vld [vmem:[%s230 + $0xd4] sm:$0xf]
        %v294 = vld [vmem:[%s230 + $0xd8] sm:$0xf]
        %v295 = vld [vmem:[%s230 + $0xdc] sm:$0xf]
        %v296 = vld [vmem:[%s230 + $0xe0] sm:$0xf]
        %v297 = vld [vmem:[%s230 + $0xe4] sm:$0xf]
        %v298 = vld [vmem:[%s230 + $0xe8] sm:$0xf]
        %v299 = vld [vmem:[%s230 + $0xec] sm:$0xf]
        %v300 = vld [vmem:[%s230 + $0xf0] sm:$0xf]
        %v301 = vld [vmem:[%s230 + $0xf4] sm:$0xf]
        %v302 = vld [vmem:[%s230 + $0xf8] sm:$0xf]
        %v303 = vld [vmem:[%s230 + $0xfc] sm:$0xf]
        %v306 = vunpack.c.l.s4 1966171168
        %v307 = vunpack.c.0.s8 %v306
        %v308 = vlaneseq
        %v309 = vshrl.u32 %v308, 7
        %v310 = vsub.s32 %v307, %v309
        %v311 = vrot.slane %v239, %v310
        %v312 = vcombine.high %v311, %v311
        %v314 = vunpack.c.l.s4 1966171168
        %v315 = vunpack.c.0.s8 %v314
        %v316 = vlaneseq
        %v317 = vshrl.u32 %v316, 7
        %v318 = vsub.s32 %v315, %v317
        %v319 = vrot.slane %v311, %v318
        %v321 = vunpack.c.l.s4 1966171168
        %v322 = vunpack.c.0.s8 %v321
        %v323 = vlaneseq
        %v324 = vshrl.u32 %v323, 7
        %v325 = vsub.s32 %v322, %v324
        %v326 = vrot.slane %v312, %v325
        %v327 = vcombine.high %v319, %v319
        %v328 = vcombine.high %v326, %v326
        %v397 = vunpack.c.l.b16 %v240
        %v398 = vunpack.c.l.b16 %v241
        %v399 = vunpack.c.l.b16 %v242
        %v400 = vunpack.c.l.b16 %v243
        %v401 = vunpack.c.l.b16 %v244
        %v402 = vunpack.c.l.b16 %v245
        %v403 = vunpack.c.l.b16 %v246
        %v404 = vunpack.c.l.b16 %v247
        %v405 = vunpack.c.l.b16 %v248
        %v406 = vunpack.c.l.b16 %v249
        %v407 = vunpack.c.l.b16 %v250
        %v408 = vunpack.c.l.b16 %v251
        %v409 = vunpack.c.l.b16 %v252
        %v410 = vunpack.c.l.b16 %v253
        %v411 = vunpack.c.l.b16 %v254
        %v412 = vunpack.c.l.b16 %v255
        %v413 = vunpack.c.l.b16 %v256
        %v414 = vunpack.c.l.b16 %v257
        %v415 = vunpack.c.l.b16 %v258
        %v416 = vunpack.c.l.b16 %v259
        %v417 = vunpack.c.l.b16 %v260
        %v418 = vunpack.c.l.b16 %v261
        %v419 = vunpack.c.l.b16 %v262
        %v420 = vunpack.c.l.b16 %v263
        %v421 = vunpack.c.l.b16 %v264
        %v422 = vunpack.c.l.b16 %v265
        %v423 = vunpack.c.l.b16 %v266
        %v424 = vunpack.c.l.b16 %v267
        %v425 = vunpack.c.l.b16 %v268
        %v426 = vunpack.c.l.b16 %v269
        %v427 = vunpack.c.l.b16 %v270
        %v428 = vunpack.c.l.b16 %v271
        %v429 = vunpack.c.l.b16 %v272
        %v430 = vunpack.c.l.b16 %v273
        %v431 = vunpack.c.l.b16 %v274
        %v432 = vunpack.c.l.b16 %v275
        %v433 = vunpack.c.l.b16 %v276
        %v434 = vunpack.c.l.b16 %v277
        %v435 = vunpack.c.l.b16 %v278
        %v436 = vunpack.c.l.b16 %v279
        %v437 = vunpack.c.l.b16 %v280
        %v438 = vunpack.c.l.b16 %v281
        %v439 = vunpack.c.l.b16 %v282
        %v440 = vunpack.c.l.b16 %v283
        %v441 = vunpack.c.l.b16 %v284
        %v442 = vunpack.c.l.b16 %v285
        %v443 = vunpack.c.l.b16 %v286
        %v444 = vunpack.c.l.b16 %v287
        %v445 = vunpack.c.l.b16 %v288
        %v446 = vunpack.c.l.b16 %v289
        %v447 = vunpack.c.l.b16 %v290
        %v448 = vunpack.c.l.b16 %v291
        %v449 = vunpack.c.l.b16 %v292
        %v450 = vunpack.c.l.b16 %v293
        %v451 = vunpack.c.l.b16 %v294
        %v452 = vunpack.c.l.b16 %v295
        %v453 = vunpack.c.l.b16 %v296
        %v454 = vunpack.c.l.b16 %v297
        %v455 = vunpack.c.l.b16 %v298
        %v456 = vunpack.c.l.b16 %v299
        %v457 = vunpack.c.l.b16 %v300
        %v458 = vunpack.c.l.b16 %v301
        %v459 = vunpack.c.l.b16 %v302
        %v460 = vunpack.c.l.b16 %v303
        %v461 = vpack.c.b16 %v398, %v397
        %v462 = vpack.c.b16 %v400, %v399
        %v463 = vpack.c.b16 %v402, %v401
        %v464 = vpack.c.b16 %v404, %v403
        %v465 = vpack.c.b16 %v406, %v405
        %v466 = vpack.c.b16 %v408, %v407
        %v467 = vpack.c.b16 %v410, %v409
        %v468 = vpack.c.b16 %v412, %v411
        %v469 = vpack.c.b16 %v414, %v413
        %v470 = vpack.c.b16 %v416, %v415
        %v471 = vpack.c.b16 %v418, %v417
        %v472 = vpack.c.b16 %v420, %v419
        %v473 = vpack.c.b16 %v422, %v421
        %v474 = vpack.c.b16 %v424, %v423
        %v475 = vpack.c.b16 %v426, %v425
        %v476 = vpack.c.b16 %v428, %v427
        %v477 = vpack.c.b16 %v430, %v429
        %v478 = vpack.c.b16 %v432, %v431
        %v479 = vpack.c.b16 %v434, %v433
        %v480 = vpack.c.b16 %v436, %v435
        %v481 = vpack.c.b16 %v438, %v437
        %v482 = vpack.c.b16 %v440, %v439
        %v483 = vpack.c.b16 %v442, %v441
        %v484 = vpack.c.b16 %v444, %v443
        %v485 = vpack.c.b16 %v446, %v445
        %v486 = vpack.c.b16 %v448, %v447
        %v487 = vpack.c.b16 %v450, %v449
        %v488 = vpack.c.b16 %v452, %v451
        %v489 = vpack.c.b16 %v454, %v453
        %v490 = vpack.c.b16 %v456, %v455
        %v491 = vpack.c.b16 %v458, %v457
        %v492 = vpack.c.b16 %v460, %v459
        %525 = vmatprep.subr.bf16.mxu0 0
        %526 = vmatpush1.bf16.msra.mxu0 %v468
        %527 = vmatprep.subr.bf16.mxu0 0
        %528 = vmatpush1.bf16.msra.mxu0 %v467
        %529 = vmatprep.subr.bf16.mxu0 0
        %530 = vmatpush1.bf16.msra.mxu0 %v466
        %531 = vmatprep.subr.bf16.mxu0 0
        %532 = vmatpush1.bf16.msra.mxu0 %v465
        %533 = vmatprep.subr.bf16.mxu0 0
        %534 = vmatpush1.bf16.msra.mxu0 %v464
        %535 = vmatprep.subr.bf16.mxu0 0
        %536 = vmatpush1.bf16.msra.mxu0 %v463
        %537 = vmatprep.subr.bf16.mxu0 0
        %538 = vmatpush1.bf16.msra.mxu0 %v462
        %539 = vmatprep.subr.bf16.mxu0 0
        %540 = vmatpush1.bf16.msra.mxu0 %v461
        %541 = vmatprep.subr.bf16.mxu0 0
        %542 = vmatpush2.bf16.msra.mxu0 %v476
        %543 = vmatprep.subr.bf16.mxu0 0
        %544 = vmatpush2.bf16.msra.mxu0 %v475
        %545 = vmatprep.subr.bf16.mxu0 0
        %546 = vmatpush2.bf16.msra.mxu0 %v474
        %547 = vmatprep.subr.bf16.mxu0 0
        %548 = vmatpush2.bf16.msra.mxu0 %v473
        %549 = vmatprep.subr.bf16.mxu0 0
        %550 = vmatpush2.bf16.msra.mxu0 %v472
        %551 = vmatprep.subr.bf16.mxu0 0
        %552 = vmatpush2.bf16.msra.mxu0 %v471
        %553 = vmatprep.subr.bf16.mxu0 0
        %554 = vmatpush2.bf16.msra.mxu0 %v470
        %555 = vmatprep.subr.bf16.mxu0 0
        %556 = vmatpush2.bf16.msra.mxu0 %v469
        %557 = vmatprep.mubr.bf16.mxu0 %v326
        %558 = vmatmul.mubr.bf16.gmra.mxu0 %v319
        %v559 = vpop.f32.mrf.mxu0
        %v560 = vadd.f32 0.0, %v559
        %v561 = vpop.f32.mrf.mxu0
        %v562 = vpop.f32.mrf.mxu0
        %v563 = vpop.f32.mrf.mxu0
        %564 = vdwg.mxu0
        %565 = vmatprep.subr.bf16.mxu0 0
        %566 = vmatpush1.bf16.msra.mxu0 %v484
        %567 = vmatprep.subr.bf16.mxu0 0
        %568 = vmatpush1.bf16.msra.mxu0 %v483
        %569 = vmatprep.subr.bf16.mxu0 0
        %570 = vmatpush1.bf16.msra.mxu0 %v482
        %571 = vmatprep.subr.bf16.mxu0 0
        %572 = vmatpush1.bf16.msra.mxu0 %v481
        %573 = vmatprep.subr.bf16.mxu0 0
        %574 = vmatpush1.bf16.msra.mxu0 %v480
        %575 = vmatprep.subr.bf16.mxu0 0
        %576 = vmatpush1.bf16.msra.mxu0 %v479
        %577 = vmatprep.subr.bf16.mxu0 0
        %578 = vmatpush1.bf16.msra.mxu0 %v478
        %579 = vmatprep.subr.bf16.mxu0 0
        %580 = vmatpush1.bf16.msra.mxu0 %v477
        %581 = vmatprep.subr.bf16.mxu0 0
        %582 = vmatpush2.bf16.msra.mxu0 %v492
        %583 = vmatprep.subr.bf16.mxu0 0
        %584 = vmatpush2.bf16.msra.mxu0 %v491
        %585 = vmatprep.subr.bf16.mxu0 0
        %586 = vmatpush2.bf16.msra.mxu0 %v490
        %587 = vmatprep.subr.bf16.mxu0 0
        %588 = vmatpush2.bf16.msra.mxu0 %v489
        %589 = vmatprep.subr.bf16.mxu0 0
        %590 = vmatpush2.bf16.msra.mxu0 %v488
        %591 = vmatprep.subr.bf16.mxu0 0
        %592 = vmatpush2.bf16.msra.mxu0 %v487
        %593 = vmatprep.subr.bf16.mxu0 0
        %594 = vmatpush2.bf16.msra.mxu0 %v486
        %595 = vmatprep.subr.bf16.mxu0 0
        %596 = vmatpush2.bf16.msra.mxu0 %v485
        %597 = vmatprep.mubr.bf16.mxu0 %v328
        %598 = vmatmul.mubr.bf16.gmra.mxu0 %v327
        %v599 = vpop.f32.mrf.mxu0
        %v600 = vadd.f32 %v560, %v599
        %v601 = vpop.f32.mrf.mxu0
        %v602 = vpop.f32.mrf.mxu0
        %v603 = vpop.f32.mrf.mxu0
        %604 = vdwg.mxu0
        %v605 = vadd.f32 %v238, %v600
        %606 = vst [vmem:[#allocation2] sm:$0x3] %v605
        %p607 = scmp.eq.s32.totalorder %s17, 3
        // Predicated region
        $region45: #{net_forward.3} parent=39 // pred_check
          %p608 = pneg %p607
        $region46: #{net_forward.3} parent=39 // pred_check_branch
          %610 = sbr.rel (%p608) target = $region48
        $region47: #{net_forward.3} parent=39 // pred_region
          %v611 = vld [vmem:[#allocation2] sm:$0x3]
          %v612 = vld [vmem:[%s2] sm:$0x1]
          %v614 = vlaneseq
          %v615 = vshrl.u32 %v614, 7
          %v616 = vsub.s32 0, %v615
          %v617 = vrot.slane %v612, %v616
          %v619 = vadd.f32 %v611, %v617
          %v620 = vmax.f32 %v619, 0.0
          %v621 = vld [vmem:[%s3] sm:$0xff]
          %v622 = vld [vmem:[%s3 + $0x8] sm:$0xff]
          %v623 = vld [vmem:[%s3 + $0x10] sm:$0xff]
          %v624 = vld [vmem:[%s3 + $0x18] sm:$0xff]
          %v625 = vld [vmem:[%s3 + $0x20] sm:$0xff]
          %v626 = vld [vmem:[%s3 + $0x28] sm:$0xff]
          %v627 = vld [vmem:[%s3 + $0x30] sm:$0xff]
          %v628 = vld [vmem:[%s3 + $0x38] sm:$0xff]
          %v629 = vld [vmem:[%s3 + $0x40] sm:$0xff]
          %v630 = vld [vmem:[%s3 + $0x48] sm:$0xff]
          %v631 = vld [vmem:[%s3 + $0x50] sm:$0xff]
          %v632 = vld [vmem:[%s3 + $0x58] sm:$0xff]
          %v633 = vld [vmem:[%s3 + $0x60] sm:$0xff]
          %v634 = vld [vmem:[%s3 + $0x68] sm:$0xff]
          %v635 = vld [vmem:[%s3 + $0x70] sm:$0xff]
          %v636 = vld [vmem:[%s3 + $0x78] sm:$0xff]
          %v637 = vld [vmem:[%s4] sm:$0x1]
          %v639 = vlaneseq
          %v640 = vshrl.u32 %v639, 7
          %v641 = vsub.s32 0, %v640
          %v642 = vrot.slane %v637, %v641
          %644 = vmatprep.subr.mxu0 0.0
          %645 = vmatpush1.msra.mxu0 %v636
          %646 = vmatprep.subr.mxu0 0.0
          %647 = vmatpush1.msra.mxu0 %v635
          %648 = vmatprep.subr.mxu0 0.0
          %649 = vmatpush1.msra.mxu0 %v634
          %650 = vmatprep.subr.mxu0 0.0
          %651 = vmatpush1.msra.mxu0 %v633
          %652 = vmatprep.subr.mxu0 0.0
          %653 = vmatpush1.msra.mxu0 %v632
          %654 = vmatprep.subr.mxu0 0.0
          %655 = vmatpush1.msra.mxu0 %v631
          %656 = vmatprep.subr.mxu0 0.0
          %657 = vmatpush1.msra.mxu0 %v630
          %658 = vmatprep.subr.mxu0 0.0
          %659 = vmatpush1.msra.mxu0 %v629
          %660 = vmatprep.subr.mxu0 0.0
          %661 = vmatpush1.msra.mxu0 %v628
          %662 = vmatprep.subr.mxu0 0.0
          %663 = vmatpush1.msra.mxu0 %v627
          %664 = vmatprep.subr.mxu0 0.0
          %665 = vmatpush1.msra.mxu0 %v626
          %666 = vmatprep.subr.mxu0 0.0
          %667 = vmatpush1.msra.mxu0 %v625
          %668 = vmatprep.subr.mxu0 0.0
          %669 = vmatpush1.msra.mxu0 %v624
          %670 = vmatprep.subr.mxu0 0.0
          %671 = vmatpush1.msra.mxu0 %v623
          %672 = vmatprep.subr.mxu0 0.0
          %673 = vmatpush1.msra.mxu0 %v622
          %674 = vmatprep.subr.mxu0 0.0
          %675 = vmatpush1.msra.mxu0 %v621
          %676 = vmatprep.subr.mxu0 0.0
          %677 = vmatpush2.msra.mxu0 0.0
          %678 = vmatprep.subr.mxu0 0.0
          %679 = vmatpush2.msra.mxu0 0.0
          %680 = vmatprep.subr.mxu0 0.0
          %681 = vmatpush2.msra.mxu0 0.0
          %682 = vmatprep.subr.mxu0 0.0
          %683 = vmatpush2.msra.mxu0 0.0
          %684 = vmatprep.subr.mxu0 0.0
          %685 = vmatpush2.msra.mxu0 0.0
          %686 = vmatprep.subr.mxu0 0.0
          %687 = vmatpush2.msra.mxu0 0.0
          %688 = vmatprep.subr.mxu0 0.0
          %689 = vmatpush2.msra.mxu0 0.0
          %690 = vmatprep.subr.mxu0 0.0
          %691 = vmatpush2.msra.mxu0 0.0
          %692 = vmatprep.subr.mxu0 0.0
          %693 = vmatpush2.msra.mxu0 0.0
          %694 = vmatprep.subr.mxu0 0.0
          %695 = vmatpush2.msra.mxu0 0.0
          %696 = vmatprep.subr.mxu0 0.0
          %697 = vmatpush2.msra.mxu0 0.0
          %698 = vmatprep.subr.mxu0 0.0
          %699 = vmatpush2.msra.mxu0 0.0
          %700 = vmatprep.subr.mxu0 0.0
          %701 = vmatpush2.msra.mxu0 0.0
          %702 = vmatprep.subr.mxu0 0.0
          %703 = vmatpush2.msra.mxu0 0.0
          %704 = vmatprep.subr.mxu0 0.0
          %705 = vmatpush2.msra.mxu0 0.0
          %706 = vmatprep.subr.mxu0 0.0
          %707 = vmatpush2.msra.mxu0 0.0
          %708 = vmatprep.mubr.f32.mxu0 0.0
          %709 = vmatmul.mubr.f32.gmra.mxu0 %v620
          %v710 = vpop.f32.mrf.mxu0
          %v711 = vadd.f32 %v642, %v710
          %v712 = vpop.f32.mrf.mxu0
          %713 = vdwg.mxu0
          %vm714 = vcmask 33792
          %v715 = vsel %vm714, %v711, -inf
          %716 = vmax.xlane.f32.xlu0 %v715
          %v717 = vpop.xlane.xlu0 %716
          %v718 = vsub.f32 %v711, %v717
          %v719 = vmul.f32 %v718, 1.442695
          %v720 = vpow.pop %v719
          %v721 = vsel %vm714, %v720, 0.0
          %722 = vadd.xlane.f32.xlu0 %v721
          %v723 = vpop.xlane.xlu0 %722
          %v724 = vrcp.pop %v723
          %v725 = vmul.f32 %v720, %v724
          %726 = vst.msk [vmem:[#allocation3] sm:$0x3] %vm714, %v725
        $region48: #{net_forward.3} parent=39 // pred_fallthru
          _
        // Predicated region
        $region49: #{net_forward.3} parent=39 // pred_check
          %p727 = pneg %p145
        $region50: #{net_forward.3} parent=39 // pred_check_branch
          %729 = sbr.rel (%p727) target = $region52
        $region51: #{net_forward.3} parent=39 // pred_region
          %s731 = ssub.s32 32, 32
          %732 = vsyncadd [#allocation4], %s731
          %s734 = sshll.u32 [#allocation3], 4
          %s735 = int_to_ptr.vmem [resolvable:$true] %s734
          %737 = dma.vmem_to_hbm [thread:$0]  %s735, 32, %s5, [#allocation4]
        $region52: #{net_forward.3} parent=39 // pred_fallthru
          _
        // Predicated region
        $region53: #{net_forward.3} parent=39 // pred_check
          %p738 = pneg %p145
        $region54: #{net_forward.3} parent=39 // pred_check_branch
          %740 = sbr.rel (%p738) target = $region56
        $region55: #{net_forward.3} parent=39 // pred_region
          %741 = dma.done [#allocation4], 32
        $region56: #{net_forward.3} parent=39 // pred_fallthru
          _
      $region40: #{net_forward.3} parent=5 // pred_fallthru
        _
      %p742 = scmp.le.s32.totalorder 2, %s12
      // Predicated region
      $region57: #{net_forward.3} parent=5 // pred_check
        %p743 = pneg %p742
      $region58: #{net_forward.3} parent=5 // pred_check_branch
        %745 = sbr.rel (%p743) target = $region60
      $region59: #{net_forward.3} parent=5 // pred_region
        %s746 = ssub.s32 %s12, 2
      $region60: #{net_forward.3} parent=5 // pred_fallthru
        _
    $region6: #{net_forward.3} parent=1 // loop_footer
      %s16 = sadd.s32 1, %s12
    $region7: #{net_forward.3} parent=1 // loop_footer_branch
      %11 = sbr.rel target = $region3
    $region8: #{net_forward.3} parent=1 // loop_exit
      _
    %747 = vsyncpa [#allocation4], 1
    %s748 = scalar_lea.sflag [#allocation4], 1
    %749 = vsyncpa %s748, 1

// kernel: net_forward.2
$region0: #{net_forward.2}
  #allocation0 [shape = 'u32[]', space=smem, size = 0x4, offset = 0x4, fixed_abs, tag = 'smem constant byte address 0x4 - core index']
  #allocation1 [shape = 'u32[144,128]{1,0:T(1,128)}', space=vmem, size = 0x12000, scoped, tag = 'internal scratch']
  #allocation2 [shape = 'f32[128,64]{1,0:T(8,128)}', space=vmem, size = 0x10000, scoped, tag = 'scratch operand']
  #allocation3 [shape = 'f32[32,128]{1,0:T(8,128)}', space=vmem, size = 0x4000, scoped, tag = 'scratch operand']
  %s0 = inlined_call_operand.vmem [shape: f32[2,16,16,3], index: 0, kind: input, shape index: {}]
  %s1 = inlined_call_operand.vmem [shape: bf16[27,64], index: 1, kind: input, shape index: {}]
  %s2 = inlined_call_operand.vmem [shape: f32[1,64], index: 2, kind: input, shape index: {}]
  %s3 = inlined_call_operand.vmem [shape: bf16[576,64], index: 3, kind: input, shape index: {}]
  %s4 = inlined_call_operand.vmem [shape: f32[1,64], index: 4, kind: input, shape index: {}]
  %s5 = inlined_call_operand.vmem [shape: bf16[576,128], index: 5, kind: input, shape index: {}]
  %s6 = inlined_call_operand.vmem [shape: f32[1,128], index: 6, kind: input, shape index: {}]
  %s7 = inlined_call_operand.vmem [shape: bf16[1152,128], index: 7, kind: input, shape index: {}]
  %s8 = inlined_call_operand.vmem [shape: f32[1,128], index: 8, kind: input, shape index: {}]
  %s9 = inlined_call_operand.vmem [shape: f32[2,16,128], index: 9, kind: output, shape index: {}]
  %s10 = sld [smem:[#allocation0]]
  $region69: #{net_forward.2} parent=0
    _
  %s12 = ssub.s32 1, %s10
  %s13 = scalar_select 0, %s12, %s10
  loop: start=0, step=1, limit=4
  $region2: #{net_forward.2} parent=0 // loop_pre_header
    _
  $region3: #{net_forward.2} parent=0 // loop_header
    %s15 = sphi 0, %s19
    %p16 = scmp.ge.s32.totalorder %s15, 4
    %s25 = sphi 0, %s27
    %s28 = sphi 0, %s25
    %s29 = sphi 0, %s28
    %s45 = sphi 0, %s29
    %s49 = sphi 0, %s49
    %s51 = sphi 0, %s49
    %s52 = sphi 0, %s51
    %s66 = sphi 0, %s52
    %s70 = sphi 0, %s70
    %s72 = sphi 0, %s70
    %s73 = sphi 0, %s72
    %s87 = sphi 0, %s73
    %s91 = sphi 0, %s91
    %s93 = sphi 0, %s91
    %s94 = sphi 0, %s93
    %s108 = sphi 0, %s94
    %s112 = sphi 0, %s112
    %s114 = sphi 0, %s112
    %s115 = sphi 0, %s114
    %s129 = sphi 0, %s115
    %s133 = sphi 0, %s133
    %s135 = sphi 0, %s133
    %s136 = sphi 0, %s135
    %s150 = sphi 0, %s136
    %s154 = sphi 0, %s154
    %s156 = sphi 0, %s154
    %s157 = sphi 0, %s156
    %s171 = sphi 0, %s157
    %s175 = sphi 0, %s175
    %s177 = sphi 0, %s175
    %s178 = sphi 0, %s177
    %s192 = sphi 0, %s178
    %s196 = sphi 0, %s196
    %s198 = sphi 0, %s196
    %s199 = sphi 0, %s198
    %s213 = sphi 0, %s199
    %s219 = sphi 0, %s221
    %s222 = sphi 0, %s219
    %s223 = sphi 0, %s222
    %s239 = sphi 0, %s223
  $region4: #{net_forward.2} parent=0 // loop_header_branch
    %18 = sbr.rel (%p16) target = $region8
  $region5: #{net_forward.2} parent=0 // loop_body
    %s20 = ssub.s32 %s15, 1
    %s21 = ssub.s32 %s15, 2
    %s22 = sadd.s32 %s15, 1
    %s23 = ssub.s32 %s15, %s22
    %p24 = scmp.eq.s32.totalorder %s23, 0
    %s26 = sadd.s32 %s25, 1
    %s27 = scalar_select %p24, %s25, %s26
    %p30 = pneg %p24
    %p31 = scmp.eq.s32.totalorder %s15, 1
    %p32 = por %p30, %p31
    %p33 = scmp.ne.s32.totalorder %s25, %s28
    %p34 = scmp.eq.s32.totalorder %s15, 0
    %p35 = por %p33, %p34
    %p36 = scmp.ne.s32.totalorder %s25, %s28
    %p37 = scmp.eq.s32.totalorder %s20, 1
    %p38 = por %p36, %p37
    %p39 = scmp.ne.s32.totalorder %s28, %s29
    %p40 = scmp.eq.s32.totalorder %s20, 0
    %p41 = por %p39, %p40
    %p42 = scmp.ne.s32.totalorder %s28, %s29
    %p43 = scmp.eq.s32.totalorder %s21, 1
    %p44 = por %p42, %p43
    %p46 = scmp.ne.s32.totalorder %s29, %s45
    %p47 = scmp.eq.s32.totalorder %s21, 0
    %p48 = por %p46, %p47
    %s50 = sadd.s32 %s49, 1
    %p53 = scmp.eq.s32.totalorder %s15, 1
    %p54 = scmp.ne.s32.totalorder %s49, %s51
    %p55 = scmp.eq.s32.totalorder %s15, 0
    %p56 = por %p54, %p55
    %p57 = scmp.ne.s32.totalorder %s49, %s51
    %p58 = scmp.eq.s32.totalorder %s20, 1
    %p59 = por %p57, %p58
    %p60 = scmp.ne.s32.totalorder %s51, %s52
    %p61 = scmp.eq.s32.totalorder %s20, 0
    %p62 = por %p60, %p61
    %p63 = scmp.ne.s32.totalorder %s51, %s52
    %p64 = scmp.eq.s32.totalorder %s21, 1
    %p65 = por %p63, %p64
    %p67 = scmp.ne.s32.totalorder %s52, %s66
    %p68 = scmp.eq.s32.totalorder %s21, 0
    %p69 = por %p67, %p68
    %s71 = sadd.s32 %s70, 1
    %p74 = scmp.eq.s32.totalorder %s15, 1
    %p75 = scmp.ne.s32.totalorder %s70, %s72
    %p76 = scmp.eq.s32.totalorder %s15, 0
    %p77 = por %p75, %p76
    %p78 = scmp.ne.s32.totalorder %s70, %s72
    %p79 = scmp.eq.s32.totalorder %s20, 1
    %p80 = por %p78, %p79
    %p81 = scmp.ne.s32.totalorder %s72, %s73
    %p82 = scmp.eq.s32.totalorder %s20, 0
    %p83 = por %p81, %p82
    %p84 = scmp.ne.s32.totalorder %s72, %s73
    %p85 = scmp.eq.s32.totalorder %s21, 1
    %p86 = por %p84, %p85
    %p88 = scmp.ne.s32.totalorder %s73, %s87
    %p89 = scmp.eq.s32.totalorder %s21, 0
    %p90 = por %p88, %p89
    %s92 = sadd.s32 %s91, 1
    %p95 = scmp.eq.s32.totalorder %s15, 1
    %p96 = scmp.ne.s32.totalorder %s91, %s93
    %p97 = scmp.eq.s32.totalorder %s15, 0
    %p98 = por %p96, %p97
    %p99 = scmp.ne.s32.totalorder %s91, %s93
    %p100 = scmp.eq.s32.totalorder %s20, 1
    %p101 = por %p99, %p100
    %p102 = scmp.ne.s32.totalorder %s93, %s94
    %p103 = scmp.eq.s32.totalorder %s20, 0
    %p104 = por %p102, %p103
    %p105 = scmp.ne.s32.totalorder %s93, %s94
    %p106 = scmp.eq.s32.totalorder %s21, 1
    %p107 = por %p105, %p106
    %p109 = scmp.ne.s32.totalorder %s94, %s108
    %p110 = scmp.eq.s32.totalorder %s21, 0
    %p111 = por %p109, %p110
    %s113 = sadd.s32 %s112, 1
    %p116 = scmp.eq.s32.totalorder %s15, 1
    %p117 = scmp.ne.s32.totalorder %s112, %s114
    %p118 = scmp.eq.s32.totalorder %s15, 0
    %p119 = por %p117, %p118
    %p120 = scmp.ne.s32.totalorder %s112, %s114
    %p121 = scmp.eq.s32.totalorder %s20, 1
    %p122 = por %p120, %p121
    %p123 = scmp.ne.s32.totalorder %s114, %s115
    %p124 = scmp.eq.s32.totalorder %s20, 0
    %p125 = por %p123, %p124
    %p126 = scmp.ne.s32.totalorder %s114, %s115
    %p127 = scmp.eq.s32.totalorder %s21, 1
    %p128 = por %p126, %p127
    %p130 = scmp.ne.s32.totalorder %s115, %s129
    %p131 = scmp.eq.s32.totalorder %s21, 0
    %p132 = por %p130, %p131
    %s134 = sadd.s32 %s133, 1
    %p137 = scmp.eq.s32.totalorder %s15, 1
    %p138 = scmp.ne.s32.totalorder %s133, %s135
    %p139 = scmp.eq.s32.totalorder %s15, 0
    %p140 = por %p138, %p139
    %p141 = scmp.ne.s32.totalorder %s133, %s135
    %p142 = scmp.eq.s32.totalorder %s20, 1
    %p143 = por %p141, %p142
    %p144 = scmp.ne.s32.totalorder %s135, %s136
    %p145 = scmp.eq.s32.totalorder %s20, 0
    %p146 = por %p144, %p145
    %p147 = scmp.ne.s32.totalorder %s135, %s136
    %p148 = scmp.eq.s32.totalorder %s21, 1
    %p149 = por %p147, %p148
    %p151 = scmp.ne.s32.totalorder %s136, %s150
    %p152 = scmp.eq.s32.totalorder %s21, 0
    %p153 = por %p151, %p152
    %s155 = sadd.s32 %s154, 1
    %p158 = scmp.eq.s32.totalorder %s15, 1
    %p159 = scmp.ne.s32.totalorder %s154, %s156
    %p160 = scmp.eq.s32.totalorder %s15, 0
    %p161 = por %p159, %p160
    %p162 = scmp.ne.s32.totalorder %s154, %s156
    %p163 = scmp.eq.s32.totalorder %s20, 1
    %p164 = por %p162, %p163
    %p165 = scmp.ne.s32.totalorder %s156, %s157
    %p166 = scmp.eq.s32.totalorder %s20, 0
    %p167 = por %p165, %p166
    %p168 = scmp.ne.s32.totalorder %s156, %s157
    %p169 = scmp.eq.s32.totalorder %s21, 1
    %p170 = por %p168, %p169
    %p172 = scmp.ne.s32.totalorder %s157, %s171
    %p173 = scmp.eq.s32.totalorder %s21, 0
    %p174 = por %p172, %p173
    %s176 = sadd.s32 %s175, 1
    %p179 = scmp.eq.s32.totalorder %s15, 1
    %p180 = scmp.ne.s32.totalorder %s175, %s177
    %p181 = scmp.eq.s32.totalorder %s15, 0
    %p182 = por %p180, %p181
    %p183 = scmp.ne.s32.totalorder %s175, %s177
    %p184 = scmp.eq.s32.totalorder %s20, 1
    %p185 = por %p183, %p184
    %p186 = scmp.ne.s32.totalorder %s177, %s178
    %p187 = scmp.eq.s32.totalorder %s20, 0
    %p188 = por %p186, %p187
    %p189 = scmp.ne.s32.totalorder %s177, %s178
    %p190 = scmp.eq.s32.totalorder %s21, 1
    %p191 = por %p189, %p190
    %p193 = scmp.ne.s32.totalorder %s178, %s192
    %p194 = scmp.eq.s32.totalorder %s21, 0
    %p195 = por %p193, %p194
    %s197 = sadd.s32 %s196, 1
    %p200 = scmp.eq.s32.totalorder %s15, 1
    %p201 = scmp.ne.s32.totalorder %s196, %s198
    %p202 = scmp.eq.s32.totalorder %s15, 0
    %p203 = por %p201, %p202
    %p204 = scmp.ne.s32.totalorder %s196, %s198
    %p205 = scmp.eq.s32.totalorder %s20, 1
    %p206 = por %p204, %p205
    %p207 = scmp.ne.s32.totalorder %s198, %s199
    %p208 = scmp.eq.s32.totalorder %s20, 0
    %p209 = por %p207, %p208
    %p210 = scmp.ne.s32.totalorder %s198, %s199
    %p211 = scmp.eq.s32.totalorder %s21, 1
    %p212 = por %p210, %p211
    %p214 = scmp.ne.s32.totalorder %s199, %s213
    %p215 = scmp.eq.s32.totalorder %s21, 0
    %p216 = por %p214, %p215
    %s217 = ssub.s32 %s15, %s22
    %p218 = scmp.eq.s32.totalorder %s217, 0
    %s220 = sadd.s32 %s219, 1
    %s221 = scalar_select %p218, %s219, %s220
    %p224 = pneg %p218
    %p225 = scmp.eq.s32.totalorder %s15, 1
    %p226 = por %p224, %p225
    %p227 = scmp.ne.s32.totalorder %s219, %s222
    %p228 = scmp.eq.s32.totalorder %s15, 0
    %p229 = por %p227, %p228
    %p230 = scmp.ne.s32.totalorder %s219, %s222
    %p231 = scmp.eq.s32.totalorder %s20, 1
    %p232 = por %p230, %p231
    %p233 = scmp.ne.s32.totalorder %s222, %s223
    %p234 = scmp.eq.s32.totalorder %s20, 0
    %p235 = por %p233, %p234
    %p236 = scmp.ne.s32.totalorder %s222, %s223
    %p237 = scmp.eq.s32.totalorder %s21, 1
    %p238 = por %p236, %p237
    %p240 = scmp.ne.s32.totalorder %s223, %s239
    %p241 = scmp.eq.s32.totalorder %s21, 0
    %p242 = por %p240, %p241
    %p243 = scmp.le.s32.totalorder 1, %s15
    %p244 = scmp.lt.s32.totalorder %s15, 3
    %p245 = pnand %p243, %p244
    %p246 = pneg %p245
    // Predicated region
    $region9: #{net_forward.2} parent=5 // pred_check
      _
    $region10: #{net_forward.2} parent=5 // pred_check_branch
      %248 = sbr.rel (%p245) target = $region12
    $region11: #{net_forward.2} parent=5 // pred_region
      %s249 = ssub.s32 %s15, 1
      // Predicated region
      $region13: #{net_forward.2} parent=11 // pred_check
        %p250 = pneg %p62
      $region14: #{net_forward.2} parent=11 // pred_check_branch
        %252 = sbr.rel (%p250) target = $region16
      $region15: #{net_forward.2} parent=11 // pred_region
        _
      $region16: #{net_forward.2} parent=11 // pred_fallthru
        _
      // Predicated region
      $region17: #{net_forward.2} parent=11 // pred_check
        %p253 = pneg %p83
      $region18: #{net_forward.2} parent=11 // pred_check_branch
        %255 = sbr.rel (%p253) target = $region20
      $region19: #{net_forward.2} parent=11 // pred_region
        _
      $region20: #{net_forward.2} parent=11 // pred_fallthru
        _
      // Predicated region
      $region21: #{net_forward.2} parent=11 // pred_check
        %p256 = pneg %p104
      $region22: #{net_forward.2} parent=11 // pred_check_branch
        %258 = sbr.rel (%p256) target = $region24
      $region23: #{net_forward.2} parent=11 // pred_region
        _
      $region24: #{net_forward.2} parent=11 // pred_fallthru
        _
      // Predicated region
      $region25: #{net_forward.2} parent=11 // pred_check
        %p259 = pneg %p125
      $region26: #{net_forward.2} parent=11 // pred_check_branch
        %261 = sbr.rel (%p259) target = $region28
      $region27: #{net_forward.2} parent=11 // pred_region
        _
      $region28: #{net_forward.2} parent=11 // pred_fallthru
        _
      // Predicated region
      $region29: #{net_forward.2} parent=11 // pred_check
        %p262 = pneg %p146
      $region30: #{net_forward.2} parent=11 // pred_check_branch
        %264 = sbr.rel (%p262) target = $region32
      $region31: #{net_forward.2} parent=11 // pred_region
        _
      $region32: #{net_forward.2} parent=11 // pred_fallthru
        _
      // Predicated region
      $region33: #{net_forward.2} parent=11 // pred_check
        %p265 = pneg %p167
      $region34: #{net_forward.2} parent=11 // pred_check_branch
        %267 = sbr.rel (%p265) target = $region36
      $region35: #{net_forward.2} parent=11 // pred_region
        _
      $region36: #{net_forward.2} parent=11 // pred_fallthru
        _
      // Predicated region
      $region37: #{net_forward.2} parent=11 // pred_check
        %p268 = pneg %p188
      $region38: #{net_forward.2} parent=11 // pred_check_branch
        %270 = sbr.rel (%p268) target = $region40
      $region39: #{net_forward.2} parent=11 // pred_region
        _
      $region40: #{net_forward.2} parent=11 // pred_fallthru
        _
      // Predicated region
      $region41: #{net_forward.2} parent=11 // pred_check
        %p271 = pneg %p209
      $region42: #{net_forward.2} parent=11 // pred_check_branch
        %273 = sbr.rel (%p271) target = $region44
      $region43: #{net_forward.2} parent=11 // pred_region
        _
      $region44: #{net_forward.2} parent=11 // pred_fallthru
        _
    $region12: #{net_forward.2} parent=5 // pred_fallthru
      _
    %p274 = scmp.lt.s32.totalorder %s15, 2
    // Predicated region
    $region45: #{net_forward.2} parent=5 // pred_check
      %p275 = pneg %p274
    $region46: #{net_forward.2} parent=5 // pred_check_branch
      %277 = sbr.rel (%p275) target = $region48
    $region47: #{net_forward.2} parent=5 // pred_region
      // Predicated region
      $region49: #{net_forward.2} parent=47 // pred_check
        %p278 = pneg %p35
      $region50: #{net_forward.2} parent=47 // pred_check_branch
        %280 = sbr.rel (%p278) target = $region52
      $region51: #{net_forward.2} parent=47 // pred_region
        %p281 = scmp.lt.s32.totalorder %s15, 1
        %s282 = scalar_select %p281, %s15, 1
        %s283 = smul.addr %s282, 32
        %s284 = smul.addr %s283, 8
        %s285 = scalar_lea.vmem %s0, %s284
      $region52: #{net_forward.2} parent=47 // pred_fallthru
        _
    $region48: #{net_forward.2} parent=5 // pred_fallthru
      _
    %p286 = scmp.le.s32.totalorder 1, %s15
    %p287 = scmp.lt.s32.totalorder %s15, 3
    %p288 = pnand %p286, %p287
    %p289 = pneg %p288
    // Predicated region
    $region53: #{net_forward.2} parent=5 // pred_check
      _
    $region54: #{net_forward.2} parent=5 // pred_check_branch
      %291 = sbr.rel (%p288) target = $region56
    $region55: #{net_forward.2} parent=5 // pred_region
      %s292 = ssub.s32 %s15, 1
      %p293 = scmp.lt.s32.totalorder %s20, 1
      %s294 = scalar_select %p293, %s20, 1
      %s295 = smul.addr %s294, 32
      %s296 = smul.addr %s295, 8
      %s297 = scalar_lea.vmem %s0, %s296
      %p298 = pneg %p41
      %p299 = pneg %p38
      %p300 = pneg %p62
      %p301 = pneg %p59
      %p302 = pneg %p83
      %p303 = pneg %p80
      %p304 = pneg %p104
      %p305 = pneg %p101
      %p306 = pneg %p125
      %p307 = pneg %p122
      %p308 = pneg %p146
      %p309 = pneg %p143
      %p310 = pneg %p167
      %p311 = pneg %p164
      %p312 = pneg %p188
      %p313 = pneg %p185
      %p314 = pneg %p209
      %p315 = pneg %p206
      %p316 = pneg %p235
      %p317 = pneg %p232
      %p318 = scmp.lt.s32.totalorder %s20, 1
      %s319 = scalar_select %p318, %s20, 1
      %s320 = smul.addr %s319, 2
      %s321 = smul.addr %s320, 8
      %s322 = scalar_lea.vmem %s9, %s321
      %p323 = scmp.lt.s32.totalorder %s20, 1
      %s324 = scalar_select %p323, %s20, 1
      %s325 = smul.addr %s324, 32
      %s326 = smul.addr %s325, 8
      %s327 = scalar_lea.vmem %s0, %s326
      %p328 = scmp.lt.s32.totalorder %s20, 1
      %s329 = scalar_select %p328, %s20, 1
      %s330 = smul.addr %s329, 2
      %s331 = smul.addr %s330, 8
      %s332 = scalar_lea.vmem %s9, %s331
      %v334 = vld [vmem:[%s327] sm:$0xff]
      %v335 = vld [vmem:[%s327 + $0x8] sm:$0xff]
      %v336 = vld [vmem:[%s327 + $0x10] sm:$0xff]
      %v337 = vld [vmem:[%s327 + $0x18] sm:$0xff]
      %v338 = vld [vmem:[%s327 + $0x20] sm:$0xff]
      %v339 = vld [vmem:[%s327 + $0x28] sm:$0xff]
      %v340 = vld [vmem:[%s327 + $0x30] sm:$0xff]
      %v341 = vld [vmem:[%s327 + $0x38] sm:$0xff]
      %v342 = vld [vmem:[%s327 + $0x40] sm:$0xff]
      %v343 = vld [vmem:[%s327 + $0x48] sm:$0xff]
      %v344 = vld [vmem:[%s327 + $0x50] sm:$0xff]
      %v345 = vld [vmem:[%s327 + $0x58] sm:$0xff]
      %v346 = vld [vmem:[%s327 + $0x60] sm:$0xff]
      %v347 = vld [vmem:[%s327 + $0x68] sm:$0xff]
      %v348 = vld [vmem:[%s327 + $0x70] sm:$0xff]
      %v349 = vld [vmem:[%s327 + $0x78] sm:$0xff]
      %v350 = vld [vmem:[%s327 + $0x80] sm:$0xff]
      %v351 = vld [vmem:[%s327 + $0x88] sm:$0xff]
      %v352 = vld [vmem:[%s327 + $0x90] sm:$0xff]
      %v353 = vld [vmem:[%s327 + $0x98] sm:$0xff]
      %v354 = vld [vmem:[%s327 + $0xa0] sm:$0xff]
      %v355 = vld [vmem:[%s327 + $0xa8] sm:$0xff]
      %v356 = vld [vmem:[%s327 + $0xb0] sm:$0xff]
      %v357 = vld [vmem:[%s327 + $0xb8] sm:$0xff]
      %v358 = vld [vmem:[%s327 + $0xc0] sm:$0xff]
      %v359 = vld [vmem:[%s327 + $0xc8] sm:$0xff]
      %v360 = vld [vmem:[%s327 + $0xd0] sm:$0xff]
      %v361 = vld [vmem:[%s327 + $0xd8] sm:$0xff]
      %v362 = vld [vmem:[%s327 + $0xe0] sm:$0xff]
      %v363 = vld [vmem:[%s327 + $0xe8] sm:$0xff]
      %v364 = vld [vmem:[%s327 + $0xf0] sm:$0xff]
      %v365 = vld [vmem:[%s327 + $0xf8] sm:$0xff]
      %v366 = vlaneseq
      %v367 = vshrl.u32 %v366, 7
      %v368 = vadd.s32 %v367, 8
      %vm369 = vcmp.eq.s32.totalorder %v367, 0
      %vm370 = vcmp.eq.s32.totalorder %v368, 0
      %v371 = vrot.slane %v334, 7
      %v372 = vrot.slane %v336, 7
      %v373 = vrot.slane %v338, 7
      %v374 = vrot.slane %v340, 7
      %v375 = vrot.slane %v342, 7
      %v376 = vrot.slane %v344, 7
      %v377 = vrot.slane %v346, 7
      %v378 = vrot.slane %v348, 7
      %v379 = vrot.slane %v350, 7
      %v380 = vrot.slane %v352, 7
      %v381 = vrot.slane %v354, 7
      %v382 = vrot.slane %v356, 7
      %v383 = vrot.slane %v358, 7
      %v384 = vrot.slane %v360, 7
      %v385 = vrot.slane %v362, 7
      %v386 = vrot.slane %v364, 7
      %v387 = vrot.slane %v335, 7
      %v388 = vrot.slane %v337, 7
      %v389 = vrot.slane %v339, 7
      %v390 = vrot.slane %v341, 7
      %v391 = vrot.slane %v343, 7
      %v392 = vrot.slane %v345, 7
      %v393 = vrot.slane %v347, 7
      %v394 = vrot.slane %v349, 7
      %v395 = vrot.slane %v351, 7
      %v396 = vrot.slane %v353, 7
      %v397 = vrot.slane %v355, 7
      %v398 = vrot.slane %v357, 7
      %v399 = vrot.slane %v359, 7
      %v400 = vrot.slane %v361, 7
      %v401 = vrot.slane %v363, 7
      %v402 = vrot.slane %v365, 7
      %vm403 = vcmp.lt.s32.totalorder %v367, 1
      %v404 = vsel %vm403, %v371, %v387
      %v405 = vsel %vm403, %v372, %v388
      %v406 = vsel %vm403, %v373, %v389
      %v407 = vsel %vm403, %v374, %v390
      %v408 = vsel %vm403, %v375, %v391
      %v409 = vsel %vm403, %v376, %v392
      %v410 = vsel %vm403, %v377, %v393
      %v411 = vsel %vm403, %v378, %v394
      %v412 = vsel %vm403, %v379, %v395
      %v413 = vsel %vm403, %v380, %v396
      %v414 = vsel %vm403, %v381, %v397
      %v415 = vsel %vm403, %v382, %v398
      %v416 = vsel %vm403, %v383, %v399
      %v417 = vsel %vm403, %v384, %v400
      %v418 = vsel %vm403, %v385, %v401
      %v419 = vsel %vm403, %v386, %v402
      %v420 = vsel %vm403, %v387, %v371
      %v421 = vsel %vm403, %v388, %v372
      %v422 = vsel %vm403, %v389, %v373
      %v423 = vsel %vm403, %v390, %v374
      %v424 = vsel %vm403, %v391, %v375
      %v425 = vsel %vm403, %v392, %v376
      %v426 = vsel %vm403, %v393, %v377
      %v427 = vsel %vm403, %v394, %v378
      %v428 = vsel %vm403, %v395, %v379
      %v429 = vsel %vm403, %v396, %v380
      %v430 = vsel %vm403, %v397, %v381
      %v431 = vsel %vm403, %v398, %v382
      %v432 = vsel %vm403, %v399, %v383
      %v433 = vsel %vm403, %v400, %v384
      %v434 = vsel %vm403, %v401, %v385
      %v435 = vsel %vm403, %v402, %v386
      %v436 = vsel %vm369, 0.0, 0.0
      %v437 = vsel %vm370, 0.0, 0.0
      %v438 = vsel %vm369, 0.0, %v420
      %v439 = vsel %vm370, 0.0, %v404
      %v440 = vsel %vm369, 0.0, %v421
      %v441 = vsel %vm370, 0.0, %v405
      %v442 = vsel %vm369, 0.0, %v422
      %v443 = vsel %vm370, 0.0, %v406
      %v444 = vsel %vm369, 0.0, %v423
      %v445 = vsel %vm370, 0.0, %v407
      %v446 = vsel %vm369, 0.0, %v424
      %v447 = vsel %vm370, 0.0, %v408
      %v448 = vsel %vm369, 0.0, %v425
      %v449 = vsel %vm370, 0.0, %v409
      %v450 = vsel %vm369, 0.0, %v426
      %v451 = vsel %vm370, 0.0, %v410
      %v452 = vsel %vm369, 0.0, %v427
      %v453 = vsel %vm370, 0.0, %v411
      %v454 = vsel %vm369, 0.0, %v428
      %v455 = vsel %vm370, 0.0, %v412
      %v456 = vsel %vm369, 0.0, %v429
      %v457 = vsel %vm370, 0.0, %v413
      %v458 = vsel %vm369, 0.0, %v430
      %v459 = vsel %vm370, 0.0, %v414
      %v460 = vsel %vm369, 0.0, %v431
      %v461 = vsel %vm370, 0.0, %v415
      %v462 = vsel %vm369, 0.0, %v432
      %v463 = vsel %vm370, 0.0, %v416
      %v464 = vsel %vm369, 0.0, %v433
      %v465 = vsel %vm370, 0.0, %v417
      %v466 = vsel %vm369, 0.0, %v434
      %v467 = vsel %vm370, 0.0, %v418
      %v468 = vsel %vm369, 0.0, %v435
      %v469 = vsel %vm370, 0.0, %v419
      %vm470 = vcmp.eq.s32.totalorder %v367, 15
      %vm471 = vcmp.eq.s32.totalorder %v368, 15
      %v472 = vrot.slane %v334, 1
      %v473 = vrot.slane %v336, 1
      %v474 = vrot.slane %v338, 1
      %v475 = vrot.slane %v340, 1
      %v476 = vrot.slane %v342, 1
      %v477 = vrot.slane %v344, 1
      %v478 = vrot.slane %v346, 1
      %v479 = vrot.slane %v348, 1
      %v480 = vrot.slane %v350, 1
      %v481 = vrot.slane %v352, 1
      %v482 = vrot.slane %v354, 1
      %v483 = vrot.slane %v356, 1
      %v484 = vrot.slane %v358, 1
      %v485 = vrot.slane %v360, 1
      %v486 = vrot.slane %v362, 1
      %v487 = vrot.slane %v364, 1
      %v488 = vrot.slane %v335, 1
      %v489 = vrot.slane %v337, 1
      %v490 = vrot.slane %v339, 1
      %v491 = vrot.slane %v341, 1
      %v492 = vrot.slane %v343, 1
      %v493 = vrot.slane %v345, 1
      %v494 = vrot.slane %v347, 1
      %v495 = vrot.slane %v349, 1
      %v496 = vrot.slane %v351, 1
      %v497 = vrot.slane %v353, 1
      %v498 = vrot.slane %v355, 1
      %v499 = vrot.slane %v357, 1
      %v500 = vrot.slane %v359, 1
      %v501 = vrot.slane %v361, 1
      %v502 = vrot.slane %v363, 1
      %v503 = vrot.slane %v365, 1
      %vm504 = vcmp.lt.s32.totalorder %v367, 7
      %v505 = vsel %vm504, %v472, %v488
      %v506 = vsel %vm504, %v473, %v489
      %v507 = vsel %vm504, %v474, %v490
      %v508 = vsel %vm504, %v475, %v491
      %v509 = vsel %vm504, %v476, %v492
      %v510 = vsel %vm504, %v477, %v493
      %v511 = vsel %vm504, %v478, %v494
      %v512 = vsel %vm504, %v479, %v495
      %v513 = vsel %vm504, %v480, %v496
      %v514 = vsel %vm504, %v481, %v497
      %v515 = vsel %vm504, %v482, %v498
      %v516 = vsel %vm504, %v483, %v499
      %v517 = vsel %vm504, %v484, %v500
      %v518 = vsel %vm504, %v485, %v501
      %v519 = vsel %vm504, %v486, %v502
      %v520 = vsel %vm504, %v487, %v503
      %v521 = vsel %vm504, %v488, %v472
      %v522 = vsel %vm504, %v489, %v473
      %v523 = vsel %vm504, %v490, %v474
      %v524 = vsel %vm504, %v491, %v475
      %v525 = vsel %vm504, %v492, %v476
      %v526 = vsel %vm504, %v493, %v477
      %v527 = vsel %vm504, %v494, %v478
      %v528 = vsel %vm504, %v495, %v479
      %v529 = vsel %vm504, %v496, %v480
      %v530 = vsel %vm504, %v497, %v481
      %v531 = vsel %vm504, %v498, %v482
      %v532 = vsel %vm504, %v499, %v483
      %v533 = vsel %vm504, %v500, %v484
      %v534 = vsel %vm504, %v501, %v485
      %v535 = vsel %vm504, %v502, %v486
      %v536 = vsel %vm504, %v503, %v487
      %v537 = vsel %vm470, 0.0, 0.0
      %v538 = vsel %vm471, 0.0, 0.0
      %v539 = vsel %vm470, 0.0, %v505
      %v540 = vsel %vm471, 0.0, %v521
      %v541 = vsel %vm470, 0.0, %v506
      %v542 = vsel %vm471, 0.0, %v522
      %v543 = vsel %vm470, 0.0, %v507
      %v544 = vsel %vm471, 0.0, %v523
      %v545 = vsel %vm470, 0.0, %v508
      %v546 = vsel %vm471, 0.0, %v524
      %v547 = vsel %vm470, 0.0, %v509
      %v548 = vsel %vm471, 0.0, %v525
      %v549 = vsel %vm470, 0.0, %v510
      %v550 = vsel %vm471, 0.0, %v526
      %v551 = vsel %vm470, 0.0, %v511
      %v552 = vsel %vm471, 0.0, %v527
      %v553 = vsel %vm470, 0.0, %v512
      %v554 = vsel %vm471, 0.0, %v528
      %v555 = vsel %vm470, 0.0, %v513
      %v556 = vsel %vm471, 0.0, %v529
      %v557 = vsel %vm470, 0.0, %v514
      %v558 = vsel %vm471, 0.0, %v530
      %v559 = vsel %vm470, 0.0, %v515
      %v560 = vsel %vm471, 0.0, %v531
      %v561 = vsel %vm470, 0.0, %v516
      %v562 = vsel %vm471, 0.0, %v532
      %v563 = vsel %vm470, 0.0, %v517
      %v564 = vsel %vm471, 0.0, %v533
      %v565 = vsel %vm470, 0.0, %v518
      %v566 = vsel %vm471, 0.0, %v534
      %v567 = vsel %vm470, 0.0, %v519
      %v568 = vsel %vm471, 0.0, %v535
      %v569 = vsel %vm470, 0.0, %v520
      %v570 = vsel %vm471, 0.0, %v536
      %602 = vrot.lane.b32.xlu0 0.0, 3
      %v603 = vpop.permute.xlu0 %602
      %604 = vrot.lane.b32.xlu0 %v334, 3
      %v605 = vpop.permute.xlu0 %604
      %606 = vrot.lane.b32.xlu0 %v335, 3
      %v607 = vpop.permute.xlu0 %606
      %608 = vrot.lane.b32.xlu0 %v336, 3
      %v609 = vpop.permute.xlu0 %608
      %610 = vrot.lane.b32.xlu0 %v337, 3
      %v611 = vpop.permute.xlu0 %610
      %612 = vrot.lane.b32.xlu0 %v338, 3
      %v613 = vpop.permute.xlu0 %612
      %614 = vrot.lane.b32.xlu0 %v339, 3
      %v615 = vpop.permute.xlu0 %614
      %616 = vrot.lane.b32.xlu0 %v340, 3
      %v617 = vpop.permute.xlu0 %616
      %618 = vrot.lane.b32.xlu0 %v341, 3
      %v619 = vpop.permute.xlu0 %618
      %620 = vrot.lane.b32.xlu0 %v342, 3
      %v621 = vpop.permute.xlu0 %620
      %622 = vrot.lane.b32.xlu0 %v343, 3
      %v623 = vpop.permute.xlu0 %622
      %624 = vrot.lane.b32.xlu0 %v344, 3
      %v625 = vpop.permute.xlu0 %624
      %626 = vrot.lane.b32.xlu0 %v345, 3
      %v627 = vpop.permute.xlu0 %626
      %628 = vrot.lane.b32.xlu0 %v346, 3
      %v629 = vpop.permute.xlu0 %628
      %630 = vrot.lane.b32.xlu0 %v347, 3
      %v631 = vpop.permute.xlu0 %630
      %632 = vrot.lane.b32.xlu0 %v348, 3
      %v633 = vpop.permute.xlu0 %632
      %634 = vrot.lane.b32.xlu0 %v349, 3
      %v635 = vpop.permute.xlu0 %634
      %636 = vrot.lane.b32.xlu0 %v350, 3
      %v637 = vpop.permute.xlu0 %636
      %638 = vrot.lane.b32.xlu0 %v351, 3
      %v639 = vpop.permute.xlu0 %638
      %640 = vrot.lane.b32.xlu0 %v352, 3
      %v641 = vpop.permute.xlu0 %640
      %642 = vrot.lane.b32.xlu0 %v353, 3
      %v643 = vpop.permute.xlu0 %642
      %644 = vrot.lane.b32.xlu0 %v354, 3
      %v645 = vpop.permute.xlu0 %644
      %646 = vrot.lane.b32.xlu0 %v355, 3
      %v647 = vpop.permute.xlu0 %646
      %648 = vrot.lane.b32.xlu0 %v356, 3
      %v649 = vpop.permute.xlu0 %648
      %650 = vrot.lane.b32.xlu0 %v357, 3
      %v651 = vpop.permute.xlu0 %650
      %652 = vrot.lane.b32.xlu0 %v358, 3
      %v653 = vpop.permute.xlu0 %652
      %654 = vrot.lane.b32.xlu0 %v359, 3
      %v655 = vpop.permute.xlu0 %654
      %656 = vrot.lane.b32.xlu0 %v360, 3
      %v657 = vpop.permute.xlu0 %656
      %658 = vrot.lane.b32.xlu0 %v361, 3
      %v659 = vpop.permute.xlu0 %658
      %660 = vrot.lane.b32.xlu0 %v362, 3
      %v661 = vpop.permute.xlu0 %660
      %662 = vrot.lane.b32.xlu0 %v363, 3
      %v663 = vpop.permute.xlu0 %662
      %727 = vrot.lane.b32.xlu0 %v537, 6
      %v728 = vpop.permute.xlu0 %727
      %729 = vrot.lane.b32.xlu0 %v538, 6
      %v730 = vpop.permute.xlu0 %729
      %731 = vrot.lane.b32.xlu0 %v539, 6
      %v732 = vpop.permute.xlu0 %731
      %733 = vrot.lane.b32.xlu0 %v540, 6
      %v734 = vpop.permute.xlu0 %733
      %735 = vrot.lane.b32.xlu0 %v541, 6
      %v736 = vpop.permute.xlu0 %735
      %737 = vrot.lane.b32.xlu0 %v542, 6
      %v738 = vpop.permute.xlu0 %737
      %739 = vrot.lane.b32.xlu0 %v543, 6
      %v740 = vpop.permute.xlu0 %739
      %741 = vrot.lane.b32.xlu0 %v544, 6
      %v742 = vpop.permute.xlu0 %741
      %743 = vrot.lane.b32.xlu0 %v545, 6
      %v744 = vpop.permute.xlu0 %743
      %745 = vrot.lane.b32.xlu0 %v546, 6
      %v746 = vpop.permute.xlu0 %745
      %747 = vrot.lane.b32.xlu0 %v547, 6
      %v748 = vpop.permute.xlu0 %747
      %749 = vrot.lane.b32.xlu0 %v548, 6
      %v750 = vpop.permute.xlu0 %749
      %751 = vrot.lane.b32.xlu0 %v549, 6
      %v752 = vpop.permute.xlu0 %751
      %753 = vrot.lane.b32.xlu0 %v550, 6
      %v754 = vpop.permute.xlu0 %753
      %755 = vrot.lane.b32.xlu0 %v551, 6
      %v756 = vpop.permute.xlu0 %755
      %757 = vrot.lane.b32.xlu0 %v552, 6
      %v758 = vpop.permute.xlu0 %757
      %759 = vrot.lane.b32.xlu0 %v553, 6
      %v760 = vpop.permute.xlu0 %759
      %761 = vrot.lane.b32.xlu0 %v554, 6
      %v762 = vpop.permute.xlu0 %761
      %763 = vrot.lane.b32.xlu0 %v555, 6
      %v764 = vpop.permute.xlu0 %763
      %765 = vrot.lane.b32.xlu0 %v556, 6
      %v766 = vpop.permute.xlu0 %765
      %767 = vrot.lane.b32.xlu0 %v557, 6
      %v768 = vpop.permute.xlu0 %767
      %769 = vrot.lane.b32.xlu0 %v558, 6
      %v770 = vpop.permute.xlu0 %769
      %771 = vrot.lane.b32.xlu0 %v559, 6
      %v772 = vpop.permute.xlu0 %771
      %773 = vrot.lane.b32.xlu0 %v560, 6
      %v774 = vpop.permute.xlu0 %773
      %775 = vrot.lane.b32.xlu0 %v561, 6
      %v776 = vpop.permute.xlu0 %775
      %777 = vrot.lane.b32.xlu0 %v562, 6
      %v778 = vpop.permute.xlu0 %777
      %779 = vrot.lane.b32.xlu0 %v563, 6
      %v780 = vpop.permute.xlu0 %779
      %781 = vrot.lane.b32.xlu0 %v564, 6
      %v782 = vpop.permute.xlu0 %781
      %783 = vrot.lane.b32.xlu0 %v565, 6
      %v784 = vpop.permute.xlu0 %783
      %785 = vrot.lane.b32.xlu0 %v566, 6
      %v786 = vpop.permute.xlu0 %785
      %787 = vrot.lane.b32.xlu0 %v567, 6
      %v788 = vpop.permute.xlu0 %787
      %789 = vrot.lane.b32.xlu0 %v568, 6
      %v790 = vpop.permute.xlu0 %789
      %855 = vrot.lane.b32.xlu0 %v438, 9
      %v856 = vpop.permute.xlu0 %855
      %857 = vrot.lane.b32.xlu0 %v439, 9
      %v858 = vpop.permute.xlu0 %857
      %859 = vrot.lane.b32.xlu0 %v440, 9
      %v860 = vpop.permute.xlu0 %859
      %861 = vrot.lane.b32.xlu0 %v441, 9
      %v862 = vpop.permute.xlu0 %861
      %863 = vrot.lane.b32.xlu0 %v442, 9
      %v864 = vpop.permute.xlu0 %863
      %865 = vrot.lane.b32.xlu0 %v443, 9
      %v866 = vpop.permute.xlu0 %865
      %867 = vrot.lane.b32.xlu0 %v444, 9
      %v868 = vpop.permute.xlu0 %867
      %869 = vrot.lane.b32.xlu0 %v445, 9
      %v870 = vpop.permute.xlu0 %869
      %871 = vrot.lane.b32.xlu0 %v446, 9
      %v872 = vpop.permute.xlu0 %871
      %873 = vrot.lane.b32.xlu0 %v447, 9
      %v874 = vpop.permute.xlu0 %873
      %875 = vrot.lane.b32.xlu0 %v448, 9
      %v876 = vpop.permute.xlu0 %875
      %877 = vrot.lane.b32.xlu0 %v449, 9
      %v878 = vpop.permute.xlu0 %877
      %879 = vrot.lane.b32.xlu0 %v450, 9
      %v880 = vpop.permute.xlu0 %879
      %881 = vrot.lane.b32.xlu0 %v451, 9
      %v882 = vpop.permute.xlu0 %881
      %883 = vrot.lane.b32.xlu0 %v452, 9
      %v884 = vpop.permute.xlu0 %883
      %885 = vrot.lane.b32.xlu0 %v453, 9
      %v886 = vpop.permute.xlu0 %885
      %887 = vrot.lane.b32.xlu0 %v454, 9
      %v888 = vpop.permute.xlu0 %887
      %889 = vrot.lane.b32.xlu0 %v455, 9
      %v890 = vpop.permute.xlu0 %889
      %891 = vrot.lane.b32.xlu0 %v456, 9
      %v892 = vpop.permute.xlu0 %891
      %893 = vrot.lane.b32.xlu0 %v457, 9
      %v894 = vpop.permute.xlu0 %893
      %895 = vrot.lane.b32.xlu0 %v458, 9
      %v896 = vpop.permute.xlu0 %895
      %897 = vrot.lane.b32.xlu0 %v459, 9
      %v898 = vpop.permute.xlu0 %897
      %899 = vrot.lane.b32.xlu0 %v460, 9
      %v900 = vpop.permute.xlu0 %899
      %901 = vrot.lane.b32.xlu0 %v461, 9
      %v902 = vpop.permute.xlu0 %901
      %903 = vrot.lane.b32.xlu0 %v462, 9
      %v904 = vpop.permute.xlu0 %903
      %905 = vrot.lane.b32.xlu0 %v463, 9
      %v906 = vpop.permute.xlu0 %905
      %907 = vrot.lane.b32.xlu0 %v464, 9
      %v908 = vpop.permute.xlu0 %907
      %909 = vrot.lane.b32.xlu0 %v465, 9
      %v910 = vpop.permute.xlu0 %909
      %911 = vrot.lane.b32.xlu0 %v466, 9
      %v912 = vpop.permute.xlu0 %911
      %913 = vrot.lane.b32.xlu0 %v467, 9
      %v914 = vpop.permute.xlu0 %913
      %915 = vrot.lane.b32.xlu0 %v468, 9
      %v916 = vpop.permute.xlu0 %915
      %917 = vrot.lane.b32.xlu0 %v469, 9
      %v918 = vpop.permute.xlu0 %917
      %953 = vrot.lane.b32.xlu0 %v334, 12
      %v954 = vpop.permute.xlu0 %953
      %955 = vrot.lane.b32.xlu0 %v335, 12
      %v956 = vpop.permute.xlu0 %955
      %957 = vrot.lane.b32.xlu0 %v336, 12
      %v958 = vpop.permute.xlu0 %957
      %959 = vrot.lane.b32.xlu0 %v337, 12
      %v960 = vpop.permute.xlu0 %959
      %961 = vrot.lane.b32.xlu0 %v338, 12
      %v962 = vpop.permute.xlu0 %961
      %963 = vrot.lane.b32.xlu0 %v339, 12
      %v964 = vpop.permute.xlu0 %963
      %965 = vrot.lane.b32.xlu0 %v340, 12
      %v966 = vpop.permute.xlu0 %965
      %967 = vrot.lane.b32.xlu0 %v341, 12
      %v968 = vpop.permute.xlu0 %967
      %969 = vrot.lane.b32.xlu0 %v342, 12
      %v970 = vpop.permute.xlu0 %969
      %971 = vrot.lane.b32.xlu0 %v343, 12
      %v972 = vpop.permute.xlu0 %971
      %973 = vrot.lane.b32.xlu0 %v344, 12
      %v974 = vpop.permute.xlu0 %973
      %975 = vrot.lane.b32.xlu0 %v345, 12
      %v976 = vpop.permute.xlu0 %975
      %977 = vrot.lane.b32.xlu0 %v346, 12
      %v978 = vpop.permute.xlu0 %977
      %979 = vrot.lane.b32.xlu0 %v347, 12
      %v980 = vpop.permute.xlu0 %979
      %981 = vrot.lane.b32.xlu0 %v348, 12
      %v982 = vpop.permute.xlu0 %981
      %983 = vrot.lane.b32.xlu0 %v349, 12
      %v984 = vpop.permute.xlu0 %983
      %985 = vrot.lane.b32.xlu0 %v350, 12
      %v986 = vpop.permute.xlu0 %985
      %987 = vrot.lane.b32.xlu0 %v351, 12
      %v988 = vpop.permute.xlu0 %987
      %989 = vrot.lane.b32.xlu0 %v352, 12
      %v990 = vpop.permute.xlu0 %989
      %991 = vrot.lane.b32.xlu0 %v353, 12
      %v992 = vpop.permute.xlu0 %991
      %993 = vrot.lane.b32.xlu0 %v354, 12
      %v994 = vpop.permute.xlu0 %993
      %995 = vrot.lane.b32.xlu0 %v355, 12
      %v996 = vpop.permute.xlu0 %995
      %997 = vrot.lane.b32.xlu0 %v356, 12
      %v998 = vpop.permute.xlu0 %997
      %999 = vrot.lane.b32.xlu0 %v357, 12
      %v1000 = vpop.permute.xlu0 %999
      %1001 = vrot.lane.b32.xlu0 %v358, 12
      %v1002 = vpop.permute.xlu0 %1001
      %1003 = vrot.lane.b32.xlu0 %v359, 12
      %v1004 = vpop.permute.xlu0 %1003
      %1005 = vrot.lane.b32.xlu0 %v360, 12
      %v1006 = vpop.permute.xlu0 %1005
      %1007 = vrot.lane.b32.xlu0 %v361, 12
      %v1008 = vpop.permute.xlu0 %1007
      %1009 = vrot.lane.b32.xlu0 %v362, 12
      %v1010 = vpop.permute.xlu0 %1009
      %1011 = vrot.lane.b32.xlu0 %v363, 12
      %v1012 = vpop.permute.xlu0 %1011
      %1013 = vrot.lane.b32.xlu0 %v364, 12
      %v1014 = vpop.permute.xlu0 %1013
      %1015 = vrot.lane.b32.xlu0 %v365, 12
      %v1016 = vpop.permute.xlu0 %1015
      %1051 = vrot.lane.b32.xlu0 %v539, 15
      %v1052 = vpop.permute.xlu0 %1051
      %1053 = vrot.lane.b32.xlu0 %v540, 15
      %v1054 = vpop.permute.xlu0 %1053
      %1055 = vrot.lane.b32.xlu0 %v541, 15
      %v1056 = vpop.permute.xlu0 %1055
      %1057 = vrot.lane.b32.xlu0 %v542, 15
      %v1058 = vpop.permute.xlu0 %1057
      %1059 = vrot.lane.b32.xlu0 %v543, 15
      %v1060 = vpop.permute.xlu0 %1059
      %1061 = vrot.lane.b32.xlu0 %v544, 15
      %v1062 = vpop.permute.xlu0 %1061
      %1063 = vrot.lane.b32.xlu0 %v545, 15
      %v1064 = vpop.permute.xlu0 %1063
      %1065 = vrot.lane.b32.xlu0 %v546, 15
      %v1066 = vpop.permute.xlu0 %1065
      %1067 = vrot.lane.b32.xlu0 %v547, 15
      %v1068 = vpop.permute.xlu0 %1067
      %1069 = vrot.lane.b32.xlu0 %v548, 15
      %v1070 = vpop.permute.xlu0 %1069
      %1071 = vrot.lane.b32.xlu0 %v549, 15
      %v1072 = vpop.permute.xlu0 %1071
      %1073 = vrot.lane.b32.xlu0 %v550, 15
      %v1074 = vpop.permute.xlu0 %1073
      %1075 = vrot.lane.b32.xlu0 %v551, 15
      %v1076 = vpop.permute.xlu0 %1075
      %1077 = vrot.lane.b32.xlu0 %v552, 15
      %v1078 = vpop.permute.xlu0 %1077
      %1079 = vrot.lane.b32.xlu0 %v553, 15
      %v1080 = vpop.permute.xlu0 %1079
      %1081 = vrot.lane.b32.xlu0 %v554, 15
      %v1082 = vpop.permute.xlu0 %1081
      %1083 = vrot.lane.b32.xlu0 %v555, 15
      %v1084 = vpop.permute.xlu0 %1083
      %1085 = vrot.lane.b32.xlu0 %v556, 15
      %v1086 = vpop.permute.xlu0 %1085
      %1087 = vrot.lane.b32.xlu0 %v557, 15
      %v1088 = vpop.permute.xlu0 %1087
      %1089 = vrot.lane.b32.xlu0 %v558, 15
      %v1090 = vpop.permute.xlu0 %1089
      %1091 = vrot.lane.b32.xlu0 %v559, 15
      %v1092 = vpop.permute.xlu0 %1091
      %1093 = vrot.lane.b32.xlu0 %v560, 15
      %v1094 = vpop.permute.xlu0 %1093
      %1095 = vrot.lane.b32.xlu0 %v561, 15
      %v1096 = vpop.permute.xlu0 %1095
      %1097 = vrot.lane.b32.xlu0 %v562, 15
      %v1098 = vpop.permute.xlu0 %1097
      %1099 = vrot.lane.b32.xlu0 %v563, 15
      %v1100 = vpop.permute.xlu0 %1099
      %1101 = vrot.lane.b32.xlu0 %v564, 15
      %v1102 = vpop.permute.xlu0 %1101
      %1103 = vrot.lane.b32.xlu0 %v565, 15
      %v1104 = vpop.permute.xlu0 %1103
      %1105 = vrot.lane.b32.xlu0 %v566, 15
      %v1106 = vpop.permute.xlu0 %1105
      %1107 = vrot.lane.b32.xlu0 %v567, 15
      %v1108 = vpop.permute.xlu0 %1107
      %1109 = vrot.lane.b32.xlu0 %v568, 15
      %v1110 = vpop.permute.xlu0 %1109
      %1111 = vrot.lane.b32.xlu0 %v569, 15
      %v1112 = vpop.permute.xlu0 %1111
      %1113 = vrot.lane.b32.xlu0 %v570, 15
      %v1114 = vpop.permute.xlu0 %1113
      %1149 = vrot.lane.b32.xlu0 %v440, 18
      %v1150 = vpop.permute.xlu0 %1149
      %1151 = vrot.lane.b32.xlu0 %v441, 18
      %v1152 = vpop.permute.xlu0 %1151
      %1153 = vrot.lane.b32.xlu0 %v442, 18
      %v1154 = vpop.permute.xlu0 %1153
      %1155 = vrot.lane.b32.xlu0 %v443, 18
      %v1156 = vpop.permute.xlu0 %1155
      %1157 = vrot.lane.b32.xlu0 %v444, 18
      %v1158 = vpop.permute.xlu0 %1157
      %1159 = vrot.lane.b32.xlu0 %v445, 18
      %v1160 = vpop.permute.xlu0 %1159
      %1161 = vrot.lane.b32.xlu0 %v446, 18
      %v1162 = vpop.permute.xlu0 %1161
      %1163 = vrot.lane.b32.xlu0 %v447, 18
      %v1164 = vpop.permute.xlu0 %1163
      %1165 = vrot.lane.b32.xlu0 %v448, 18
      %v1166 = vpop.permute.xlu0 %1165
      %1167 = vrot.lane.b32.xlu0 %v449, 18
      %v1168 = vpop.permute.xlu0 %1167
      %1169 = vrot.lane.b32.xlu0 %v450, 18
      %v1170 = vpop.permute.xlu0 %1169
      %1171 = vrot.lane.b32.xlu0 %v451, 18
      %v1172 = vpop.permute.xlu0 %1171
      %1173 = vrot.lane.b32.xlu0 %v452, 18
      %v1174 = vpop.permute.xlu0 %1173
      %1175 = vrot.lane.b32.xlu0 %v453, 18
      %v1176 = vpop.permute.xlu0 %1175
      %1177 = vrot.lane.b32.xlu0 %v454, 18
      %v1178 = vpop.permute.xlu0 %1177
      %1179 = vrot.lane.b32.xlu0 %v455, 18
      %v1180 = vpop.permute.xlu0 %1179
      %1181 = vrot.lane.b32.xlu0 %v456, 18
      %v1182 = vpop.permute.xlu0 %1181
      %1183 = vrot.lane.b32.xlu0 %v457, 18
      %v1184 = vpop.permute.xlu0 %1183
      %1185 = vrot.lane.b32.xlu0 %v458, 18
      %v1186 = vpop.permute.xlu0 %1185
      %1187 = vrot.lane.b32.xlu0 %v459, 18
      %v1188 = vpop.permute.xlu0 %1187
      %1189 = vrot.lane.b32.xlu0 %v460, 18
      %v1190 = vpop.permute.xlu0 %1189
      %1191 = vrot.lane.b32.xlu0 %v461, 18
      %v1192 = vpop.permute.xlu0 %1191
      %1193 = vrot.lane.b32.xlu0 %v462, 18
      %v1194 = vpop.permute.xlu0 %1193
      %1195 = vrot.lane.b32.xlu0 %v463, 18
      %v1196 = vpop.permute.xlu0 %1195
      %1197 = vrot.lane.b32.xlu0 %v464, 18
      %v1198 = vpop.permute.xlu0 %1197
      %1199 = vrot.lane.b32.xlu0 %v465, 18
      %v1200 = vpop.permute.xlu0 %1199
      %1201 = vrot.lane.b32.xlu0 %v466, 18
      %v1202 = vpop.permute.xlu0 %1201
      %1203 = vrot.lane.b32.xlu0 %v467, 18
      %v1204 = vpop.permute.xlu0 %1203
      %1205 = vrot.lane.b32.xlu0 %v468, 18
      %v1206 = vpop.permute.xlu0 %1205
      %1207 = vrot.lane.b32.xlu0 %v469, 18
      %v1208 = vpop.permute.xlu0 %1207
      %1209 = vrot.lane.b32.xlu0 %v436, 18
      %v1210 = vpop.permute.xlu0 %1209
      %1211 = vrot.lane.b32.xlu0 %v437, 18
      %v1212 = vpop.permute.xlu0 %1211
      %1245 = vrot.lane.b32.xlu0 %v336, 21
      %v1246 = vpop.permute.xlu0 %1245
      %1247 = vrot.lane.b32.xlu0 %v337, 21
      %v1248 = vpop.permute.xlu0 %1247
      %1249 = vrot.lane.b32.xlu0 %v338, 21
      %v1250 = vpop.permute.xlu0 %1249
      %1251 = vrot.lane.b32.xlu0 %v339, 21
      %v1252 = vpop.permute.xlu0 %1251
      %1253 = vrot.lane.b32.xlu0 %v340, 21
      %v1254 = vpop.permute.xlu0 %1253
      %1255 = vrot.lane.b32.xlu0 %v341, 21
      %v1256 = vpop.permute.xlu0 %1255
      %1257 = vrot.lane.b32.xlu0 %v342, 21
      %v1258 = vpop.permute.xlu0 %1257
      %1259 = vrot.lane.b32.xlu0 %v343, 21
      %v1260 = vpop.permute.xlu0 %1259
      %1261 = vrot.lane.b32.xlu0 %v344, 21
      %v1262 = vpop.permute.xlu0 %1261
      %1263 = vrot.lane.b32.xlu0 %v345, 21
      %v1264 = vpop.permute.xlu0 %1263
      %1265 = vrot.lane.b32.xlu0 %v346, 21
      %v1266 = vpop.permute.xlu0 %1265
      %1267 = vrot.lane.b32.xlu0 %v347, 21
      %v1268 = vpop.permute.xlu0 %1267
      %1269 = vrot.lane.b32.xlu0 %v348, 21
      %v1270 = vpop.permute.xlu0 %1269
      %1271 = vrot.lane.b32.xlu0 %v349, 21
      %v1272 = vpop.permute.xlu0 %1271
      %1273 = vrot.lane.b32.xlu0 %v350, 21
      %v1274 = vpop.permute.xlu0 %1273
      %1275 = vrot.lane.b32.xlu0 %v351, 21
      %v1276 = vpop.permute.xlu0 %1275
      %1277 = vrot.lane.b32.xlu0 %v352, 21
      %v1278 = vpop.permute.xlu0 %1277
      %1279 = vrot.lane.b32.xlu0 %v353, 21
      %v1280 = vpop.permute.xlu0 %1279
      %1281 = vrot.lane.b32.xlu0 %v354, 21
      %v1282 = vpop.permute.xlu0 %1281
      %1283 = vrot.lane.b32.xlu0 %v355, 21
      %v1284 = vpop.permute.xlu0 %1283
      %1285 = vrot.lane.b32.xlu0 %v356, 21
      %v1286 = vpop.permute.xlu0 %1285
      %1287 = vrot.lane.b32.xlu0 %v357, 21
      %v1288 = vpop.permute.xlu0 %1287
      %1289 = vrot.lane.b32.xlu0 %v358, 21
      %v1290 = vpop.permute.xlu0 %1289
      %1291 = vrot.lane.b32.xlu0 %v359, 21
      %v1292 = vpop.permute.xlu0 %1291
      %1293 = vrot.lane.b32.xlu0 %v360, 21
      %v1294 = vpop.permute.xlu0 %1293
      %1295 = vrot.lane.b32.xlu0 %v361, 21
      %v1296 = vpop.permute.xlu0 %1295
      %1297 = vrot.lane.b32.xlu0 %v362, 21
      %v1298 = vpop.permute.xlu0 %1297
      %1299 = vrot.lane.b32.xlu0 %v363, 21
      %v1300 = vpop.permute.xlu0 %1299
      %1301 = vrot.lane.b32.xlu0 %v364, 21
      %v1302 = vpop.permute.xlu0 %1301
      %1303 = vrot.lane.b32.xlu0 %v365, 21
      %v1304 = vpop.permute.xlu0 %1303
      %1305 = vrot.lane.b32.xlu0 0.0, 21
      %v1306 = vpop.permute.xlu0 %1305
      %1338 = vrot.lane.b32.xlu0 %v541, 24
      %v1339 = vpop.permute.xlu0 %1338
      %1340 = vrot.lane.b32.xlu0 %v542, 24
      %v1341 = vpop.permute.xlu0 %1340
      %1342 = vrot.lane.b32.xlu0 %v543, 24
      %v1343 = vpop.permute.xlu0 %1342
      %1344 = vrot.lane.b32.xlu0 %v544, 24
      %v1345 = vpop.permute.xlu0 %1344
      %1346 = vrot.lane.b32.xlu0 %v545, 24
      %v1347 = vpop.permute.xlu0 %1346
      %1348 = vrot.lane.b32.xlu0 %v546, 24
      %v1349 = vpop.permute.xlu0 %1348
      %1350 = vrot.lane.b32.xlu0 %v547, 24
      %v1351 = vpop.permute.xlu0 %1350
      %1352 = vrot.lane.b32.xlu0 %v548, 24
      %v1353 = vpop.permute.xlu0 %1352
      %1354 = vrot.lane.b32.xlu0 %v549, 24
      %v1355 = vpop.permute.xlu0 %1354
      %1356 = vrot.lane.b32.xlu0 %v550, 24
      %v1357 = vpop.permute.xlu0 %1356
      %1358 = vrot.lane.b32.xlu0 %v551, 24
      %v1359 = vpop.permute.xlu0 %1358
      %1360 = vrot.lane.b32.xlu0 %v552, 24
      %v1361 = vpop.permute.xlu0 %1360
      %1362 = vrot.lane.b32.xlu0 %v553, 24
      %v1363 = vpop.permute.xlu0 %1362
      %1364 = vrot.lane.b32.xlu0 %v554, 24
      %v1365 = vpop.permute.xlu0 %1364
      %1366 = vrot.lane.b32.xlu0 %v555, 24
      %v1367 = vpop.permute.xlu0 %1366
      %1368 = vrot.lane.b32.xlu0 %v556, 24
      %v1369 = vpop.permute.xlu0 %1368
      %1370 = vrot.lane.b32.xlu0 %v557, 24
      %v1371 = vpop.permute.xlu0 %1370
      %1372 = vrot.lane.b32.xlu0 %v558, 24
      %v1373 = vpop.permute.xlu0 %1372
      %1374 = vrot.lane.b32.xlu0 %v559, 24
      %v1375 = vpop.permute.xlu0 %1374
      %1376 = vrot.lane.b32.xlu0 %v560, 24
      %v1377 = vpop.permute.xlu0 %1376
      %1378 = vrot.lane.b32.xlu0 %v561, 24
      %v1379 = vpop.permute.xlu0 %1378
      %1380 = vrot.lane.b32.xlu0 %v562, 24
      %v1381 = vpop.permute.xlu0 %1380
      %1382 = vrot.lane.b32.xlu0 %v563, 24
      %v1383 = vpop.permute.xlu0 %1382
      %1384 = vrot.lane.b32.xlu0 %v564, 24
      %v1385 = vpop.permute.xlu0 %1384
      %1386 = vrot.lane.b32.xlu0 %v565, 24
      %v1387 = vpop.permute.xlu0 %1386
      %1388 = vrot.lane.b32.xlu0 %v566, 24
      %v1389 = vpop.permute.xlu0 %1388
      %1390 = vrot.lane.b32.xlu0 %v567, 24
      %v1391 = vpop.permute.xlu0 %1390
      %1392 = vrot.lane.b32.xlu0 %v568, 24
      %v1393 = vpop.permute.xlu0 %1392
      %1394 = vrot.lane.b32.xlu0 %v569, 24
      %v1395 = vpop.permute.xlu0 %1394
      %1396 = vrot.lane.b32.xlu0 %v570, 24
      %v1397 = vpop.permute.xlu0 %1396
      %1398 = vrot.lane.b32.xlu0 %v537, 24
      %v1399 = vpop.permute.xlu0 %1398
      %1400 = vrot.lane.b32.xlu0 %v538, 24
      %v1401 = vpop.permute.xlu0 %1400
      %vm1434 = vcmask 23552
      %v1435 = vsel %vm1434, %v436, %v603
      %v1436 = vsel %vm1434, %v437, %v603
      %v1437 = vsel %vm1434, %v438, %v605
      %v1438 = vsel %vm1434, %v439, %v607
      %v1439 = vsel %vm1434, %v440, %v609
      %v1440 = vsel %vm1434, %v441, %v611
      %v1441 = vsel %vm1434, %v442, %v613
      %v1442 = vsel %vm1434, %v443, %v615
      %v1443 = vsel %vm1434, %v444, %v617
      %v1444 = vsel %vm1434, %v445, %v619
      %v1445 = vsel %vm1434, %v446, %v621
      %v1446 = vsel %vm1434, %v447, %v623
      %v1447 = vsel %vm1434, %v448, %v625
      %v1448 = vsel %vm1434, %v449, %v627
      %v1449 = vsel %vm1434, %v450, %v629
      %v1450 = vsel %vm1434, %v451, %v631
      %v1451 = vsel %vm1434, %v452, %v633
      %v1452 = vsel %vm1434, %v453, %v635
      %v1453 = vsel %vm1434, %v454, %v637
      %v1454 = vsel %vm1434, %v455, %v639
      %v1455 = vsel %vm1434, %v456, %v641
      %v1456 = vsel %vm1434, %v457, %v643
      %v1457 = vsel %vm1434, %v458, %v645
      %v1458 = vsel %vm1434, %v459, %v647
      %v1459 = vsel %vm1434, %v460, %v649
      %v1460 = vsel %vm1434, %v461, %v651
      %v1461 = vsel %vm1434, %v462, %v653
      %v1462 = vsel %vm1434, %v463, %v655
      %v1463 = vsel %vm1434, %v464, %v657
      %v1464 = vsel %vm1434, %v465, %v659
      %v1465 = vsel %vm1434, %v466, %v661
      %v1466 = vsel %vm1434, %v467, %v663
      %vm1467 = vcmask 48128
      %v1468 = vsel %vm1467, %v1435, %v728
      %v1469 = vsel %vm1467, %v1436, %v730
      %v1470 = vsel %vm1467, %v1437, %v732
      %v1471 = vsel %vm1467, %v1438, %v734
      %v1472 = vsel %vm1467, %v1439, %v736
      %v1473 = vsel %vm1467, %v1440, %v738
      %v1474 = vsel %vm1467, %v1441, %v740
      %v1475 = vsel %vm1467, %v1442, %v742
      %v1476 = vsel %vm1467, %v1443, %v744
      %v1477 = vsel %vm1467, %v1444, %v746
      %v1478 = vsel %vm1467, %v1445, %v748
      %v1479 = vsel %vm1467, %v1446, %v750
      %v1480 = vsel %vm1467, %v1447, %v752
      %v1481 = vsel %vm1467, %v1448, %v754
      %v1482 = vsel %vm1467, %v1449, %v756
      %v1483 = vsel %vm1467, %v1450, %v758
      %v1484 = vsel %vm1467, %v1451, %v760
      %v1485 = vsel %vm1467, %v1452, %v762
      %v1486 = vsel %vm1467, %v1453, %v764
      %v1487 = vsel %vm1467, %v1454, %v766
      %v1488 = vsel %vm1467, %v1455, %v768
      %v1489 = vsel %vm1467, %v1456, %v770
      %v1490 = vsel %vm1467, %v1457, %v772
      %v1491 = vsel %vm1467, %v1458, %v774
      %v1492 = vsel %vm1467, %v1459, %v776
      %v1493 = vsel %vm1467, %v1460, %v778
      %v1494 = vsel %vm1467, %v1461, %v780
      %v1495 = vsel %vm1467, %v1462, %v782
      %v1496 = vsel %vm1467, %v1463, %v784
      %v1497 = vsel %vm1467, %v1464, %v786
      %v1498 = vsel %vm1467, %v1465, %v788
      %v1499 = vsel %vm1467, %v1466, %v790
      %vm1500 = vcmask 72704
      %v1501 = vsel %vm1500, %v1468, %v856
      %v1502 = vsel %vm1500, %v1469, %v858
      %v1503 = vsel %vm1500, %v1470, %v860
      %v1504 = vsel %vm1500, %v1471, %v862
      %v1505 = vsel %vm1500, %v1472, %v864
      %v1506 = vsel %vm1500, %v1473, %v866
      %v1507 = vsel %vm1500, %v1474, %v868
      %v1508 = vsel %vm1500, %v1475, %v870
      %v1509 = vsel %vm1500, %v1476, %v872
      %v1510 = vsel %vm1500, %v1477, %v874
      %v1511 = vsel %vm1500, %v1478, %v876
      %v1512 = vsel %vm1500, %v1479, %v878
      %v1513 = vsel %vm1500, %v1480, %v880
      %v1514 = vsel %vm1500, %v1481, %v882
      %v1515 = vsel %vm1500, %v1482, %v884
      %v1516 = vsel %vm1500, %v1483, %v886
      %v1517 = vsel %vm1500, %v1484, %v888
      %v1518 = vsel %vm1500, %v1485, %v890
      %v1519 = vsel %vm1500, %v1486, %v892
      %v1520 = vsel %vm1500, %v1487, %v894
      %v1521 = vsel %vm1500, %v1488, %v896
      %v1522 = vsel %vm1500, %v1489, %v898
      %v1523 = vsel %vm1500, %v1490, %v900
      %v1524 = vsel %vm1500, %v1491, %v902
      %v1525 = vsel %vm1500, %v1492, %v904
      %v1526 = vsel %vm1500, %v1493, %v906
      %v1527 = vsel %vm1500, %v1494, %v908
      %v1528 = vsel %vm1500, %v1495, %v910
      %v1529 = vsel %vm1500, %v1496, %v912
      %v1530 = vsel %vm1500, %v1497, %v914
      %v1531 = vsel %vm1500, %v1498, %v916
      %v1532 = vsel %vm1500, %v1499, %v918
      %vm1533 = vcmask 97280
      %v1534 = vsel %vm1533, %v1501, %v954
      %v1535 = vsel %vm1533, %v1502, %v956
      %v1536 = vsel %vm1533, %v1503, %v958
      %v1537 = vsel %vm1533, %v1504, %v960
      %v1538 = vsel %vm1533, %v1505, %v962
      %v1539 = vsel %vm1533, %v1506, %v964
      %v1540 = vsel %vm1533, %v1507, %v966
      %v1541 = vsel %vm1533, %v1508, %v968
      %v1542 = vsel %vm1533, %v1509, %v970
      %v1543 = vsel %vm1533, %v1510, %v972
      %v1544 = vsel %vm1533, %v1511, %v974
      %v1545 = vsel %vm1533, %v1512, %v976
      %v1546 = vsel %vm1533, %v1513, %v978
      %v1547 = vsel %vm1533, %v1514, %v980
      %v1548 = vsel %vm1533, %v1515, %v982
      %v1549 = vsel %vm1533, %v1516, %v984
      %v1550 = vsel %vm1533, %v1517, %v986
      %v1551 = vsel %vm1533, %v1518, %v988
      %v1552 = vsel %vm1533, %v1519, %v990
      %v1553 = vsel %vm1533, %v1520, %v992
      %v1554 = vsel %vm1533, %v1521, %v994
      %v1555 = vsel %vm1533, %v1522, %v996
      %v1556 = vsel %vm1533, %v1523, %v998
      %v1557 = vsel %vm1533, %v1524, %v1000
      %v1558 = vsel %vm1533, %v1525, %v1002
      %v1559 = vsel %vm1533, %v1526, %v1004
      %v1560 = vsel %vm1533, %v1527, %v1006
      %v1561 = vsel %vm1533, %v1528, %v1008
      %v1562 = vsel %vm1533, %v1529, %v1010
      %v1563 = vsel %vm1533, %v1530, %v1012
      %v1564 = vsel %vm1533, %v1531, %v1014
      %v1565 = vsel %vm1533, %v1532, %v1016
      %vm1566 = vcmask 121856
      %v1567 = vsel %vm1566, %v1534, %v1052
      %v1568 = vsel %vm1566, %v1535, %v1054
      %v1569 = vsel %vm1566, %v1536, %v1056
      %v1570 = vsel %vm1566, %v1537, %v1058
      %v1571 = vsel %vm1566, %v1538, %v1060
      %v1572 = vsel %vm1566, %v1539, %v1062
      %v1573 = vsel %vm1566, %v1540, %v1064
      %v1574 = vsel %vm1566, %v1541, %v1066
      %v1575 = vsel %vm1566, %v1542, %v1068
      %v1576 = vsel %vm1566, %v1543, %v1070
      %v1577 = vsel %vm1566, %v1544, %v1072
      %v1578 = vsel %vm1566, %v1545, %v1074
      %v1579 = vsel %vm1566, %v1546, %v1076
      %v1580 = vsel %vm1566, %v1547, %v1078
      %v1581 = vsel %vm1566, %v1548, %v1080
      %v1582 = vsel %vm1566, %v1549, %v1082
      %v1583 = vsel %vm1566, %v1550, %v1084
      %v1584 = vsel %vm1566, %v1551, %v1086
      %v1585 = vsel %vm1566, %v1552, %v1088
      %v1586 = vsel %vm1566, %v1553, %v1090
      %v1587 = vsel %vm1566, %v1554, %v1092
      %v1588 = vsel %vm1566, %v1555, %v1094
      %v1589 = vsel %vm1566, %v1556, %v1096
      %v1590 = vsel %vm1566, %v1557, %v1098
      %v1591 = vsel %vm1566, %v1558, %v1100
      %v1592 = vsel %vm1566, %v1559, %v1102
      %v1593 = vsel %vm1566, %v1560, %v1104
      %v1594 = vsel %vm1566, %v1561, %v1106
      %v1595 = vsel %vm1566, %v1562, %v1108
      %v1596 = vsel %vm1566, %v1563, %v1110
      %v1597 = vsel %vm1566, %v1564, %v1112
      %v1598 = vsel %vm1566, %v1565, %v1114
      %vm1599 = vcmask 146432
      %v1600 = vsel %vm1599, %v1567, %v1150
      %v1601 = vsel %vm1599, %v1568, %v1152
      %v1602 = vsel %vm1599, %v1569, %v1154
      %v1603 = vsel %vm1599, %v1570, %v1156
      %v1604 = vsel %vm1599, %v1571, %v1158
      %v1605 = vsel %vm1599, %v1572, %v1160
      %v1606 = vsel %vm1599, %v1573, %v1162
      %v1607 = vsel %vm1599, %v1574, %v1164
      %v1608 = vsel %vm1599, %v1575, %v1166
      %v1609 = vsel %vm1599, %v1576, %v1168
      %v1610 = vsel %vm1599, %v1577, %v1170
      %v1611 = vsel %vm1599, %v1578, %v1172
      %v1612 = vsel %vm1599, %v1579, %v1174
      %v1613 = vsel %vm1599, %v1580, %v1176
      %v1614 = vsel %vm1599, %v1581, %v1178
      %v1615 = vsel %vm1599, %v1582, %v1180
      %v1616 = vsel %vm1599, %v1583, %v1182
      %v1617 = vsel %vm1599, %v1584, %v1184
      %v1618 = vsel %vm1599, %v1585, %v1186
      %v1619 = vsel %vm1599, %v1586, %v1188
      %v1620 = vsel %vm1599, %v1587, %v1190
      %v1621 = vsel %vm1599, %v1588, %v1192
      %v1622 = vsel %vm1599, %v1589, %v1194
      %v1623 = vsel %vm1599, %v1590, %v1196
      %v1624 = vsel %vm1599, %v1591, %v1198
      %v1625 = vsel %vm1599, %v1592, %v1200
      %v1626 = vsel %vm1599, %v1593, %v1202
      %v1627 = vsel %vm1599, %v1594, %v1204
      %v1628 = vsel %vm1599, %v1595, %v1206
      %v1629 = vsel %vm1599, %v1596, %v1208
      %v1630 = vsel %vm1599, %v1597, %v1210
      %v1631 = vsel %vm1599, %v1598, %v1212
      %vm1632 = vcmask 171008
      %v1633 = vsel %vm1632, %v1600, %v1246
      %v1634 = vsel %vm1632, %v1601, %v1248
      %v1635 = vsel %vm1632, %v1602, %v1250
      %v1636 = vsel %vm1632, %v1603, %v1252
      %v1637 = vsel %vm1632, %v1604, %v1254
      %v1638 = vsel %vm1632, %v1605, %v1256
      %v1639 = vsel %vm1632, %v1606, %v1258
      %v1640 = vsel %vm1632, %v1607, %v1260
      %v1641 = vsel %vm1632, %v1608, %v1262
      %v1642 = vsel %vm1632, %v1609, %v1264
      %v1643 = vsel %vm1632, %v1610, %v1266
      %v1644 = vsel %vm1632, %v1611, %v1268
      %v1645 = vsel %vm1632, %v1612, %v1270
      %v1646 = vsel %vm1632, %v1613, %v1272
      %v1647 = vsel %vm1632, %v1614, %v1274
      %v1648 = vsel %vm1632, %v1615, %v1276
      %v1649 = vsel %vm1632, %v1616, %v1278
      %v1650 = vsel %vm1632, %v1617, %v1280
      %v1651 = vsel %vm1632, %v1618, %v1282
      %v1652 = vsel %vm1632, %v1619, %v1284
      %v1653 = vsel %vm1632, %v1620, %v1286
      %v1654 = vsel %vm1632, %v1621, %v1288
      %v1655 = vsel %vm1632, %v1622, %v1290
      %v1656 = vsel %vm1632, %v1623, %v1292
      %v1657 = vsel %vm1632, %v1624, %v1294
      %v1658 = vsel %vm1632, %v1625, %v1296
      %v1659 = vsel %vm1632, %v1626, %v1298
      %v1660 = vsel %vm1632, %v1627, %v1300
      %v1661 = vsel %vm1632, %v1628, %v1302
      %v1662 = vsel %vm1632, %v1629, %v1304
      %v1663 = vsel %vm1632, %v1630, %v1306
      %v1664 = vsel %vm1632, %v1631, %v1306
      %vm1665 = vcmask 195584
      %v1666 = vsel %vm1665, %v1633, %v1339
      %v1667 = vsel %vm1665, %v1634, %v1341
      %v1668 = vsel %vm1665, %v1635, %v1343
      %v1669 = vsel %vm1665, %v1636, %v1345
      %v1670 = vsel %vm1665, %v1637, %v1347
      %v1671 = vsel %vm1665, %v1638, %v1349
      %v1672 = vsel %vm1665, %v1639, %v1351
      %v1673 = vsel %vm1665, %v1640, %v1353
      %v1674 = vsel %vm1665, %v1641, %v1355
      %v1675 = vsel %vm1665, %v1642, %v1357
      %v1676 = vsel %vm1665, %v1643, %v1359
      %v1677 = vsel %vm1665, %v1644, %v1361
      %v1678 = vsel %vm1665, %v1645, %v1363
      %v1679 = vsel %vm1665, %v1646, %v1365
      %v1680 = vsel %vm1665, %v1647, %v1367
      %v1681 = vsel %vm1665, %v1648, %v1369
      %v1682 = vsel %vm1665, %v1649, %v1371
      %v1683 = vsel %vm1665, %v1650, %v1373
      %v1684 = vsel %vm1665, %v1651, %v1375
      %v1685 = vsel %vm1665, %v1652, %v1377
      %v1686 = vsel %vm1665, %v1653, %v1379
      %v1687 = vsel %vm1665, %v1654, %v1381
      %v1688 = vsel %vm1665, %v1655, %v1383
      %v1689 = vsel %vm1665, %v1656, %v1385
      %v1690 = vsel %vm1665, %v1657, %v1387
      %v1691 = vsel %vm1665, %v1658, %v1389
      %v1692 = vsel %vm1665, %v1659, %v1391
      %v1693 = vsel %vm1665, %v1660, %v1393
      %v1694 = vsel %vm1665, %v1661, %v1395
      %v1695 = vsel %vm1665, %v1662, %v1397
      %v1696 = vsel %vm1665, %v1663, %v1399
      %v1697 = vsel %vm1665, %v1664, %v1401
      %v1698 = vpack.c.bf16 %v1667, %v1666
      %v1699 = vpack.c.bf16 %v1669, %v1668
      %v1700 = vpack.c.bf16 %v1671, %v1670
      %v1701 = vpack.c.bf16 %v1673, %v1672
      %v1702 = vpack.c.bf16 %v1675, %v1674
      %v1703 = vpack.c.bf16 %v1677, %v1676
      %v1704 = vpack.c.bf16 %v1679, %v1678
      %v1705 = vpack.c.bf16 %v1681, %v1680
      %v1706 = vpack.c.bf16 %v1683, %v1682
      %v1707 = vpack.c.bf16 %v1685, %v1684
      %v1708 = vpack.c.bf16 %v1687, %v1686
      %v1709 = vpack.c.bf16 %v1689, %v1688
      %v1710 = vpack.c.bf16 %v1691, %v1690
      %v1711 = vpack.c.bf16 %v1693, %v1692
      %v1712 = vpack.c.bf16 %v1695, %v1694
      %v1713 = vpack.c.bf16 %v1697, %v1696
      %v1714 = vld [vmem:[%s1] sm:$0xf]
      %v1715 = vld [vmem:[%s1 + $0x4] sm:$0xf]
      %v1716 = vld [vmem:[%s1 + $0x8] sm:$0xf]
      %v1717 = vld [vmem:[%s1 + $0xc] sm:$0x3]
      %v1718 = vld [vmem:[%s2] sm:$0x1]
      %v1720 = vlaneseq
      %v1721 = vshrl.u32 %v1720, 7
      %v1722 = vsub.s32 0, %v1721
      %v1723 = vrot.slane %v1718, %v1722
      %v1729 = vunpack.c.l.b16 %v1714
      %v1730 = vunpack.c.l.b16 %v1715
      %v1731 = vunpack.c.l.b16 %v1716
      %v1732 = vunpack.c.l.b16 %v1717
      %v1733 = vpack.c.b16 %v1730, %v1729
      %v1734 = vpack.c.b16 %v1732, %v1731
      %vm1736 = vcmask 220160
      %v1738 = vsel %vm1736, %v1698, 0
      %v1741 = vsel %vm1736, %v1699, 0
      %v1744 = vsel %vm1736, %v1700, 0
      %v1747 = vsel %vm1736, %v1701, 0
      %v1750 = vsel %vm1736, %v1702, 0
      %v1753 = vsel %vm1736, %v1703, 0
      %v1756 = vsel %vm1736, %v1704, 0
      %v1759 = vsel %vm1736, %v1705, 0
      %v1762 = vsel %vm1736, %v1706, 0
      %v1765 = vsel %vm1736, %v1707, 0
      %v1768 = vsel %vm1736, %v1708, 0
      %v1771 = vsel %vm1736, %v1709, 0
      %v1774 = vsel %vm1736, %v1710, 0
      %v1777 = vsel %vm1736, %v1711, 0
      %v1780 = vsel %vm1736, %v1712, 0
      %v1783 = vsel %vm1736, %v1713, 0
      %vm1785 = vcmask 1044480
      %vm1786 = vcmask 1045504
      %v1787 = vsel %vm1785, 4294967295, 65535
      %v1788 = vsel %vm1786, %v1787, 0
      %v1790 = vand.u32 %v1734, %v1788
      %1792 = vmatprep.subr.bf16.mxu0 0
      %1793 = vmatpush1.bf16.msra.mxu0 0
      %1794 = vmatprep.subr.bf16.mxu0 0
      %1795 = vmatpush1.bf16.msra.mxu0 0
      %1796 = vmatprep.subr.bf16.mxu0 0
      %1797 = vmatpush1.bf16.msra.mxu0 0
      %1798 = vmatprep.subr.bf16.mxu0 0
      %1799 = vmatpush1.bf16.msra.mxu0 0
      %1800 = vmatprep.subr.bf16.mxu0 0
      %1801 = vmatpush1.bf16.msra.mxu0 0
      %1802 = vmatprep.subr.bf16.mxu0 0
      %1803 = vmatpush1.bf16.msra.mxu0 0
      %1804 = vmatprep.subr.bf16.mxu0 0
      %1805 = vmatpush1.bf16.msra.mxu0 %v1790
      %1806 = vmatprep.subr.bf16.mxu0 0
      %1807 = vmatpush1.bf16.msra.mxu0 %v1733
      %1808 = vmatprep.subr.bf16.mxu0 0
      %1809 = vmatpush2.bf16.msra.mxu0 0
      %1810 = vmatprep.subr.bf16.mxu0 0
      %1811 = vmatpush2.bf16.msra.mxu0 0
      %1812 = vmatprep.subr.bf16.mxu0 0
      %1813 = vmatpush2.bf16.msra.mxu0 0
      %1814 = vmatprep.subr.bf16.mxu0 0
      %1815 = vmatpush2.bf16.msra.mxu0 0
      %1816 = vmatprep.subr.bf16.mxu0 0
      %1817 = vmatpush2.bf16.msra.mxu0 0
      %1818 = vmatprep.subr.bf16.mxu0 0
      %1819 = vmatpush2.bf16.msra.mxu0 0
      %1820 = vmatprep.subr.bf16.mxu0 0
      %1821 = vmatpush2.bf16.msra.mxu0 0
      %1822 = vmatprep.subr.bf16.mxu0 0
      %1823 = vmatpush2.bf16.msra.mxu0 0
      %1824 = vmatprep.mubr.bf16.mxu0 0
      %1825 = vmatmul.mubr.bf16.gmra.mxu0 %v1738
      %v1826 = vpop.f32.mrf.mxu0
      %v1827 = vadd.f32 %v1723, %v1826
      %v1828 = vpop.f32.mrf.mxu0
      %v1829 = vpop.f32.mrf.mxu0
      %v1830 = vadd.f32 %v1723, %v1829
      %v1831 = vpop.f32.mrf.mxu0
      %1832 = vmatprep.mubr.bf16.mxu0 0
      %1833 = vmatmul.mubr.bf16.gmra.mxu0 %v1741
      %v1834 = vpop.f32.mrf.mxu0
      %v1835 = vadd.f32 %v1723, %v1834
      %v1836 = vpop.f32.mrf.mxu0
      %v1837 = vpop.f32.mrf.mxu0
      %v1838 = vadd.f32 %v1723, %v1837
      %v1839 = vpop.f32.mrf.mxu0
      %1840 = vmatprep.mubr.bf16.mxu0 0
      %1841 = vmatmul.mubr.bf16.gmra.mxu0 %v1744
      %v1842 = vpop.f32.mrf.mxu0
      %v1843 = vadd.f32 %v1723, %v1842
      %v1844 = vpop.f32.mrf.mxu0
      %v1845 = vpop.f32.mrf.mxu0
      %v1846 = vadd.f32 %v1723, %v1845
      %v1847 = vpop.f32.mrf.mxu0
      %1848 = vmatprep.mubr.bf16.mxu0 0
      %1849 = vmatmul.mubr.bf16.gmra.mxu0 %v1747
      %v1850 = vpop.f32.mrf.mxu0
      %v1851 = vadd.f32 %v1723, %v1850
      %v1852 = vpop.f32.mrf.mxu0
      %v1853 = vpop.f32.mrf.mxu0
      %v1854 = vadd.f32 %v1723, %v1853
      %v1855 = vpop.f32.mrf.mxu0
      %1856 = vmatprep.mubr.bf16.mxu0 0
      %1857 = vmatmul.mubr.bf16.gmra.mxu0 %v1750
      %v1858 = vpop.f32.mrf.mxu0
      %v1859 = vadd.f32 %v1723, %v1858
      %v1860 = vpop.f32.mrf.mxu0
      %v1861 = vpop.f32.mrf.mxu0
      %v1862 = vadd.f32 %v1723, %v1861
      %v1863 = vpop.f32.mrf.mxu0
      %1864 = vmatprep.mubr.bf16.mxu0 0
      %1865 = vmatmul.mubr.bf16.gmra.mxu0 %v1753
      %v1866 = vpop.f32.mrf.mxu0
      %v1867 = vadd.f32 %v1723, %v1866
      %v1868 = vpop.f32.mrf.mxu0
      %v1869 = vpop.f32.mrf.mxu0
      %v1870 = vadd.f32 %v1723, %v1869
      %v1871 = vpop.f32.mrf.mxu0
      %1872 = vmatprep.mubr.bf16.mxu0 0
      %1873 = vmatmul.mubr.bf16.gmra.mxu0 %v1756
      %v1874 = vpop.f32.mrf.mxu0
      %v1875 = vadd.f32 %v1723, %v1874
      %v1876 = vpop.f32.mrf.mxu0
      %v1877 = vpop.f32.mrf.mxu0
      %v1878 = vadd.f32 %v1723, %v1877
      %v1879 = vpop.f32.mrf.mxu0
      %1880 = vmatprep.mubr.bf16.mxu0 0
      %1881 = vmatmul.mubr.bf16.gmra.mxu0 %v1759
      %v1882 = vpop.f32.mrf.mxu0
      %v1883 = vadd.f32 %v1723, %v1882
      %v1884 = vpop.f32.mrf.mxu0
      %v1885 = vpop.f32.mrf.mxu0
      %v1886 = vadd.f32 %v1723, %v1885
      %v1887 = vpop.f32.mrf.mxu0
      %1888 = vmatprep.mubr.bf16.mxu0 0
      %1889 = vmatmul.mubr.bf16.gmra.mxu0 %v1762
      %v1890 = vpop.f32.mrf.mxu0
      %v1891 = vadd.f32 %v1723, %v1890
      %v1892 = vpop.f32.mrf.mxu0
      %v1893 = vpop.f32.mrf.mxu0
      %v1894 = vadd.f32 %v1723, %v1893
      %v1895 = vpop.f32.mrf.mxu0
      %1896 = vmatprep.mubr.bf16.mxu0 0
      %1897 = vmatmul.mubr.bf16.gmra.mxu0 %v1765
      %v1898 = vpop.f32.mrf.mxu0
      %v1899 = vadd.f32 %v1723, %v1898
      %v1900 = vpop.f32.mrf.mxu0
      %v1901 = vpop.f32.mrf.mxu0
      %v1902 = vadd.f32 %v1723, %v1901
      %v1903 = vpop.f32.mrf.mxu0
      %1904 = vmatprep.mubr.bf16.mxu0 0
      %1905 = vmatmul.mubr.bf16.gmra.mxu0 %v1768
      %v1906 = vpop.f32.mrf.mxu0
      %v1907 = vadd.f32 %v1723, %v1906
      %v1908 = vpop.f32.mrf.mxu0
      %v1909 = vpop.f32.mrf.mxu0
      %v1910 = vadd.f32 %v1723, %v1909
      %v1911 = vpop.f32.mrf.mxu0
      %1912 = vmatprep.mubr.bf16.mxu0 0
      %1913 = vmatmul.mubr.bf16.gmra.mxu0 %v1771
      %v1914 = vpop.f32.mrf.mxu0
      %v1915 = vadd.f32 %v1723, %v1914
      %v1916 = vpop.f32.mrf.mxu0
      %v1917 = vpop.f32.mrf.mxu0
      %v1918 = vadd.f32 %v1723, %v1917
      %v1919 = vpop.f32.mrf.mxu0
      %1920 = vmatprep.mubr.bf16.mxu0 0
      %1921 = vmatmul.mubr.bf16.gmra.mxu0 %v1774
      %v1922 = vpop.f32.mrf.mxu0
      %v1923 = vadd.f32 %v1723, %v1922
      %v1924 = vpop.f32.mrf.mxu0
      %v1925 = vpop.f32.mrf.mxu0
      %v1926 = vadd.f32 %v1723, %v1925
      %v1927 = vpop.f32.mrf.mxu0
      %1928 = vmatprep.mubr.bf16.mxu0 0
      %1929 = vmatmul.mubr.bf16.gmra.mxu0 %v1777
      %v1930 = vpop.f32.mrf.mxu0
      %v1931 = vadd.f32 %v1723, %v1930
      %v1932 = vpop.f32.mrf.mxu0
      %v1933 = vpop.f32.mrf.mxu0
      %v1934 = vadd.f32 %v1723, %v1933
      %v1935 = vpop.f32.mrf.mxu0
      %1936 = vmatprep.mubr.bf16.mxu0 0
      %1937 = vmatmul.mubr.bf16.gmra.mxu0 %v1780
      %v1938 = vpop.f32.mrf.mxu0
      %v1939 = vadd.f32 %v1723, %v1938
      %v1940 = vpop.f32.mrf.mxu0
      %v1941 = vpop.f32.mrf.mxu0
      %v1942 = vadd.f32 %v1723, %v1941
      %v1943 = vpop.f32.mrf.mxu0
      %1944 = vmatprep.mubr.bf16.mxu0 0
      %1945 = vmatmul.mubr.bf16.gmra.mxu0 %v1783
      %v1946 = vpop.f32.mrf.mxu0
      %v1947 = vadd.f32 %v1723, %v1946
      %v1948 = vpop.f32.mrf.mxu0
      %v1949 = vpop.f32.mrf.mxu0
      %v1950 = vadd.f32 %v1723, %v1949
      %v1951 = vpop.f32.mrf.mxu0
      %1952 = vdwg.mxu0
      %v1953 = vmax.f32 %v1827, 0.0
      %v1954 = vmax.f32 %v1830, 0.0
      %v1955 = vmax.f32 %v1835, 0.0
      %v1956 = vmax.f32 %v1838, 0.0
      %v1957 = vmax.f32 %v1843, 0.0
      %v1958 = vmax.f32 %v1846, 0.0
      %v1959 = vmax.f32 %v1851, 0.0
      %v1960 = vmax.f32 %v1854, 0.0
      %v1961 = vmax.f32 %v1859, 0.0
      %v1962 = vmax.f32 %v1862, 0.0
      %v1963 = vmax.f32 %v1867, 0.0
      %v1964 = vmax.f32 %v1870, 0.0
      %v1965 = vmax.f32 %v1875, 0.0
      %v1966 = vmax.f32 %v1878, 0.0
      %v1967 = vmax.f32 %v1883, 0.0
      %v1968 = vmax.f32 %v1886, 0.0
      %v1969 = vmax.f32 %v1891, 0.0
      %v1970 = vmax.f32 %v1894, 0.0
      %v1971 = vmax.f32 %v1899, 0.0
      %v1972 = vmax.f32 %v1902, 0.0
      %v1973 = vmax.f32 %v1907, 0.0
      %v1974 = vmax.f32 %v1910, 0.0
      %v1975 = vmax.f32 %v1915, 0.0
      %v1976 = vmax.f32 %v1918, 0.0
      %v1977 = vmax.f32 %v1923, 0.0
      %v1978 = vmax.f32 %v1926, 0.0
      %v1979 = vmax.f32 %v1931, 0.0
      %v1980 = vmax.f32 %v1934, 0.0
      %v1981 = vmax.f32 %v1939, 0.0
      %v1982 = vmax.f32 %v1942, 0.0
      %v1983 = vmax.f32 %v1947, 0.0
      %v1984 = vmax.f32 %v1950, 0.0
      %v1985 = vrot.slane %v1953, 7
      %v1986 = vrot.slane %v1955, 7
      %v1987 = vrot.slane %v1957, 7
      %v1988 = vrot.slane %v1959, 7
      %v1989 = vrot.slane %v1961, 7
      %v1990 = vrot.slane %v1963, 7
      %v1991 = vrot.slane %v1965, 7
      %v1992 = vrot.slane %v1967, 7
      %v1993 = vrot.slane %v1969, 7
      %v1994 = vrot.slane %v1971, 7
      %v1995 = vrot.slane %v1973, 7
      %v1996 = vrot.slane %v1975, 7
      %v1997 = vrot.slane %v1977, 7
      %v1998 = vrot.slane %v1979, 7
      %v1999 = vrot.slane %v1981, 7
      %v2000 = vrot.slane %v1983, 7
      %v2001 = vrot.slane %v1954, 7
      %v2002 = vrot.slane %v1956, 7
      %v2003 = vrot.slane %v1958, 7
      %v2004 = vrot.slane %v1960, 7
      %v2005 = vrot.slane %v1962, 7
      %v2006 = vrot.slane %v1964, 7
      %v2007 = vrot.slane %v1966, 7
      %v2008 = vrot.slane %v1968, 7
      %v2009 = vrot.slane %v1970, 7
      %v2010 = vrot.slane %v1972, 7
      %v2011 = vrot.slane %v1974, 7
      %v2012 = vrot.slane %v1976, 7
      %v2013 = vrot.slane %v1978, 7
      %v2014 = vrot.slane %v1980, 7
      %v2015 = vrot.slane %v1982, 7
      %v2016 = vrot.slane %v1984, 7
      %v2017 = vsel %vm403, %v1985, %v2001
      %v2018 = vsel %vm403, %v1986, %v2002
      %v2019 = vsel %vm403, %v1987, %v2003
      %v2020 = vsel %vm403, %v1988, %v2004
      %v2021 = vsel %vm403, %v1989, %v2005
      %v2022 = vsel %vm403, %v1990, %v2006
      %v2023 = vsel %vm403, %v1991, %v2007
      %v2024 = vsel %vm403, %v1992, %v2008
      %v2025 = vsel %vm403, %v1993, %v2009
      %v2026 = vsel %vm403, %v1994, %v2010
      %v2027 = vsel %vm403, %v1995, %v2011
      %v2028 = vsel %vm403, %v1996, %v2012
      %v2029 = vsel %vm403, %v1997, %v2013
      %v2030 = vsel %vm403, %v1998, %v2014
      %v2031 = vsel %vm403, %v1999, %v2015
      %v2032 = vsel %vm403, %v2000, %v2016
      %v2033 = vsel %vm403, %v2001, %v1985
      %v2034 = vsel %vm403, %v2002, %v1986
      %v2035 = vsel %vm403, %v2003, %v1987
      %v2036 = vsel %vm403, %v2004, %v1988
      %v2037 = vsel %vm403, %v2005, %v1989
      %v2038 = vsel %vm403, %v2006, %v1990
      %v2039 = vsel %vm403, %v2007, %v1991
      %v2040 = vsel %vm403, %v2008, %v1992
      %v2041 = vsel %vm403, %v2009, %v1993
      %v2042 = vsel %vm403, %v2010, %v1994
      %v2043 = vsel %vm403, %v2011, %v1995
      %v2044 = vsel %vm403, %v2012, %v1996
      %v2045 = vsel %vm403, %v2013, %v1997
      %v2046 = vsel %vm403, %v2014, %v1998
      %v2047 = vsel %vm403, %v2015, %v1999
      %v2048 = vsel %vm403, %v2016, %v2000
      %v2049 = vsel %vm369, 0.0, %v2033
      %v2050 = vsel %vm370, 0.0, %v2017
      %v2051 = vsel %vm369, 0.0, %v2034
      %v2052 = vsel %vm370, 0.0, %v2018
      %v2053 = vsel %vm369, 0.0, %v2035
      %v2054 = vsel %vm370, 0.0, %v2019
      %v2055 = vsel %vm369, 0.0, %v2036
      %v2056 = vsel %vm370, 0.0, %v2020
      %v2057 = vsel %vm369, 0.0, %v2037
      %v2058 = vsel %vm370, 0.0, %v2021
      %v2059 = vsel %vm369, 0.0, %v2038
      %v2060 = vsel %vm370, 0.0, %v2022
      %v2061 = vsel %vm369, 0.0, %v2039
      %v2062 = vsel %vm370, 0.0, %v2023
      %v2063 = vsel %vm369, 0.0, %v2040
      %v2064 = vsel %vm370, 0.0, %v2024
      %v2065 = vsel %vm369, 0.0, %v2041
      %v2066 = vsel %vm370, 0.0, %v2025
      %v2067 = vsel %vm369, 0.0, %v2042
      %v2068 = vsel %vm370, 0.0, %v2026
      %v2069 = vsel %vm369, 0.0, %v2043
      %v2070 = vsel %vm370, 0.0, %v2027
      %v2071 = vsel %vm369, 0.0, %v2044
      %v2072 = vsel %vm370, 0.0, %v2028
      %v2073 = vsel %vm369, 0.0, %v2045
      %v2074 = vsel %vm370, 0.0, %v2029
      %v2075 = vsel %vm369, 0.0, %v2046
      %v2076 = vsel %vm370, 0.0, %v2030
      %v2077 = vsel %vm369, 0.0, %v2047
      %v2078 = vsel %vm370, 0.0, %v2031
      %v2079 = vsel %vm369, 0.0, %v2048
      %v2080 = vsel %vm370, 0.0, %v2032
      %v2081 = vrot.slane %v1953, 1
      %v2082 = vrot.slane %v1955, 1
      %v2083 = vrot.slane %v1957, 1
      %v2084 = vrot.slane %v1959, 1
      %v2085 = vrot.slane %v1961, 1
      %v2086 = vrot.slane %v1963, 1
      %v2087 = vrot.slane %v1965, 1
      %v2088 = vrot.slane %v1967, 1
      %v2089 = vrot.slane %v1969, 1
      %v2090 = vrot.slane %v1971, 1
      %v2091 = vrot.slane %v1973, 1
      %v2092 = vrot.slane %v1975, 1
      %v2093 = vrot.slane %v1977, 1
      %v2094 = vrot.slane %v1979, 1
      %v2095 = vrot.slane %v1981, 1
      %v2096 = vrot.slane %v1983, 1
      %v2097 = vrot.slane %v1954, 1
      %v2098 = vrot.slane %v1956, 1
      %v2099 = vrot.slane %v1958, 1
      %v2100 = vrot.slane %v1960, 1
      %v2101 = vrot.slane %v1962, 1
      %v2102 = vrot.slane %v1964, 1
      %v2103 = vrot.slane %v1966, 1
      %v2104 = vrot.slane %v1968, 1
      %v2105 = vrot.slane %v1970, 1
      %v2106 = vrot.slane %v1972, 1
      %v2107 = vrot.slane %v1974, 1
      %v2108 = vrot.slane %v1976, 1
      %v2109 = vrot.slane %v1978, 1
      %v2110 = vrot.slane %v1980, 1
      %v2111 = vrot.slane %v1982, 1
      %v2112 = vrot.slane %v1984, 1
      %v2113 = vsel %vm504, %v2081, %v2097
      %v2114 = vsel %vm504, %v2082, %v2098
      %v2115 = vsel %vm504, %v2083, %v2099
      %v2116 = vsel %vm504, %v2084, %v2100
      %v2117 = vsel %vm504, %v2085, %v2101
      %v2118 = vsel %vm504, %v2086, %v2102
      %v2119 = vsel %vm504, %v2087, %v2103
      %v2120 = vsel %vm504, %v2088, %v2104
      %v2121 = vsel %vm504, %v2089, %v2105
      %v2122 = vsel %vm504, %v2090, %v2106
      %v2123 = vsel %vm504, %v2091, %v2107
      %v2124 = vsel %vm504, %v2092, %v2108
      %v2125 = vsel %vm504, %v2093, %v2109
      %v2126 = vsel %vm504, %v2094, %v2110
      %v2127 = vsel %vm504, %v2095, %v2111
      %v2128 = vsel %vm504, %v2096, %v2112
      %v2129 = vsel %vm504, %v2097, %v2081
      %v2130 = vsel %vm504, %v2098, %v2082
      %v2131 = vsel %vm504, %v2099, %v2083
      %v2132 = vsel %vm504, %v2100, %v2084
      %v2133 = vsel %vm504, %v2101, %v2085
      %v2134 = vsel %vm504, %v2102, %v2086
      %v2135 = vsel %vm504, %v2103, %v2087
      %v2136 = vsel %vm504, %v2104, %v2088
      %v2137 = vsel %vm504, %v2105, %v2089
      %v2138 = vsel %vm504, %v2106, %v2090
      %v2139 = vsel %vm504, %v2107, %v2091
      %v2140 = vsel %vm504, %v2108, %v2092
      %v2141 = vsel %vm504, %v2109, %v2093
      %v2142 = vsel %vm504, %v2110, %v2094
      %v2143 = vsel %vm504, %v2111, %v2095
      %v2144 = vsel %vm504, %v2112, %v2096
      %v2145 = vsel %vm470, 0.0, %v2113
      %v2146 = vsel %vm471, 0.0, %v2129
      %v2147 = vsel %vm470, 0.0, %v2114
      %v2148 = vsel %vm471, 0.0, %v2130
      %v2149 = vsel %vm470, 0.0, %v2115
      %v2150 = vsel %vm471, 0.0, %v2131
      %v2151 = vsel %vm470, 0.0, %v2116
      %v2152 = vsel %vm471, 0.0, %v2132
      %v2153 = vsel %vm470, 0.0, %v2117
      %v2154 = vsel %vm471, 0.0, %v2133
      %v2155 = vsel %vm470, 0.0, %v2118
      %v2156 = vsel %vm471, 0.0, %v2134
      %v2157 = vsel %vm470, 0.0, %v2119
      %v2158 = vsel %vm471, 0.0, %v2135
      %v2159 = vsel %vm470, 0.0, %v2120
      %v2160 = vsel %vm471, 0.0, %v2136
      %v2161 = vsel %vm470, 0.0, %v2121
      %v2162 = vsel %vm471, 0.0, %v2137
      %v2163 = vsel %vm470, 0.0, %v2122
      %v2164 = vsel %vm471, 0.0, %v2138
      %v2165 = vsel %vm470, 0.0, %v2123
      %v2166 = vsel %vm471, 0.0, %v2139
      %v2167 = vsel %vm470, 0.0, %v2124
      %v2168 = vsel %vm471, 0.0, %v2140
      %v2169 = vsel %vm470, 0.0, %v2125
      %v2170 = vsel %vm471, 0.0, %v2141
      %v2171 = vsel %vm470, 0.0, %v2126
      %v2172 = vsel %vm471, 0.0, %v2142
      %v2173 = vsel %vm470, 0.0, %v2127
      %v2174 = vsel %vm471, 0.0, %v2143
      %v2175 = vsel %vm470, 0.0, %v2128
      %v2176 = vsel %vm471, 0.0, %v2144
      %2207 = vrot.lane.b32.xlu0 0.0, 64
      %v2208 = vpop.permute.xlu0 %2207
      %2209 = vrot.lane.b32.xlu0 %v1953, 64
      %v2210 = vpop.permute.xlu0 %2209
      %2211 = vrot.lane.b32.xlu0 %v1954, 64
      %v2212 = vpop.permute.xlu0 %2211
      %2213 = vrot.lane.b32.xlu0 %v1955, 64
      %v2214 = vpop.permute.xlu0 %2213
      %2215 = vrot.lane.b32.xlu0 %v1956, 64
      %v2216 = vpop.permute.xlu0 %2215
      %2217 = vrot.lane.b32.xlu0 %v1957, 64
      %v2218 = vpop.permute.xlu0 %2217
      %2219 = vrot.lane.b32.xlu0 %v1958, 64
      %v2220 = vpop.permute.xlu0 %2219
      %2221 = vrot.lane.b32.xlu0 %v1959, 64
      %v2222 = vpop.permute.xlu0 %2221
      %2223 = vrot.lane.b32.xlu0 %v1960, 64
      %v2224 = vpop.permute.xlu0 %2223
      %2225 = vrot.lane.b32.xlu0 %v1961, 64
      %v2226 = vpop.permute.xlu0 %2225
      %2227 = vrot.lane.b32.xlu0 %v1962, 64
      %v2228 = vpop.permute.xlu0 %2227
      %2229 = vrot.lane.b32.xlu0 %v1963, 64
      %v2230 = vpop.permute.xlu0 %2229
      %2231 = vrot.lane.b32.xlu0 %v1964, 64
      %v2232 = vpop.permute.xlu0 %2231
      %2233 = vrot.lane.b32.xlu0 %v1965, 64
      %v2234 = vpop.permute.xlu0 %2233
      %2235 = vrot.lane.b32.xlu0 %v1966, 64
      %v2236 = vpop.permute.xlu0 %2235
      %2237 = vrot.lane.b32.xlu0 %v1967, 64
      %v2238 = vpop.permute.xlu0 %2237
      %2239 = vrot.lane.b32.xlu0 %v1968, 64
      %v2240 = vpop.permute.xlu0 %2239
      %2241 = vrot.lane.b32.xlu0 %v1969, 64
      %v2242 = vpop.permute.xlu0 %2241
      %2243 = vrot.lane.b32.xlu0 %v1970, 64
      %v2244 = vpop.permute.xlu0 %2243
      %2245 = vrot.lane.b32.xlu0 %v1971, 64
      %v2246 = vpop.permute.xlu0 %2245
      %2247 = vrot.lane.b32.xlu0 %v1972, 64
      %v2248 = vpop.permute.xlu0 %2247
      %2249 = vrot.lane.b32.xlu0 %v1973, 64
      %v2250 = vpop.permute.xlu0 %2249
      %2251 = vrot.lane.b32.xlu0 %v1974, 64
      %v2252 = vpop.permute.xlu0 %2251
      %2253 = vrot.lane.b32.xlu0 %v1975, 64
      %v2254 = vpop.permute.xlu0 %2253
      %2255 = vrot.lane.b32.xlu0 %v1976, 64
      %v2256 = vpop.permute.xlu0 %2255
      %2257 = vrot.lane.b32.xlu0 %v1977, 64
      %v2258 = vpop.permute.xlu0 %2257
      %2259 = vrot.lane.b32.xlu0 %v1978, 64
      %v2260 = vpop.permute.xlu0 %2259
      %2261 = vrot.lane.b32.xlu0 %v1979, 64
      %v2262 = vpop.permute.xlu0 %2261
      %2263 = vrot.lane.b32.xlu0 %v1980, 64
      %v2264 = vpop.permute.xlu0 %2263
      %2265 = vrot.lane.b32.xlu0 %v1981, 64
      %v2266 = vpop.permute.xlu0 %2265
      %2267 = vrot.lane.b32.xlu0 %v1982, 64
      %v2268 = vpop.permute.xlu0 %2267
      %2332 = vrot.lane.b32.xlu0 %v2049, 64
      %v2333 = vpop.permute.xlu0 %2332
      %2334 = vrot.lane.b32.xlu0 %v2050, 64
      %v2335 = vpop.permute.xlu0 %2334
      %2336 = vrot.lane.b32.xlu0 %v2051, 64
      %v2337 = vpop.permute.xlu0 %2336
      %2338 = vrot.lane.b32.xlu0 %v2052, 64
      %v2339 = vpop.permute.xlu0 %2338
      %2340 = vrot.lane.b32.xlu0 %v2053, 64
      %v2341 = vpop.permute.xlu0 %2340
      %2342 = vrot.lane.b32.xlu0 %v2054, 64
      %v2343 = vpop.permute.xlu0 %2342
      %2344 = vrot.lane.b32.xlu0 %v2055, 64
      %v2345 = vpop.permute.xlu0 %2344
      %2346 = vrot.lane.b32.xlu0 %v2056, 64
      %v2347 = vpop.permute.xlu0 %2346
      %2348 = vrot.lane.b32.xlu0 %v2057, 64
      %v2349 = vpop.permute.xlu0 %2348
      %2350 = vrot.lane.b32.xlu0 %v2058, 64
      %v2351 = vpop.permute.xlu0 %2350
      %2352 = vrot.lane.b32.xlu0 %v2059, 64
      %v2353 = vpop.permute.xlu0 %2352
      %2354 = vrot.lane.b32.xlu0 %v2060, 64
      %v2355 = vpop.permute.xlu0 %2354
      %2356 = vrot.lane.b32.xlu0 %v2061, 64
      %v2357 = vpop.permute.xlu0 %2356
      %2358 = vrot.lane.b32.xlu0 %v2062, 64
      %v2359 = vpop.permute.xlu0 %2358
      %2360 = vrot.lane.b32.xlu0 %v2063, 64
      %v2361 = vpop.permute.xlu0 %2360
      %2362 = vrot.lane.b32.xlu0 %v2064, 64
      %v2363 = vpop.permute.xlu0 %2362
      %2364 = vrot.lane.b32.xlu0 %v2065, 64
      %v2365 = vpop.permute.xlu0 %2364
      %2366 = vrot.lane.b32.xlu0 %v2066, 64
      %v2367 = vpop.permute.xlu0 %2366
      %2368 = vrot.lane.b32.xlu0 %v2067, 64
      %v2369 = vpop.permute.xlu0 %2368
      %2370 = vrot.lane.b32.xlu0 %v2068, 64
      %v2371 = vpop.permute.xlu0 %2370
      %2372 = vrot.lane.b32.xlu0 %v2069, 64
      %v2373 = vpop.permute.xlu0 %2372
      %2374 = vrot.lane.b32.xlu0 %v2070, 64
      %v2375 = vpop.permute.xlu0 %2374
      %2376 = vrot.lane.b32.xlu0 %v2071, 64
      %v2377 = vpop.permute.xlu0 %2376
      %2378 = vrot.lane.b32.xlu0 %v2072, 64
      %v2379 = vpop.permute.xlu0 %2378
      %2380 = vrot.lane.b32.xlu0 %v2073, 64
      %v2381 = vpop.permute.xlu0 %2380
      %2382 = vrot.lane.b32.xlu0 %v2074, 64
      %v2383 = vpop.permute.xlu0 %2382
      %2384 = vrot.lane.b32.xlu0 %v2075, 64
      %v2385 = vpop.permute.xlu0 %2384
      %2386 = vrot.lane.b32.xlu0 %v2076, 64
      %v2387 = vpop.permute.xlu0 %2386
      %2388 = vrot.lane.b32.xlu0 %v2077, 64
      %v2389 = vpop.permute.xlu0 %2388
      %2390 = vrot.lane.b32.xlu0 %v2078, 64
      %v2391 = vpop.permute.xlu0 %2390
      %2392 = vrot.lane.b32.xlu0 %v2079, 64
      %v2393 = vpop.permute.xlu0 %2392
      %2394 = vrot.lane.b32.xlu0 %v2080, 64
      %v2395 = vpop.permute.xlu0 %2394
      %2460 = vrot.lane.b32.xlu0 %v2145, 64
      %v2461 = vpop.permute.xlu0 %2460
      %2462 = vrot.lane.b32.xlu0 %v2146, 64
      %v2463 = vpop.permute.xlu0 %2462
      %2464 = vrot.lane.b32.xlu0 %v2147, 64
      %v2465 = vpop.permute.xlu0 %2464
      %2466 = vrot.lane.b32.xlu0 %v2148, 64
      %v2467 = vpop.permute.xlu0 %2466
      %2468 = vrot.lane.b32.xlu0 %v2149, 64
      %v2469 = vpop.permute.xlu0 %2468
      %2470 = vrot.lane.b32.xlu0 %v2150, 64
      %v2471 = vpop.permute.xlu0 %2470
      %2472 = vrot.lane.b32.xlu0 %v2151, 64
      %v2473 = vpop.permute.xlu0 %2472
      %2474 = vrot.lane.b32.xlu0 %v2152, 64
      %v2475 = vpop.permute.xlu0 %2474
      %2476 = vrot.lane.b32.xlu0 %v2153, 64
      %v2477 = vpop.permute.xlu0 %2476
      %2478 = vrot.lane.b32.xlu0 %v2154, 64
      %v2479 = vpop.permute.xlu0 %2478
      %2480 = vrot.lane.b32.xlu0 %v2155, 64
      %v2481 = vpop.permute.xlu0 %2480
      %2482 = vrot.lane.b32.xlu0 %v2156, 64
      %v2483 = vpop.permute.xlu0 %2482
      %2484 = vrot.lane.b32.xlu0 %v2157, 64
      %v2485 = vpop.permute.xlu0 %2484
      %2486 = vrot.lane.b32.xlu0 %v2158, 64
      %v2487 = vpop.permute.xlu0 %2486
      %2488 = vrot.lane.b32.xlu0 %v2159, 64
      %v2489 = vpop.permute.xlu0 %2488
      %2490 = vrot.lane.b32.xlu0 %v2160, 64
      %v2491 = vpop.permute.xlu0 %2490
      %2492 = vrot.lane.b32.xlu0 %v2161, 64
      %v2493 = vpop.permute.xlu0 %2492
      %2494 = vrot.lane.b32.xlu0 %v2162, 64
      %v2495 = vpop.permute.xlu0 %2494
      %2496 = vrot.lane.b32.xlu0 %v2163, 64
      %v2497 = vpop.permute.xlu0 %2496
      %2498 = vrot.lane.b32.xlu0 %v2164, 64
      %v2499 = vpop.permute.xlu0 %2498
      %2500 = vrot.lane.b32.xlu0 %v2165, 64
      %v2501 = vpop.permute.xlu0 %2500
      %2502 = vrot.lane.b32.xlu0 %v2166, 64
      %v2503 = vpop.permute.xlu0 %2502
      %2504 = vrot.lane.b32.xlu0 %v2167, 64
      %v2505 = vpop.permute.xlu0 %2504
      %2506 = vrot.lane.b32.xlu0 %v2168, 64
      %v2507 = vpop.permute.xlu0 %2506
      %2508 = vrot.lane.b32.xlu0 %v2169, 64
      %v2509 = vpop.permute.xlu0 %2508
      %2510 = vrot.lane.b32.xlu0 %v2170, 64
      %v2511 = vpop.permute.xlu0 %2510
      %2512 = vrot.lane.b32.xlu0 %v2171, 64
      %v2513 = vpop.permute.xlu0 %2512
      %2514 = vrot.lane.b32.xlu0 %v2172, 64
      %v2515 = vpop.permute.xlu0 %2514
      %2516 = vrot.lane.b32.xlu0 %v2173, 64
      %v2517 = vpop.permute.xlu0 %2516
      %2518 = vrot.lane.b32.xlu0 %v2174, 64
      %v2519 = vpop.permute.xlu0 %2518
      %2520 = vrot.lane.b32.xlu0 %v2175, 64
      %v2521 = vpop.permute.xlu0 %2520
      %2522 = vrot.lane.b32.xlu0 %v2176, 64
      %v2523 = vpop.permute.xlu0 %2522
      %2558 = vrot.lane.b32.xlu0 %v1983, 64
      %v2559 = vpop.permute.xlu0 %2558
      %2560 = vrot.lane.b32.xlu0 %v1984, 64
      %v2561 = vpop.permute.xlu0 %2560
      %vm2564 = vcmask 523264
      %v2565 = vsel %vm2564, %v436, %v2208
      %v2566 = vsel %vm2564, %v437, %v2208
      %v2567 = vsel %vm2564, %v2049, %v2210
      %v2568 = vsel %vm2564, %v2050, %v2212
      %v2569 = vsel %vm2564, %v2051, %v2214
      %v2570 = vsel %vm2564, %v2052, %v2216
      %v2571 = vsel %vm2564, %v2053, %v2218
      %v2572 = vsel %vm2564, %v2054, %v2220
      %v2573 = vsel %vm2564, %v2055, %v2222
      %v2574 = vsel %vm2564, %v2056, %v2224
      %v2575 = vsel %vm2564, %v2057, %v2226
      %v2576 = vsel %vm2564, %v2058, %v2228
      %v2577 = vsel %vm2564, %v2059, %v2230
      %v2578 = vsel %vm2564, %v2060, %v2232
      %v2579 = vsel %vm2564, %v2061, %v2234
      %v2580 = vsel %vm2564, %v2062, %v2236
      %v2581 = vsel %vm2564, %v2063, %v2238
      %v2582 = vsel %vm2564, %v2064, %v2240
      %v2583 = vsel %vm2564, %v2065, %v2242
      %v2584 = vsel %vm2564, %v2066, %v2244
      %v2585 = vsel %vm2564, %v2067, %v2246
      %v2586 = vsel %vm2564, %v2068, %v2248
      %v2587 = vsel %vm2564, %v2069, %v2250
      %v2588 = vsel %vm2564, %v2070, %v2252
      %v2589 = vsel %vm2564, %v2071, %v2254
      %v2590 = vsel %vm2564, %v2072, %v2256
      %v2591 = vsel %vm2564, %v2073, %v2258
      %v2592 = vsel %vm2564, %v2074, %v2260
      %v2593 = vsel %vm2564, %v2075, %v2262
      %v2594 = vsel %vm2564, %v2076, %v2264
      %v2595 = vsel %vm2564, %v2077, %v2266
      %v2596 = vsel %vm2564, %v2078, %v2268
      %v2597 = vsel %vm2564, %v537, %v2333
      %v2598 = vsel %vm2564, %v538, %v2335
      %v2599 = vsel %vm2564, %v2145, %v2337
      %v2600 = vsel %vm2564, %v2146, %v2339
      %v2601 = vsel %vm2564, %v2147, %v2341
      %v2602 = vsel %vm2564, %v2148, %v2343
      %v2603 = vsel %vm2564, %v2149, %v2345
      %v2604 = vsel %vm2564, %v2150, %v2347
      %v2605 = vsel %vm2564, %v2151, %v2349
      %v2606 = vsel %vm2564, %v2152, %v2351
      %v2607 = vsel %vm2564, %v2153, %v2353
      %v2608 = vsel %vm2564, %v2154, %v2355
      %v2609 = vsel %vm2564, %v2155, %v2357
      %v2610 = vsel %vm2564, %v2156, %v2359
      %v2611 = vsel %vm2564, %v2157, %v2361
      %v2612 = vsel %vm2564, %v2158, %v2363
      %v2613 = vsel %vm2564, %v2159, %v2365
      %v2614 = vsel %vm2564, %v2160, %v2367
      %v2615 = vsel %vm2564, %v2161, %v2369
      %v2616 = vsel %vm2564, %v2162, %v2371
      %v2617 = vsel %vm2564, %v2163, %v2373
      %v2618 = vsel %vm2564, %v2164, %v2375
      %v2619 = vsel %vm2564, %v2165, %v2377
      %v2620 = vsel %vm2564, %v2166, %v2379
      %v2621 = vsel %vm2564, %v2167, %v2381
      %v2622 = vsel %vm2564, %v2168, %v2383
      %v2623 = vsel %vm2564, %v2169, %v2385
      %v2624 = vsel %vm2564, %v2170, %v2387
      %v2625 = vsel %vm2564, %v2171, %v2389
      %v2626 = vsel %vm2564, %v2172, %v2391
      %v2627 = vsel %vm2564, %v2173, %v2393
      %v2628 = vsel %vm2564, %v2174, %v2395
      %v2629 = vsel %vm2564, %v1953, %v2461
      %v2630 = vsel %vm2564, %v1954, %v2463
      %v2631 = vsel %vm2564, %v1955, %v2465
      %v2632 = vsel %vm2564, %v1956, %v2467
      %v2633 = vsel %vm2564, %v1957, %v2469
      %v2634 = vsel %vm2564, %v1958, %v2471
      %v2635 = vsel %vm2564, %v1959, %v2473
      %v2636 = vsel %vm2564, %v1960, %v2475
      %v2637 = vsel %vm2564, %v1961, %v2477
      %v2638 = vsel %vm2564, %v1962, %v2479
      %v2639 = vsel %vm2564, %v1963, %v2481
      %v2640 = vsel %vm2564, %v1964, %v2483
      %v2641 = vsel %vm2564, %v1965, %v2485
      %v2642 = vsel %vm2564, %v1966, %v2487
      %v2643 = vsel %vm2564, %v1967, %v2489
      %v2644 = vsel %vm2564, %v1968, %v2491
      %v2645 = vsel %vm2564, %v1969, %v2493
      %v2646 = vsel %vm2564, %v1970, %v2495
      %v2647 = vsel %vm2564, %v1971, %v2497
      %v2648 = vsel %vm2564, %v1972, %v2499
      %v2649 = vsel %vm2564, %v1973, %v2501
      %v2650 = vsel %vm2564, %v1974, %v2503
      %v2651 = vsel %vm2564, %v1975, %v2505
      %v2652 = vsel %vm2564, %v1976, %v2507
      %v2653 = vsel %vm2564, %v1977, %v2509
      %v2654 = vsel %vm2564, %v1978, %v2511
      %v2655 = vsel %vm2564, %v1979, %v2513
      %v2656 = vsel %vm2564, %v1980, %v2515
      %v2657 = vsel %vm2564, %v1981, %v2517
      %v2658 = vsel %vm2564, %v1982, %v2519
      %v2659 = vsel %vm2564, %v1983, %v2521
      %v2660 = vsel %vm2564, %v1984, %v2523
      %v2661 = vsel %vm2564, %v2079, %v2559
      %v2662 = vsel %vm2564, %v2080, %v2561
      %v2663 = vpack.c.bf16 %v2566, %v2565
      %v2664 = vpack.c.bf16 %v2598, %v2597
      %v2665 = vpack.c.bf16 %v2630, %v2629
      %v2666 = vpack.c.bf16 %v2570, %v2569
      %v2667 = vpack.c.bf16 %v2148, %v2147
      %v2668 = vpack.c.bf16 %v2568, %v2567
      %v2669 = vpack.c.bf16 %v2600, %v2599
      %v2670 = vpack.c.bf16 %v2632, %v2631
      %v2671 = vpack.c.bf16 %v2572, %v2571
      %v2672 = vpack.c.bf16 %v2150, %v2149
      %v2673 = vpack.c.bf16 %v2602, %v2601
      %v2674 = vpack.c.bf16 %v2634, %v2633
      %v2675 = vpack.c.bf16 %v2574, %v2573
      %v2676 = vpack.c.bf16 %v2152, %v2151
      %v2677 = vpack.c.bf16 %v2604, %v2603
      %v2678 = vpack.c.bf16 %v2636, %v2635
      %v2679 = vpack.c.bf16 %v2576, %v2575
      %v2680 = vpack.c.bf16 %v2154, %v2153
      %v2681 = vpack.c.bf16 %v2606, %v2605
      %v2682 = vpack.c.bf16 %v2638, %v2637
      %v2683 = vpack.c.bf16 %v2578, %v2577
      %v2684 = vpack.c.bf16 %v2156, %v2155
      %v2685 = vpack.c.bf16 %v2608, %v2607
      %v2686 = vpack.c.bf16 %v2640, %v2639
      %v2687 = vpack.c.bf16 %v2580, %v2579
      %v2688 = vpack.c.bf16 %v2158, %v2157
      %v2689 = vpack.c.bf16 %v2610, %v2609
      %v2690 = vpack.c.bf16 %v2642, %v2641
      %v2691 = vpack.c.bf16 %v2582, %v2581
      %v2692 = vpack.c.bf16 %v2160, %v2159
      %v2693 = vpack.c.bf16 %v2612, %v2611
      %v2694 = vpack.c.bf16 %v2644, %v2643
      %v2695 = vpack.c.bf16 %v2584, %v2583
      %v2696 = vpack.c.bf16 %v2162, %v2161
      %v2697 = vpack.c.bf16 %v2614, %v2613
      %v2698 = vpack.c.bf16 %v2646, %v2645
      %v2699 = vpack.c.bf16 %v2586, %v2585
      %v2700 = vpack.c.bf16 %v2164, %v2163
      %v2701 = vpack.c.bf16 %v2616, %v2615
      %v2702 = vpack.c.bf16 %v2648, %v2647
      %v2703 = vpack.c.bf16 %v2588, %v2587
      %v2704 = vpack.c.bf16 %v2166, %v2165
      %v2705 = vpack.c.bf16 %v2618, %v2617
      %v2706 = vpack.c.bf16 %v2650, %v2649
      %v2707 = vpack.c.bf16 %v2590, %v2589
      %v2708 = vpack.c.bf16 %v2168, %v2167
      %v2709 = vpack.c.bf16 %v2620, %v2619
      %v2710 = vpack.c.bf16 %v2652, %v2651
      %v2711 = vpack.c.bf16 %v2592, %v2591
      %v2712 = vpack.c.bf16 %v2170, %v2169
      %v2713 = vpack.c.bf16 %v2622, %v2621
      %v2714 = vpack.c.bf16 %v2654, %v2653
      %v2715 = vpack.c.bf16 %v2594, %v2593
      %v2716 = vpack.c.bf16 %v2172, %v2171
      %v2717 = vpack.c.bf16 %v2624, %v2623
      %v2718 = vpack.c.bf16 %v2656, %v2655
      %v2719 = vpack.c.bf16 %v2596, %v2595
      %v2720 = vpack.c.bf16 %v2174, %v2173
      %v2721 = vpack.c.bf16 %v2626, %v2625
      %v2722 = vpack.c.bf16 %v2658, %v2657
      %v2723 = vpack.c.bf16 %v2662, %v2661
      %v2724 = vpack.c.bf16 %v2176, %v2175
      %v2725 = vpack.c.bf16 %v2628, %v2627
      %v2726 = vpack.c.bf16 %v2660, %v2659
      %v2727 = vpack.c.bf16 %v538, %v537
      %v2728 = vld [vmem:[%s3] sm:$0xf]
      %v2729 = vld [vmem:[%s3 + $0x4] sm:$0xf]
      %v2730 = vld [vmem:[%s3 + $0x8] sm:$0xf]
      %v2731 = vld [vmem:[%s3 + $0xc] sm:$0xf]
      %v2732 = vld [vmem:[%s3 + $0x10] sm:$0xf]
      %v2733 = vld [vmem:[%s3 + $0x14] sm:$0xf]
      %v2734 = vld [vmem:[%s3 + $0x18] sm:$0xf]
      %v2735 = vld [vmem:[%s3 + $0x1c] sm:$0xf]
      %v2736 = vld [vmem:[%s3 + $0x20] sm:$0xf]
      %v2737 = vld [vmem:[%s3 + $0x24] sm:$0xf]
      %v2738 = vld [vmem:[%s3 + $0x28] sm:$0xf]
      %v2739 = vld [vmem:[%s3 + $0x2c] sm:$0xf]
      %v2740 = vld [vmem:[%s3 + $0x30] sm:$0xf]
      %v2741 = vld [vmem:[%s3 + $0x34] sm:$0xf]
      %v2742 = vld [vmem:[%s3 + $0x38] sm:$0xf]
      %v2743 = vld [vmem:[%s3 + $0x3c] sm:$0xf]
      %v2744 = vld [vmem:[%s3 + $0x40] sm:$0xf]
      %v2745 = vld [vmem:[%s3 + $0x44] sm:$0xf]
      %v2746 = vld [vmem:[%s3 + $0x48] sm:$0xf]
      %v2747 = vld [vmem:[%s3 + $0x4c] sm:$0xf]
      %v2748 = vld [vmem:[%s3 + $0x50] sm:$0xf]
      %v2749 = vld [vmem:[%s3 + $0x54] sm:$0xf]
      %v2750 = vld [vmem:[%s3 + $0x58] sm:$0xf]
      %v2751 = vld [vmem:[%s3 + $0x5c] sm:$0xf]
      %v2752 = vld [vmem:[%s3 + $0x60] sm:$0xf]
      %v2753 = vld [vmem:[%s3 + $0x64] sm:$0xf]
      %v2754 = vld [vmem:[%s3 + $0x68] sm:$0xf]
      %v2755 = vld [vmem:[%s3 + $0x6c] sm:$0xf]
      %v2756 = vld [vmem:[%s3 + $0x70] sm:$0xf]
      %v2757 = vld [vmem:[%s3 + $0x74] sm:$0xf]
      %v2758 = vld [vmem:[%s3 + $0x78] sm:$0xf]
      %v2759 = vld [vmem:[%s3 + $0x7c] sm:$0xf]
      %v2760 = vld [vmem:[%s3 + $0x80] sm:$0xf]
      %v2761 = vld [vmem:[%s3 + $0x84] sm:$0xf]
      %v2762 = vld [vmem:[%s3 + $0x88] sm:$0xf]
      %v2763 = vld [vmem:[%s3 + $0x8c] sm:$0xf]
      %v2764 = vld [vmem:[%s3 + $0x90] sm:$0xf]
      %v2765 = vld [vmem:[%s3 + $0x94] sm:$0xf]
      %v2766 = vld [vmem:[%s3 + $0x98] sm:$0xf]
      %v2767 = vld [vmem:[%s3 + $0x9c] sm:$0xf]
      %v2768 = vld [vmem:[%s3 + $0xa0] sm:$0xf]
      %v2769 = vld [vmem:[%s3 + $0xa4] sm:$0xf]
      %v2770 = vld [vmem:[%s3 + $0xa8] sm:$0xf]
      %v2771 = vld [vmem:[%s3 + $0xac] sm:$0xf]
      %v2772 = vld [vmem:[%s3 + $0xb0] sm:$0xf]
      %v2773 = vld [vmem:[%s3 + $0xb4] sm:$0xf]
      %v2774 = vld [vmem:[%s3 + $0xb8] sm:$0xf]
      %v2775 = vld [vmem:[%s3 + $0xbc] sm:$0xf]
      %v2776 = vld [vmem:[%s3 + $0xc0] sm:$0xf]
      %v2777 = vld [vmem:[%s3 + $0xc4] sm:$0xf]
      %v2778 = vld [vmem:[%s3 + $0xc8] sm:$0xf]
      %v2779 = vld [vmem:[%s3 + $0xcc] sm:$0xf]
      %v2780 = vld [vmem:[%s3 + $0xd0] sm:$0xf]
      %v2781 = vld [vmem:[%s3 + $0xd4] sm:$0xf]
      %v2782 = vld [vmem:[%s3 + $0xd8] sm:$0xf]
      %v2783 = vld [vmem:[%s3 + $0xdc] sm:$0xf]
      %v2784 = vld [vmem:[%s3 + $0xe0] sm:$0xf]
      %v2785 = vld [vmem:[%s3 + $0xe4] sm:$0xf]
      %v2786 = vld [vmem:[%s3 + $0xe8] sm:$0xf]
      %v2787 = vld [vmem:[%s3 + $0xec] sm:$0xf]
      %v2788 = vld [vmem:[%s3 + $0xf0] sm:$0xf]
      %v2789 = vld [vmem:[%s3 + $0xf4] sm:$0xf]
      %v2790 = vld [vmem:[%s3 + $0xf8] sm:$0xf]
      %v2791 = vld [vmem:[%s3 + $0xfc] sm:$0xf]
      %v2792 = vld [vmem:[%s3 + $0x100] sm:$0xf]
      %v2793 = vld [vmem:[%s3 + $0x104] sm:$0xf]
      %v2794 = vld [vmem:[%s3 + $0x108] sm:$0xf]
      %v2795 = vld [vmem:[%s3 + $0x10c] sm:$0xf]
      %v2796 = vld [vmem:[%s3 + $0x110] sm:$0xf]
      %v2797 = vld [vmem:[%s3 + $0x114] sm:$0xf]
      %v2798 = vld [vmem:[%s3 + $0x118] sm:$0xf]
      %v2799 = vld [vmem:[%s3 + $0x11c] sm:$0xf]
      %v2800 = vld [vmem:[%s4] sm:$0x1]
      %v2802 = vlaneseq
      %v2803 = vshrl.u32 %v2802, 7
      %v2804 = vsub.s32 0, %v2803
      %v2805 = vrot.slane %v2800, %v2804
      %v2879 = vunpack.c.l.b16 %v2728
      %v2880 = vunpack.c.l.b16 %v2729
      %v2881 = vunpack.c.l.b16 %v2730
      %v2882 = vunpack.c.l.b16 %v2731
      %v2883 = vunpack.c.l.b16 %v2732
      %v2884 = vunpack.c.l.b16 %v2733
      %v2885 = vunpack.c.l.b16 %v2734
      %v2886 = vunpack.c.l.b16 %v2735
      %v2887 = vunpack.c.l.b16 %v2736
      %v2888 = vunpack.c.l.b16 %v2737
      %v2889 = vunpack.c.l.b16 %v2738
      %v2890 = vunpack.c.l.b16 %v2739
      %v2891 = vunpack.c.l.b16 %v2740
      %v2892 = vunpack.c.l.b16 %v2741
      %v2893 = vunpack.c.l.b16 %v2742
      %v2894 = vunpack.c.l.b16 %v2743
      %v2895 = vunpack.c.l.b16 %v2744
      %v2896 = vunpack.c.l.b16 %v2745
      %v2897 = vunpack.c.l.b16 %v2746
      %v2898 = vunpack.c.l.b16 %v2747
      %v2899 = vunpack.c.l.b16 %v2748
      %v2900 = vunpack.c.l.b16 %v2749
      %v2901 = vunpack.c.l.b16 %v2750
      %v2902 = vunpack.c.l.b16 %v2751
      %v2903 = vunpack.c.l.b16 %v2752
      %v2904 = vunpack.c.l.b16 %v2753
      %v2905 = vunpack.c.l.b16 %v2754
      %v2906 = vunpack.c.l.b16 %v2755
      %v2907 = vunpack.c.l.b16 %v2756
      %v2908 = vunpack.c.l.b16 %v2757
      %v2909 = vunpack.c.l.b16 %v2758
      %v2910 = vunpack.c.l.b16 %v2759
      %v2911 = vunpack.c.l.b16 %v2760
      %v2912 = vunpack.c.l.b16 %v2761
      %v2913 = vunpack.c.l.b16 %v2762
      %v2914 = vunpack.c.l.b16 %v2763
      %v2915 = vunpack.c.l.b16 %v2764
      %v2916 = vunpack.c.l.b16 %v2765
      %v2917 = vunpack.c.l.b16 %v2766
      %v2918 = vunpack.c.l.b16 %v2767
      %v2919 = vunpack.c.l.b16 %v2768
      %v2920 = vunpack.c.l.b16 %v2769
      %v2921 = vunpack.c.l.b16 %v2770
      %v2922 = vunpack.c.l.b16 %v2771
      %v2923 = vunpack.c.l.b16 %v2772
      %v2924 = vunpack.c.l.b16 %v2773
      %v2925 = vunpack.c.l.b16 %v2774
      %v2926 = vunpack.c.l.b16 %v2775
      %v2927 = vunpack.c.l.b16 %v2776
      %v2928 = vunpack.c.l.b16 %v2777
      %v2929 = vunpack.c.l.b16 %v2778
      %v2930 = vunpack.c.l.b16 %v2779
      %v2931 = vunpack.c.l.b16 %v2780
      %v2932 = vunpack.c.l.b16 %v2781
      %v2933 = vunpack.c.l.b16 %v2782
      %v2934 = vunpack.c.l.b16 %v2783
      %v2935 = vunpack.c.l.b16 %v2784
      %v2936 = vunpack.c.l.b16 %v2785
      %v2937 = vunpack.c.l.b16 %v2786
      %v2938 = vunpack.c.l.b16 %v2787
      %v2939 = vunpack.c.l.b16 %v2788
      %v2940 = vunpack.c.l.b16 %v2789
      %v2941 = vunpack.c.l.b16 %v2790
      %v2942 = vunpack.c.l.b16 %v2791
      %v2943 = vunpack.c.l.b16 %v2792
      %v2944 = vunpack.c.l.b16 %v2793
      %v2945 = vunpack.c.l.b16 %v2794
      %v2946 = vunpack.c.l.b16 %v2795
      %v2947 = vunpack.c.l.b16 %v2796
      %v2948 = vunpack.c.l.b16 %v2797
      %v2949 = vunpack.c.l.b16 %v2798
      %v2950 = vunpack.c.l.b16 %v2799
      %v2951 = vpack.c.b16 %v2880, %v2879
      %v2952 = vpack.c.b16 %v2882, %v2881
      %v2953 = vpack.c.b16 %v2884, %v2883
      %v2954 = vpack.c.b16 %v2886, %v2885
      %v2955 = vpack.c.b16 %v2888, %v2887
      %v2956 = vpack.c.b16 %v2890, %v2889
      %v2957 = vpack.c.b16 %v2892, %v2891
      %v2958 = vpack.c.b16 %v2894, %v2893
      %v2959 = vpack.c.b16 %v2896, %v2895
      %v2960 = vpack.c.b16 %v2898, %v2897
      %v2961 = vpack.c.b16 %v2900, %v2899
      %v2962 = vpack.c.b16 %v2902, %v2901
      %v2963 = vpack.c.b16 %v2904, %v2903
      %v2964 = vpack.c.b16 %v2906, %v2905
      %v2965 = vpack.c.b16 %v2908, %v2907
      %v2966 = vpack.c.b16 %v2910, %v2909
      %v2967 = vpack.c.b16 %v2912, %v2911
      %v2968 = vpack.c.b16 %v2914, %v2913
      %v2969 = vpack.c.b16 %v2916, %v2915
      %v2970 = vpack.c.b16 %v2918, %v2917
      %v2971 = vpack.c.b16 %v2920, %v2919
      %v2972 = vpack.c.b16 %v2922, %v2921
      %v2973 = vpack.c.b16 %v2924, %v2923
      %v2974 = vpack.c.b16 %v2926, %v2925
      %v2975 = vpack.c.b16 %v2928, %v2927
      %v2976 = vpack.c.b16 %v2930, %v2929
      %v2977 = vpack.c.b16 %v2932, %v2931
      %v2978 = vpack.c.b16 %v2934, %v2933
      %v2979 = vpack.c.b16 %v2936, %v2935
      %v2980 = vpack.c.b16 %v2938, %v2937
      %v2981 = vpack.c.b16 %v2940, %v2939
      %v2982 = vpack.c.b16 %v2942, %v2941
      %v2983 = vpack.c.b16 %v2944, %v2943
      %v2984 = vpack.c.b16 %v2946, %v2945
      %v2985 = vpack.c.b16 %v2948, %v2947
      %v2986 = vpack.c.b16 %v2950, %v2949
      %v3024 = vsel %vm2564, %v2667, 0
      %v3027 = vsel %vm2564, %v2672, 0
      %v3030 = vsel %vm2564, %v2676, 0
      %v3033 = vsel %vm2564, %v2680, 0
      %v3036 = vsel %vm2564, %v2684, 0
      %v3039 = vsel %vm2564, %v2688, 0
      %v3042 = vsel %vm2564, %v2692, 0
      %v3045 = vsel %vm2564, %v2696, 0
      %v3048 = vsel %vm2564, %v2700, 0
      %v3051 = vsel %vm2564, %v2704, 0
      %v3054 = vsel %vm2564, %v2708, 0
      %v3057 = vsel %vm2564, %v2712, 0
      %v3060 = vsel %vm2564, %v2716, 0
      %v3063 = vsel %vm2564, %v2720, 0
      %v3066 = vsel %vm2564, %v2724, 0
      %v3069 = vsel %vm2564, %v2727, 0
      %3071 = vmatprep.subr.bf16.mxu0 0
      %3072 = vmatpush1.bf16.msra.mxu0 %v2958
      %3073 = vmatprep.subr.bf16.mxu0 0
      %3074 = vmatpush1.bf16.msra.mxu0 %v2957
      %3075 = vmatprep.subr.bf16.mxu0 0
      %3076 = vmatpush1.bf16.msra.mxu0 %v2956
      %3077 = vmatprep.subr.bf16.mxu0 0
      %3078 = vmatpush1.bf16.msra.mxu0 %v2955
      %3079 = vmatprep.subr.bf16.mxu0 0
      %3080 = vmatpush1.bf16.msra.mxu0 %v2954
      %3081 = vmatprep.subr.bf16.mxu0 0
      %3082 = vmatpush1.bf16.msra.mxu0 %v2953
      %3083 = vmatprep.subr.bf16.mxu0 0
      %3084 = vmatpush1.bf16.msra.mxu0 %v2952
      %3085 = vmatprep.subr.bf16.mxu0 0
      %3086 = vmatpush1.bf16.msra.mxu0 %v2951
      %3087 = vmatprep.subr.bf16.mxu0 0
      %3088 = vmatpush2.bf16.msra.mxu0 %v2966
      %3089 = vmatprep.subr.bf16.mxu0 0
      %3090 = vmatpush2.bf16.msra.mxu0 %v2965
      %3091 = vmatprep.subr.bf16.mxu0 0
      %3092 = vmatpush2.bf16.msra.mxu0 %v2964
      %3093 = vmatprep.subr.bf16.mxu0 0
      %3094 = vmatpush2.bf16.msra.mxu0 %v2963
      %3095 = vmatprep.subr.bf16.mxu0 0
      %3096 = vmatpush2.bf16.msra.mxu0 %v2962
      %3097 = vmatprep.subr.bf16.mxu0 0
      %3098 = vmatpush2.bf16.msra.mxu0 %v2961
      %3099 = vmatprep.subr.bf16.mxu0 0
      %3100 = vmatpush2.bf16.msra.mxu0 %v2960
      %3101 = vmatprep.subr.bf16.mxu0 0
      %3102 = vmatpush2.bf16.msra.mxu0 %v2959
      %3103 = vmatprep.mubr.bf16.mxu0 %v2664
      %3104 = vmatmul.mubr.bf16.gmra.mxu0 %v2663
      %v3105 = vpop.f32.mrf.mxu0
      %v3106 = vadd.f32 %v2805, %v3105
      %v3107 = vpop.f32.mrf.mxu0
      %v3108 = vpop.f32.mrf.mxu0
      %v3109 = vadd.f32 %v2805, %v3108
      %v3110 = vpop.f32.mrf.mxu0
      %3111 = vmatprep.mubr.bf16.mxu0 %v2669
      %3112 = vmatmul.mubr.bf16.gmra.mxu0 %v2668
      %v3113 = vpop.f32.mrf.mxu0
      %v3114 = vadd.f32 %v2805, %v3113
      %v3115 = vpop.f32.mrf.mxu0
      %v3116 = vpop.f32.mrf.mxu0
      %v3117 = vadd.f32 %v2805, %v3116
      %v3118 = vpop.f32.mrf.mxu0
      %3119 = vmatprep.mubr.bf16.mxu0 %v2673
      %3120 = vmatmul.mubr.bf16.gmra.mxu0 %v2666
      %v3121 = vpop.f32.mrf.mxu0
      %v3122 = vadd.f32 %v2805, %v3121
      %v3123 = vpop.f32.mrf.mxu0
      %v3124 = vpop.f32.mrf.mxu0
      %v3125 = vadd.f32 %v2805, %v3124
      %v3126 = vpop.f32.mrf.mxu0
      %3127 = vmatprep.mubr.bf16.mxu0 %v2677
      %3128 = vmatmul.mubr.bf16.gmra.mxu0 %v2671
      %v3129 = vpop.f32.mrf.mxu0
      %v3130 = vadd.f32 %v2805, %v3129
      %v3131 = vpop.f32.mrf.mxu0
      %v3132 = vpop.f32.mrf.mxu0
      %v3133 = vadd.f32 %v2805, %v3132
      %v3134 = vpop.f32.mrf.mxu0
      %3135 = vmatprep.mubr.bf16.mxu0 %v2681
      %3136 = vmatmul.mubr.bf16.gmra.mxu0 %v2675
      %v3137 = vpop.f32.mrf.mxu0
      %v3138 = vadd.f32 %v2805, %v3137
      %v3139 = vpop.f32.mrf.mxu0
      %v3140 = vpop.f32.mrf.mxu0
      %v3141 = vadd.f32 %v2805, %v3140
      %v3142 = vpop.f32.mrf.mxu0
      %3143 = vmatprep.mubr.bf16.mxu0 %v2685
      %3144 = vmatmul.mubr.bf16.gmra.mxu0 %v2679
      %v3145 = vpop.f32.mrf.mxu0
      %v3146 = vadd.f32 %v2805, %v3145
      %v3147 = vpop.f32.mrf.mxu0
      %v3148 = vpop.f32.mrf.mxu0
      %v3149 = vadd.f32 %v2805, %v3148
      %v3150 = vpop.f32.mrf.mxu0
      %3151 = vmatprep.mubr.bf16.mxu0 %v2689
      %3152 = vmatmul.mubr.bf16.gmra.mxu0 %v2683
      %v3153 = vpop.f32.mrf.mxu0
      %v3154 = vadd.f32 %v2805, %v3153
      %v3155 = vpop.f32.mrf.mxu0
      %v3156 = vpop.f32.mrf.mxu0
      %v3157 = vadd.f32 %v2805, %v3156
      %v3158 = vpop.f32.mrf.mxu0
      %3159 = vmatprep.mubr.bf16.mxu0 %v2693
      %3160 = vmatmul.mubr.bf16.gmra.mxu0 %v2687
      %v3161 = vpop.f32.mrf.mxu0
      %v3162 = vadd.f32 %v2805, %v3161
      %v3163 = vpop.f32.mrf.mxu0
      %v3164 = vpop.f32.mrf.mxu0
      %v3165 = vadd.f32 %v2805, %v3164
      %v3166 = vpop.f32.mrf.mxu0
      %3167 = vmatprep.mubr.bf16.mxu0 %v2697
      %3168 = vmatmul.mubr.bf16.gmra.mxu0 %v2691
      %v3169 = vpop.f32.mrf.mxu0
      %v3170 = vadd.f32 %v2805, %v3169
      %v3171 = vpop.f32.mrf.mxu0
      %v3172 = vpop.f32.mrf.mxu0
      %v3173 = vadd.f32 %v2805, %v3172
      %v3174 = vpop.f32.mrf.mxu0
      %3175 = vmatprep.mubr.bf16.mxu0 %v2701
      %3176 = vmatmul.mubr.bf16.gmra.mxu0 %v2695
      %v3177 = vpop.f32.mrf.mxu0
      %v3178 = vadd.f32 %v2805, %v3177
      %v3179 = vpop.f32.mrf.mxu0
      %v3180 = vpop.f32.mrf.mxu0
      %v3181 = vadd.f32 %v2805, %v3180
      %v3182 = vpop.f32.mrf.mxu0
      %3183 = vmatprep.mubr.bf16.mxu0 %v2705
      %3184 = vmatmul.mubr.bf16.gmra.mxu0 %v2699
      %v3185 = vpop.f32.mrf.mxu0
      %v3186 = vadd.f32 %v2805, %v3185
      %v3187 = vpop.f32.mrf.mxu0
      %v3188 = vpop.f32.mrf.mxu0
      %v3189 = vadd.f32 %v2805, %v3188
      %v3190 = vpop.f32.mrf.mxu0
      %3191 = vmatprep.mubr.bf16.mxu0 %v2709
      %3192 = vmatmul.mubr.bf16.gmra.mxu0 %v2703
      %v3193 = vpop.f32.mrf.mxu0
      %v3194 = vadd.f32 %v2805, %v3193
      %v3195 = vpop.f32.mrf.mxu0
      %v3196 = vpop.f32.mrf.mxu0
      %v3197 = vadd.f32 %v2805, %v3196
      %v3198 = vpop.f32.mrf.mxu0
      %3199 = vmatprep.mubr.bf16.mxu0 %v2713
      %3200 = vmatmul.mubr.bf16.gmra.mxu0 %v2707
      %v3201 = vpop.f32.mrf.mxu0
      %v3202 = vadd.f32 %v2805, %v3201
      %v3203 = vpop.f32.mrf.mxu0
      %v3204 = vpop.f32.mrf.mxu0
      %v3205 = vadd.f32 %v2805, %v3204
      %v3206 = vpop.f32.mrf.mxu0
      %3207 = vmatprep.mubr.bf16.mxu0 %v2717
      %3208 = vmatmul.mubr.bf16.gmra.mxu0 %v2711
      %v3209 = vpop.f32.mrf.mxu0
      %v3210 = vadd.f32 %v2805, %v3209
      %v3211 = vpop.f32.mrf.mxu0
      %v3212 = vpop.f32.mrf.mxu0
      %v3213 = vadd.f32 %v2805, %v3212
      %v3214 = vpop.f32.mrf.mxu0
      %3215 = vmatprep.mubr.bf16.mxu0 %v2721
      %3216 = vmatmul.mubr.bf16.gmra.mxu0 %v2715
      %v3217 = vpop.f32.mrf.mxu0
      %v3218 = vadd.f32 %v2805, %v3217
      %v3219 = vpop.f32.mrf.mxu0
      %v3220 = vpop.f32.mrf.mxu0
      %v3221 = vadd.f32 %v2805, %v3220
      %v3222 = vpop.f32.mrf.mxu0
      %3223 = vmatprep.mubr.bf16.mxu0 %v2725
      %3224 = vmatmul.mubr.bf16.gmra.mxu0 %v2719
      %v3225 = vpop.f32.mrf.mxu0
      %v3226 = vadd.f32 %v2805, %v3225
      %v3227 = vpop.f32.mrf.mxu0
      %v3228 = vpop.f32.mrf.mxu0
      %v3229 = vadd.f32 %v2805, %v3228
      %v3230 = vpop.f32.mrf.mxu0
      %3231 = vdwg.mxu0
      %3232 = vmatprep.subr.bf16.mxu0 0
      %3233 = vmatpush1.bf16.msra.mxu0 %v2974
      %3234 = vmatprep.subr.bf16.mxu0 0
      %3235 = vmatpush1.bf16.msra.mxu0 %v2973
      %3236 = vmatprep.subr.bf16.mxu0 0
      %3237 = vmatpush1.bf16.msra.mxu0 %v2972
      %3238 = vmatprep.subr.bf16.mxu0 0
      %3239 = vmatpush1.bf16.msra.mxu0 %v2971
      %3240 = vmatprep.subr.bf16.mxu0 0
      %3241 = vmatpush1.bf16.msra.mxu0 %v2970
      %3242 = vmatprep.subr.bf16.mxu0 0
      %3243 = vmatpush1.bf16.msra.mxu0 %v2969
      %3244 = vmatprep.subr.bf16.mxu0 0
      %3245 = vmatpush1.bf16.msra.mxu0 %v2968
      %3246 = vmatprep.subr.bf16.mxu0 0
      %3247 = vmatpush1.bf16.msra.mxu0 %v2967
      %3248 = vmatprep.subr.bf16.mxu0 0
      %3249 = vmatpush2.bf16.msra.mxu0 %v2982
      %3250 = vmatprep.subr.bf16.mxu0 0
      %3251 = vmatpush2.bf16.msra.mxu0 %v2981
      %3252 = vmatprep.subr.bf16.mxu0 0
      %3253 = vmatpush2.bf16.msra.mxu0 %v2980
      %3254 = vmatprep.subr.bf16.mxu0 0
      %3255 = vmatpush2.bf16.msra.mxu0 %v2979
      %3256 = vmatprep.subr.bf16.mxu0 0
      %3257 = vmatpush2.bf16.msra.mxu0 %v2978
      %3258 = vmatprep.subr.bf16.mxu0 0
      %3259 = vmatpush2.bf16.msra.mxu0 %v2977
      %3260 = vmatprep.subr.bf16.mxu0 0
      %3261 = vmatpush2.bf16.msra.mxu0 %v2976
      %3262 = vmatprep.subr.bf16.mxu0 0
      %3263 = vmatpush2.bf16.msra.mxu0 %v2975
      %3264 = vmatprep.mubr.bf16.mxu0 %v2666
      %3265 = vmatmul.mubr.bf16.gmra.mxu0 %v2665
      %v3266 = vpop.f32.mrf.mxu0
      %v3267 = vadd.f32 %v3106, %v3266
      %v3268 = vpop.f32.mrf.mxu0
      %v3269 = vpop.f32.mrf.mxu0
      %v3270 = vadd.f32 %v3109, %v3269
      %v3271 = vpop.f32.mrf.mxu0
      %3272 = vmatprep.mubr.bf16.mxu0 %v2671
      %3273 = vmatmul.mubr.bf16.gmra.mxu0 %v2670
      %v3274 = vpop.f32.mrf.mxu0
      %v3275 = vadd.f32 %v3114, %v3274
      %v3276 = vpop.f32.mrf.mxu0
      %v3277 = vpop.f32.mrf.mxu0
      %v3278 = vadd.f32 %v3117, %v3277
      %v3279 = vpop.f32.mrf.mxu0
      %3280 = vmatprep.mubr.bf16.mxu0 %v2675
      %3281 = vmatmul.mubr.bf16.gmra.mxu0 %v2674
      %v3282 = vpop.f32.mrf.mxu0
      %v3283 = vadd.f32 %v3122, %v3282
      %v3284 = vpop.f32.mrf.mxu0
      %v3285 = vpop.f32.mrf.mxu0
      %v3286 = vadd.f32 %v3125, %v3285
      %v3287 = vpop.f32.mrf.mxu0
      %3288 = vmatprep.mubr.bf16.mxu0 %v2679
      %3289 = vmatmul.mubr.bf16.gmra.mxu0 %v2678
      %v3290 = vpop.f32.mrf.mxu0
      %v3291 = vadd.f32 %v3130, %v3290
      %v3292 = vpop.f32.mrf.mxu0
      %v3293 = vpop.f32.mrf.mxu0
      %v3294 = vadd.f32 %v3133, %v3293
      %v3295 = vpop.f32.mrf.mxu0
      %3296 = vmatprep.mubr.bf16.mxu0 %v2683
      %3297 = vmatmul.mubr.bf16.gmra.mxu0 %v2682
      %v3298 = vpop.f32.mrf.mxu0
      %v3299 = vadd.f32 %v3138, %v3298
      %v3300 = vpop.f32.mrf.mxu0
      %v3301 = vpop.f32.mrf.mxu0
      %v3302 = vadd.f32 %v3141, %v3301
      %v3303 = vpop.f32.mrf.mxu0
      %3304 = vmatprep.mubr.bf16.mxu0 %v2687
      %3305 = vmatmul.mubr.bf16.gmra.mxu0 %v2686
      %v3306 = vpop.f32.mrf.mxu0
      %v3307 = vadd.f32 %v3146, %v3306
      %v3308 = vpop.f32.mrf.mxu0
      %v3309 = vpop.f32.mrf.mxu0
      %v3310 = vadd.f32 %v3149, %v3309
      %v3311 = vpop.f32.mrf.mxu0
      %3312 = vmatprep.mubr.bf16.mxu0 %v2691
      %3313 = vmatmul.mubr.bf16.gmra.mxu0 %v2690
      %v3314 = vpop.f32.mrf.mxu0
      %v3315 = vadd.f32 %v3154, %v3314
      %v3316 = vpop.f32.mrf.mxu0
      %v3317 = vpop.f32.mrf.mxu0
      %v3318 = vadd.f32 %v3157, %v3317
      %v3319 = vpop.f32.mrf.mxu0
      %3320 = vmatprep.mubr.bf16.mxu0 %v2695
      %3321 = vmatmul.mubr.bf16.gmra.mxu0 %v2694
      %v3322 = vpop.f32.mrf.mxu0
      %v3323 = vadd.f32 %v3162, %v3322
      %v3324 = vpop.f32.mrf.mxu0
      %v3325 = vpop.f32.mrf.mxu0
      %v3326 = vadd.f32 %v3165, %v3325
      %v3327 = vpop.f32.mrf.mxu0
      %3328 = vmatprep.mubr.bf16.mxu0 %v2699
      %3329 = vmatmul.mubr.bf16.gmra.mxu0 %v2698
      %v3330 = vpop.f32.mrf.mxu0
      %v3331 = vadd.f32 %v3170, %v3330
      %v3332 = vpop.f32.mrf.mxu0
      %v3333 = vpop.f32.mrf.mxu0
      %v3334 = vadd.f32 %v3173, %v3333
      %v3335 = vpop.f32.mrf.mxu0
      %3336 = vmatprep.mubr.bf16.mxu0 %v2703
      %3337 = vmatmul.mubr.bf16.gmra.mxu0 %v2702
      %v3338 = vpop.f32.mrf.mxu0
      %v3339 = vadd.f32 %v3178, %v3338
      %v3340 = vpop.f32.mrf.mxu0
      %v3341 = vpop.f32.mrf.mxu0
      %v3342 = vadd.f32 %v3181, %v3341
      %v3343 = vpop.f32.mrf.mxu0
      %3344 = vmatprep.mubr.bf16.mxu0 %v2707
      %3345 = vmatmul.mubr.bf16.gmra.mxu0 %v2706
      %v3346 = vpop.f32.mrf.mxu0
      %v3347 = vadd.f32 %v3186, %v3346
      %v3348 = vpop.f32.mrf.mxu0
      %v3349 = vpop.f32.mrf.mxu0
      %v3350 = vadd.f32 %v3189, %v3349
      %v3351 = vpop.f32.mrf.mxu0
      %3352 = vmatprep.mubr.bf16.mxu0 %v2711
      %3353 = vmatmul.mubr.bf16.gmra.mxu0 %v2710
      %v3354 = vpop.f32.mrf.mxu0
      %v3355 = vadd.f32 %v3194, %v3354
      %v3356 = vpop.f32.mrf.mxu0
      %v3357 = vpop.f32.mrf.mxu0
      %v3358 = vadd.f32 %v3197, %v3357
      %v3359 = vpop.f32.mrf.mxu0
      %3360 = vmatprep.mubr.bf16.mxu0 %v2715
      %3361 = vmatmul.mubr.bf16.gmra.mxu0 %v2714
      %v3362 = vpop.f32.mrf.mxu0
      %v3363 = vadd.f32 %v3202, %v3362
      %v3364 = vpop.f32.mrf.mxu0
      %v3365 = vpop.f32.mrf.mxu0
      %v3366 = vadd.f32 %v3205, %v3365
      %v3367 = vpop.f32.mrf.mxu0
      %3368 = vmatprep.mubr.bf16.mxu0 %v2719
      %3369 = vmatmul.mubr.bf16.gmra.mxu0 %v2718
      %v3370 = vpop.f32.mrf.mxu0
      %v3371 = vadd.f32 %v3210, %v3370
      %v3372 = vpop.f32.mrf.mxu0
      %v3373 = vpop.f32.mrf.mxu0
      %v3374 = vadd.f32 %v3213, %v3373
      %v3375 = vpop.f32.mrf.mxu0
      %3376 = vmatprep.mubr.bf16.mxu0 %v2723
      %3377 = vmatmul.mubr.bf16.gmra.mxu0 %v2722
      %v3378 = vpop.f32.mrf.mxu0
      %v3379 = vadd.f32 %v3218, %v3378
      %v3380 = vpop.f32.mrf.mxu0
      %v3381 = vpop.f32.mrf.mxu0
      %v3382 = vadd.f32 %v3221, %v3381
      %v3383 = vpop.f32.mrf.mxu0
      %3384 = vmatprep.mubr.bf16.mxu0 %v2663
      %3385 = vmatmul.mubr.bf16.gmra.mxu0 %v2726
      %v3386 = vpop.f32.mrf.mxu0
      %v3387 = vadd.f32 %v3226, %v3386
      %v3388 = vpop.f32.mrf.mxu0
      %v3389 = vpop.f32.mrf.mxu0
      %v3390 = vadd.f32 %v3229, %v3389
      %v3391 = vpop.f32.mrf.mxu0
      %3392 = vdwg.mxu0
      %3393 = vmatprep.subr.bf16.mxu0 0
      %3394 = vmatpush1.bf16.msra.mxu0 0
      %3395 = vmatprep.subr.bf16.mxu0 0
      %3396 = vmatpush1.bf16.msra.mxu0 0
      %3397 = vmatprep.subr.bf16.mxu0 0
      %3398 = vmatpush1.bf16.msra.mxu0 0
      %3399 = vmatprep.subr.bf16.mxu0 0
      %3400 = vmatpush1.bf16.msra.mxu0 0
      %3401 = vmatprep.subr.bf16.mxu0 0
      %3402 = vmatpush1.bf16.msra.mxu0 %v2986
      %3403 = vmatprep.subr.bf16.mxu0 0
      %3404 = vmatpush1.bf16.msra.mxu0 %v2985
      %3405 = vmatprep.subr.bf16.mxu0 0
      %3406 = vmatpush1.bf16.msra.mxu0 %v2984
      %3407 = vmatprep.subr.bf16.mxu0 0
      %3408 = vmatpush1.bf16.msra.mxu0 %v2983
      %3409 = vmatprep.subr.bf16.mxu0 0
      %3410 = vmatpush2.bf16.msra.mxu0 0
      %3411 = vmatprep.subr.bf16.mxu0 0
      %3412 = vmatpush2.bf16.msra.mxu0 0
      %3413 = vmatprep.subr.bf16.mxu0 0
      %3414 = vmatpush2.bf16.msra.mxu0 0
      %3415 = vmatprep.subr.bf16.mxu0 0
      %3416 = vmatpush2.bf16.msra.mxu0 0
      %3417 = vmatprep.subr.bf16.mxu0 0
      %3418 = vmatpush2.bf16.msra.mxu0 0
      %3419 = vmatprep.subr.bf16.mxu0 0
      %3420 = vmatpush2.bf16.msra.mxu0 0
      %3421 = vmatprep.subr.bf16.mxu0 0
      %3422 = vmatpush2.bf16.msra.mxu0 0
      %3423 = vmatprep.subr.bf16.mxu0 0
      %3424 = vmatpush2.bf16.msra.mxu0 0
      %3425 = vmatprep.mubr.bf16.mxu0 0
      %3426 = vmatmul.mubr.bf16.gmra.mxu0 %v3024
      %v3427 = vpop.f32.mrf.mxu0
      %v3428 = vadd.f32 %v3267, %v3427
      %v3429 = vpop.f32.mrf.mxu0
      %v3430 = vpop.f32.mrf.mxu0
      %v3431 = vadd.f32 %v3270, %v3430
      %v3432 = vpop.f32.mrf.mxu0
      %3433 = vmatprep.mubr.bf16.mxu0 0
      %3434 = vmatmul.mubr.bf16.gmra.mxu0 %v3027
      %v3435 = vpop.f32.mrf.mxu0
      %v3436 = vadd.f32 %v3275, %v3435
      %v3437 = vpop.f32.mrf.mxu0
      %v3438 = vpop.f32.mrf.mxu0
      %v3439 = vadd.f32 %v3278, %v3438
      %v3440 = vpop.f32.mrf.mxu0
      %3441 = vmatprep.mubr.bf16.mxu0 0
      %3442 = vmatmul.mubr.bf16.gmra.mxu0 %v3030
      %v3443 = vpop.f32.mrf.mxu0
      %v3444 = vadd.f32 %v3283, %v3443
      %v3445 = vpop.f32.mrf.mxu0
      %v3446 = vpop.f32.mrf.mxu0
      %v3447 = vadd.f32 %v3286, %v3446
      %v3448 = vpop.f32.mrf.mxu0
      %3449 = vmatprep.mubr.bf16.mxu0 0
      %3450 = vmatmul.mubr.bf16.gmra.mxu0 %v3033
      %v3451 = vpop.f32.mrf.mxu0
      %v3452 = vadd.f32 %v3291, %v3451
      %v3453 = vpop.f32.mrf.mxu0
      %v3454 = vpop.f32.mrf.mxu0
      %v3455 = vadd.f32 %v3294, %v3454
      %v3456 = vpop.f32.mrf.mxu0
      %3457 = vmatprep.mubr.bf16.mxu0 0
      %3458 = vmatmul.mubr.bf16.gmra.mxu0 %v3036
      %v3459 = vpop.f32.mrf.mxu0
      %v3460 = vadd.f32 %v3299, %v3459
      %v3461 = vpop.f32.mrf.mxu0
      %v3462 = vpop.f32.mrf.mxu0
      %v3463 = vadd.f32 %v3302, %v3462
      %v3464 = vpop.f32.mrf.mxu0
      %3465 = vmatprep.mubr.bf16.mxu0 0
      %3466 = vmatmul.mubr.bf16.gmra.mxu0 %v3039
      %v3467 = vpop.f32.mrf.mxu0
      %v3468 = vadd.f32 %v3307, %v3467
      %v3469 = vpop.f32.mrf.mxu0
      %v3470 = vpop.f32.mrf.mxu0
      %v3471 = vadd.f32 %v3310, %v3470
      %v3472 = vpop.f32.mrf.mxu0
      %3473 = vmatprep.mubr.bf16.mxu0 0
      %3474 = vmatmul.mubr.bf16.gmra.mxu0 %v3042
      %v3475 = vpop.f32.mrf.mxu0
      %v3476 = vadd.f32 %v3315, %v3475
      %v3477 = vpop.f32.mrf.mxu0
      %v3478 = vpop.f32.mrf.mxu0
      %v3479 = vadd.f32 %v3318, %v3478
      %v3480 = vpop.f32.mrf.mxu0
      %3481 = vmatprep.mubr.bf16.mxu0 0
      %3482 = vmatmul.mubr.bf16.gmra.mxu0 %v3045
      %v3483 = vpop.f32.mrf.mxu0
      %v3484 = vadd.f32 %v3323, %v3483
      %v3485 = vpop.f32.mrf.mxu0
      %v3486 = vpop.f32.mrf.mxu0
      %v3487 = vadd.f32 %v3326, %v3486
      %v3488 = vpop.f32.mrf.mxu0
      %3489 = vmatprep.mubr.bf16.mxu0 0
      %3490 = vmatmul.mubr.bf16.gmra.mxu0 %v3048
      %v3491 = vpop.f32.mrf.mxu0
      %v3492 = vadd.f32 %v3331, %v3491
      %v3493 = vpop.f32.mrf.mxu0
      %v3494 = vpop.f32.mrf.mxu0
      %v3495 = vadd.f32 %v3334, %v3494
      %v3496 = vpop.f32.mrf.mxu0
      %3497 = vmatprep.mubr.bf16.mxu0 0
      %3498 = vmatmul.mubr.bf16.gmra.mxu0 %v3051
      %v3499 = vpop.f32.mrf.mxu0
      %v3500 = vadd.f32 %v3339, %v3499
      %v3501 = vpop.f32.mrf.mxu0
      %v3502 = vpop.f32.mrf.mxu0
      %v3503 = vadd.f32 %v3342, %v3502
      %v3504 = vpop.f32.mrf.mxu0
      %3505 = vmatprep.mubr.bf16.mxu0 0
      %3506 = vmatmul.mubr.bf16.gmra.mxu0 %v3054
      %v3507 = vpop.f32.mrf.mxu0
      %v3508 = vadd.f32 %v3347, %v3507
      %v3509 = vpop.f32.mrf.mxu0
      %v3510 = vpop.f32.mrf.mxu0
      %v3511 = vadd.f32 %v3350, %v3510
      %v3512 = vpop.f32.mrf.mxu0
      %3513 = vmatprep.mubr.bf16.mxu0 0
      %3514 = vmatmul.mubr.bf16.gmra.mxu0 %v3057
      %v3515 = vpop.f32.mrf.mxu0
      %v3516 = vadd.f32 %v3355, %v3515
      %v3517 = vpop.f32.mrf.mxu0
      %v3518 = vpop.f32.mrf.mxu0
      %v3519 = vadd.f32 %v3358, %v3518
      %v3520 = vpop.f32.mrf.mxu0
      %3521 = vmatprep.mubr.bf16.mxu0 0
      %3522 = vmatmul.mubr.bf16.gmra.mxu0 %v3060
      %v3523 = vpop.f32.mrf.mxu0
      %v3524 = vadd.f32 %v3363, %v3523
      %v3525 = vpop.f32.mrf.mxu0
      %v3526 = vpop.f32.mrf.mxu0
      %v3527 = vadd.f32 %v3366, %v3526
      %v3528 = vpop.f32.mrf.mxu0
      %3529 = vmatprep.mubr.bf16.mxu0 0
      %3530 = vmatmul.mubr.bf16.gmra.mxu0 %v3063
      %v3531 = vpop.f32.mrf.mxu0
      %v3532 = vadd.f32 %v3371, %v3531
      %v3533 = vpop.f32.mrf.mxu0
      %v3534 = vpop.f32.mrf.mxu0
      %v3535 = vadd.f32 %v3374, %v3534
      %v3536 = vpop.f32.mrf.mxu0
      %3537 = vmatprep.mubr.bf16.mxu0 0
      %3538 = vmatmul.mubr.bf16.gmra.mxu0 %v3066
      %v3539 = vpop.f32.mrf.mxu0
      %v3540 = vadd.f32 %v3379, %v3539
      %v3541 = vpop.f32.mrf.mxu0
      %v3542 = vpop.f32.mrf.mxu0
      %v3543 = vadd.f32 %v3382, %v3542
      %v3544 = vpop.f32.mrf.mxu0
      %3545 = vmatprep.mubr.bf16.mxu0 0
      %3546 = vmatmul.mubr.bf16.gmra.mxu0 %v3069
      %v3547 = vpop.f32.mrf.mxu0
      %v3548 = vadd.f32 %v3387, %v3547
      %v3549 = vpop.f32.mrf.mxu0
      %v3550 = vpop.f32.mrf.mxu0
      %v3551 = vadd.f32 %v3390, %v3550
      %v3552 = vpop.f32.mrf.mxu0
      %3553 = vdwg.mxu0
      %v3554 = vmax.f32 %v3428, 0.0
      %v3555 = vmax.f32 %v3431, 0.0
      %v3556 = vmax.f32 %v3436, 0.0
      %v3557 = vmax.f32 %v3439, 0.0
      %v3558 = vmax.f32 %v3444, 0.0
      %v3559 = vmax.f32 %v3447, 0.0
      %v3560 = vmax.f32 %v3452, 0.0
      %v3561 = vmax.f32 %v3455, 0.0
      %v3562 = vmax.f32 %v3460, 0.0
      %v3563 = vmax.f32 %v3463, 0.0
      %v3564 = vmax.f32 %v3468, 0.0
      %v3565 = vmax.f32 %v3471, 0.0
      %v3566 = vmax.f32 %v3476, 0.0
      %v3567 = vmax.f32 %v3479, 0.0
      %v3568 = vmax.f32 %v3484, 0.0
      %v3569 = vmax.f32 %v3487, 0.0
      %v3570 = vmax.f32 %v3492, 0.0
      %v3571 = vmax.f32 %v3495, 0.0
      %v3572 = vmax.f32 %v3500, 0.0
      %v3573 = vmax.f32 %v3503, 0.0
      %v3574 = vmax.f32 %v3508, 0.0
      %v3575 = vmax.f32 %v3511, 0.0
      %v3576 = vmax.f32 %v3516, 0.0
      %v3577 = vmax.f32 %v3519, 0.0
      %v3578 = vmax.f32 %v3524, 0.0
      %v3579 = vmax.f32 %v3527, 0.0
      %v3580 = vmax.f32 %v3532, 0.0
      %v3581 = vmax.f32 %v3535, 0.0
      %v3582 = vmax.f32 %v3540, 0.0
      %v3583 = vmax.f32 %v3543, 0.0
      %v3584 = vmax.f32 %v3548, 0.0
      %v3585 = vmax.f32 %v3551, 0.0
      %v3586 = vmax.f32 %v3554, %v3556
      %v3587 = vmax.f32 %v3555, %v3557
      %v3588 = vmax.f32 %v3558, %v3560
      %v3589 = vmax.f32 %v3559, %v3561
      %v3590 = vmax.f32 %v3562, %v3564
      %v3591 = vmax.f32 %v3563, %v3565
      %v3592 = vmax.f32 %v3566, %v3568
      %v3593 = vmax.f32 %v3567, %v3569
      %v3594 = vmax.f32 %v3570, %v3572
      %v3595 = vmax.f32 %v3571, %v3573
      %v3596 = vmax.f32 %v3574, %v3576
      %v3597 = vmax.f32 %v3575, %v3577
      %v3598 = vmax.f32 %v3578, %v3580
      %v3599 = vmax.f32 %v3579, %v3581
      %v3600 = vmax.f32 %v3582, %v3584
      %v3601 = vmax.f32 %v3583, %v3585
      %3602 = vst.msk [vmem:[#allocation2] sm:$0xff] %vm2564, %v3586
      %3603 = vst.msk [vmem:[#allocation2 + $0x8] sm:$0xff] %vm2564, %v3587
      %3604 = vst.msk [vmem:[#allocation2 + $0x10] sm:$0xff] %vm2564, %v3588
      %3605 = vst.msk [vmem:[#allocation2 + $0x18] sm:$0xff] %vm2564, %v3589
      %3606 = vst.msk [vmem:[#allocation2 + $0x20] sm:$0xff] %vm2564, %v3590
      %3607 = vst.msk [vmem:[#allocation2 + $0x28] sm:$0xff] %vm2564, %v3591
      %3608 = vst.msk [vmem:[#allocation2 + $0x30] sm:$0xff] %vm2564, %v3592
      %3609 = vst.msk [vmem:[#allocation2 + $0x38] sm:$0xff] %vm2564, %v3593
      %3610 = vst.msk [vmem:[#allocation2 + $0x40] sm:$0xff] %vm2564, %v3594
      %3611 = vst.msk [vmem:[#allocation2 + $0x48] sm:$0xff] %vm2564, %v3595
      %3612 = vst.msk [vmem:[#allocation2 + $0x50] sm:$0xff] %vm2564, %v3596
      %3613 = vst.msk [vmem:[#allocation2 + $0x58] sm:$0xff] %vm2564, %v3597
      %3614 = vst.msk [vmem:[#allocation2 + $0x60] sm:$0xff] %vm2564, %v3598
      %3615 = vst.msk [vmem:[#allocation2 + $0x68] sm:$0xff] %vm2564, %v3599
      %3616 = vst.msk [vmem:[#allocation2 + $0x70] sm:$0xff] %vm2564, %v3600
      %3617 = vst.msk [vmem:[#allocation2 + $0x78] sm:$0xff] %vm2564, %v3601
      %v3618 = vld [vmem:[#allocation2] ss:$2 sm:$0xff]
      %s3619 = scalar_lea.vmem [#allocation2], 16
      %v3620 = vld [vmem:[%s3619] ss:$2 sm:$0xff]
      %s3621 = scalar_lea.vmem [#allocation2], 32
      %v3622 = vld [vmem:[%s3621] ss:$2 sm:$0xff]
      %s3623 = scalar_lea.vmem [#allocation2], 48
      %v3624 = vld [vmem:[%s3623] ss:$2 sm:$0xff]
      %s3625 = scalar_lea.vmem [#allocation2], 64
      %v3626 = vld [vmem:[%s3625] ss:$2 sm:$0xff]
      %s3627 = scalar_lea.vmem [#allocation2], 80
      %v3628 = vld [vmem:[%s3627] ss:$2 sm:$0xff]
      %s3629 = scalar_lea.vmem [#allocation2], 96
      %v3630 = vld [vmem:[%s3629] ss:$2 sm:$0xff]
      %s3631 = scalar_lea.vmem [#allocation2], 112
      %v3632 = vld [vmem:[%s3631] ss:$2 sm:$0xff]
      %s3633 = scalar_lea.vmem [#allocation2], 1
      %v3634 = vld [vmem:[%s3633] ss:$2 sm:$0xff]
      %s3635 = scalar_lea.vmem [#allocation2], 17
      %v3636 = vld [vmem:[%s3635] ss:$2 sm:$0xff]
      %s3637 = scalar_lea.vmem [#allocation2], 33
      %v3638 = vld [vmem:[%s3637] ss:$2 sm:$0xff]
      %s3639 = scalar_lea.vmem [#allocation2], 49
      %v3640 = vld [vmem:[%s3639] ss:$2 sm:$0xff]
      %s3641 = scalar_lea.vmem [#allocation2], 65
      %v3642 = vld [vmem:[%s3641] ss:$2 sm:$0xff]
      %s3643 = scalar_lea.vmem [#allocation2], 81
      %v3644 = vld [vmem:[%s3643] ss:$2 sm:$0xff]
      %s3645 = scalar_lea.vmem [#allocation2], 97
      %v3646 = vld [vmem:[%s3645] ss:$2 sm:$0xff]
      %s3647 = scalar_lea.vmem [#allocation2], 113
      %v3648 = vld [vmem:[%s3647] ss:$2 sm:$0xff]
      %v3649 = vmax.f32 %v3618, %v3634
      %v3650 = vmax.f32 %v3620, %v3636
      %v3651 = vmax.f32 %v3622, %v3638
      %v3652 = vmax.f32 %v3624, %v3640
      %v3653 = vmax.f32 %v3626, %v3642
      %v3654 = vmax.f32 %v3628, %v3644
      %v3655 = vmax.f32 %v3630, %v3646
      %v3656 = vmax.f32 %v3632, %v3648
      %v3657 = vrot.slane %v3649, 7
      %v3658 = vrot.slane %v3650, 7
      %v3659 = vrot.slane %v3651, 7
      %v3660 = vrot.slane %v3652, 7
      %v3661 = vrot.slane %v3653, 7
      %v3662 = vrot.slane %v3654, 7
      %v3663 = vrot.slane %v3655, 7
      %v3664 = vrot.slane %v3656, 7
      %v3665 = vsel %vm369, 0.0, %v3657
      %v3666 = vsel %vm369, 0.0, %v3658
      %v3667 = vsel %vm369, 0.0, %v3659
      %v3668 = vsel %vm369, 0.0, %v3660
      %v3669 = vsel %vm369, 0.0, %v3661
      %v3670 = vsel %vm369, 0.0, %v3662
      %v3671 = vsel %vm369, 0.0, %v3663
      %v3672 = vsel %vm369, 0.0, %v3664
      %vm3673 = vcmp.eq.s32.totalorder %v367, 7
      %v3674 = vrot.slane %v3649, 1
      %v3675 = vrot.slane %v3650, 1
      %v3676 = vrot.slane %v3651, 1
      %v3677 = vrot.slane %v3652, 1
      %v3678 = vrot.slane %v3653, 1
      %v3679 = vrot.slane %v3654, 1
      %v3680 = vrot.slane %v3655, 1
      %v3681 = vrot.slane %v3656, 1
      %v3682 = vsel %vm3673, 0.0, 0.0
      %v3683 = vsel %vm3673, 0.0, %v3674
      %v3684 = vsel %vm3673, 0.0, %v3675
      %v3685 = vsel %vm3673, 0.0, %v3676
      %v3686 = vsel %vm3673, 0.0, %v3677
      %v3687 = vsel %vm3673, 0.0, %v3678
      %v3688 = vsel %vm3673, 0.0, %v3679
      %v3689 = vsel %vm3673, 0.0, %v3680
      %v3690 = vsel %vm3673, 0.0, %v3681
      %3698 = vrot.lane.b32.xlu0 %v3649, 64
      %v3699 = vpop.permute.xlu0 %3698
      %3700 = vrot.lane.b32.xlu0 %v3650, 64
      %v3701 = vpop.permute.xlu0 %3700
      %3702 = vrot.lane.b32.xlu0 %v3651, 64
      %v3703 = vpop.permute.xlu0 %3702
      %3704 = vrot.lane.b32.xlu0 %v3652, 64
      %v3705 = vpop.permute.xlu0 %3704
      %3706 = vrot.lane.b32.xlu0 %v3653, 64
      %v3707 = vpop.permute.xlu0 %3706
      %3708 = vrot.lane.b32.xlu0 %v3654, 64
      %v3709 = vpop.permute.xlu0 %3708
      %3710 = vrot.lane.b32.xlu0 %v3655, 64
      %v3711 = vpop.permute.xlu0 %3710
      %3727 = vrot.lane.b32.xlu0 %v3665, 64
      %v3728 = vpop.permute.xlu0 %3727
      %3729 = vrot.lane.b32.xlu0 %v3666, 64
      %v3730 = vpop.permute.xlu0 %3729
      %3731 = vrot.lane.b32.xlu0 %v3667, 64
      %v3732 = vpop.permute.xlu0 %3731
      %3733 = vrot.lane.b32.xlu0 %v3668, 64
      %v3734 = vpop.permute.xlu0 %3733
      %3735 = vrot.lane.b32.xlu0 %v3669, 64
      %v3736 = vpop.permute.xlu0 %3735
      %3737 = vrot.lane.b32.xlu0 %v3670, 64
      %v3738 = vpop.permute.xlu0 %3737
      %3739 = vrot.lane.b32.xlu0 %v3671, 64
      %v3740 = vpop.permute.xlu0 %3739
      %3741 = vrot.lane.b32.xlu0 %v3672, 64
      %v3742 = vpop.permute.xlu0 %3741
      %3759 = vrot.lane.b32.xlu0 %v3683, 64
      %v3760 = vpop.permute.xlu0 %3759
      %3761 = vrot.lane.b32.xlu0 %v3684, 64
      %v3762 = vpop.permute.xlu0 %3761
      %3763 = vrot.lane.b32.xlu0 %v3685, 64
      %v3764 = vpop.permute.xlu0 %3763
      %3765 = vrot.lane.b32.xlu0 %v3686, 64
      %v3766 = vpop.permute.xlu0 %3765
      %3767 = vrot.lane.b32.xlu0 %v3687, 64
      %v3768 = vpop.permute.xlu0 %3767
      %3769 = vrot.lane.b32.xlu0 %v3688, 64
      %v3770 = vpop.permute.xlu0 %3769
      %3771 = vrot.lane.b32.xlu0 %v3689, 64
      %v3772 = vpop.permute.xlu0 %3771
      %3773 = vrot.lane.b32.xlu0 %v3690, 64
      %v3774 = vpop.permute.xlu0 %3773
      %3784 = vrot.lane.b32.xlu0 %v3656, 64
      %v3785 = vpop.permute.xlu0 %3784
      %v3787 = vsel %vm2564, %v3665, %v3699
      %v3788 = vsel %vm2564, %v3666, %v3701
      %v3789 = vsel %vm2564, %v3667, %v3703
      %v3790 = vsel %vm2564, %v3668, %v3705
      %v3791 = vsel %vm2564, %v3669, %v3707
      %v3792 = vsel %vm2564, %v3670, %v3709
      %v3793 = vsel %vm2564, %v3671, %v3711
      %v3794 = vsel %vm2564, %v3682, %v3728
      %v3795 = vsel %vm2564, %v3683, %v3730
      %v3796 = vsel %vm2564, %v3684, %v3732
      %v3797 = vsel %vm2564, %v3685, %v3734
      %v3798 = vsel %vm2564, %v3686, %v3736
      %v3799 = vsel %vm2564, %v3687, %v3738
      %v3800 = vsel %vm2564, %v3688, %v3740
      %v3801 = vsel %vm2564, %v3689, %v3742
      %v3802 = vsel %vm2564, %v3649, %v3760
      %v3803 = vsel %vm2564, %v3650, %v3762
      %v3804 = vsel %vm2564, %v3651, %v3764
      %v3805 = vsel %vm2564, %v3652, %v3766
      %v3806 = vsel %vm2564, %v3653, %v3768
      %v3807 = vsel %vm2564, %v3654, %v3770
      %v3808 = vsel %vm2564, %v3655, %v3772
      %v3809 = vsel %vm2564, %v3656, %v3774
      %v3810 = vsel %vm2564, %v3672, %v3785
      %v3811 = vpack.c.bf16 %v3787, %v2565
      %v3812 = vpack.c.bf16 %v3795, %v3794
      %v3813 = vpack.c.bf16 %v3803, %v3802
      %v3814 = vpack.c.bf16 %v3789, %v3788
      %v3815 = vpack.c.bf16 %v3685, %v3684
      %v3816 = vpack.c.bf16 %v3797, %v3796
      %v3817 = vpack.c.bf16 %v3805, %v3804
      %v3818 = vpack.c.bf16 %v3791, %v3790
      %v3819 = vpack.c.bf16 %v3687, %v3686
      %v3820 = vpack.c.bf16 %v3799, %v3798
      %v3821 = vpack.c.bf16 %v3807, %v3806
      %v3822 = vpack.c.bf16 %v3793, %v3792
      %v3823 = vpack.c.bf16 %v3689, %v3688
      %v3824 = vpack.c.bf16 %v3801, %v3800
      %v3825 = vpack.c.bf16 %v3809, %v3808
      %v3826 = vpack.c.bf16 %v2565, %v3810
      %v3827 = vpack.c.bf16 %v3682, %v3690
      %v3828 = vld [vmem:[%s5] sm:$0xf]
      %v3829 = vld [vmem:[%s5 + $0x4] sm:$0xf]
      %v3830 = vld [vmem:[%s5 + $0x8] sm:$0xf]
      %v3831 = vld [vmem:[%s5 + $0xc] sm:$0xf]
      %v3832 = vld [vmem:[%s5 + $0x10] sm:$0xf]
      %v3833 = vld [vmem:[%s5 + $0x14] sm:$0xf]
      %v3834 = vld [vmem:[%s5 + $0x18] sm:$0xf]
      %v3835 = vld [vmem:[%s5 + $0x1c] sm:$0xf]
      %v3836 = vld [vmem:[%s5 + $0x20] sm:$0xf]
      %v3837 = vld [vmem:[%s5 + $0x24] sm:$0xf]
      %v3838 = vld [vmem:[%s5 + $0x28] sm:$0xf]
      %v3839 = vld [vmem:[%s5 + $0x2c] sm:$0xf]
      %v3840 = vld [vmem:[%s5 + $0x30] sm:$0xf]
      %v3841 = vld [vmem:[%s5 + $0x34] sm:$0xf]
      %v3842 = vld [vmem:[%s5 + $0x38] sm:$0xf]
      %v3843 = vld [vmem:[%s5 + $0x3c] sm:$0xf]
      %v3844 = vld [vmem:[%s5 + $0x40] sm:$0xf]
      %v3845 = vld [vmem:[%s5 + $0x44] sm:$0xf]
      %v3846 = vld [vmem:[%s5 + $0x48] sm:$0xf]
      %v3847 = vld [vmem:[%s5 + $0x4c] sm:$0xf]
      %v3848 = vld [vmem:[%s5 + $0x50] sm:$0xf]
      %v3849 = vld [vmem:[%s5 + $0x54] sm:$0xf]
      %v3850 = vld [vmem:[%s5 + $0x58] sm:$0xf]
      %v3851 = vld [vmem:[%s5 + $0x5c] sm:$0xf]
      %v3852 = vld [vmem:[%s5 + $0x60] sm:$0xf]
      %v3853 = vld [vmem:[%s5 + $0x64] sm:$0xf]
      %v3854 = vld [vmem:[%s5 + $0x68] sm:$0xf]
      %v3855 = vld [vmem:[%s5 + $0x6c] sm:$0xf]
      %v3856 = vld [vmem:[%s5 + $0x70] sm:$0xf]
      %v3857 = vld [vmem:[%s5 + $0x74] sm:$0xf]
      %v3858 = vld [vmem:[%s5 + $0x78] sm:$0xf]
      %v3859 = vld [vmem:[%s5 + $0x7c] sm:$0xf]
      %v3860 = vld [vmem:[%s5 + $0x80] sm:$0xf]
      %v3861 = vld [vmem:[%s5 + $0x84] sm:$0xf]
      %v3862 = vld [vmem:[%s5 + $0x88] sm:$0xf]
      %v3863 = vld [vmem:[%s5 + $0x8c] sm:$0xf]
      %v3864 = vld [vmem:[%s5 + $0x90] sm:$0xf]
      %v3865 = vld [vmem:[%s5 + $0x94] sm:$0xf]
      %v3866 = vld [vmem:[%s5 + $0x98] sm:$0xf]
      %v3867 = vld [vmem:[%s5 + $0x9c] sm:$0xf]
      %v3868 = vld [vmem:[%s5 + $0xa0] sm:$0xf]
      %v3869 = vld [vmem:[%s5 + $0xa4] sm:$0xf]
      %v3870 = vld [vmem:[%s5 + $0xa8] sm:$0xf]
      %v3871 = vld [vmem:[%s5 + $0xac] sm:$0xf]
      %v3872 = vld [vmem:[%s5 + $0xb0] sm:$0xf]
      %v3873 = vld [vmem:[%s5 + $0xb4] sm:$0xf]
      %v3874 = vld [vmem:[%s5 + $0xb8] sm:$0xf]
      %v3875 = vld [vmem:[%s5 + $0xbc] sm:$0xf]
      %v3876 = vld [vmem:[%s5 + $0xc0] sm:$0xf]
      %v3877 = vld [vmem:[%s5 + $0xc4] sm:$0xf]
      %v3878 = vld [vmem:[%s5 + $0xc8] sm:$0xf]
      %v3879 = vld [vmem:[%s5 + $0xcc] sm:$0xf]
      %v3880 = vld [vmem:[%s5 + $0xd0] sm:$0xf]
      %v3881 = vld [vmem:[%s5 + $0xd4] sm:$0xf]
      %v3882 = vld [vmem:[%s5 + $0xd8] sm:$0xf]
      %v3883 = vld [vmem:[%s5 + $0xdc] sm:$0xf]
      %v3884 = vld [vmem:[%s5 + $0xe0] sm:$0xf]
      %v3885 = vld [vmem:[%s5 + $0xe4] sm:$0xf]
      %v3886 = vld [vmem:[%s5 + $0xe8] sm:$0xf]
      %v3887 = vld [vmem:[%s5 + $0xec] sm:$0xf]
      %v3888 = vld [vmem:[%s5 + $0xf0] sm:$0xf]
      %v3889 = vld [vmem:[%s5 + $0xf4] sm:$0xf]
      %v3890 = vld [vmem:[%s5 + $0xf8] sm:$0xf]
      %v3891 = vld [vmem:[%s5 + $0xfc] sm:$0xf]
      %v3892 = vld [vmem:[%s5 + $0x100] sm:$0xf]
      %v3893 = vld [vmem:[%s5 + $0x104] sm:$0xf]
      %v3894 = vld [vmem:[%s5 + $0x108] sm:$0xf]
      %v3895 = vld [vmem:[%s5 + $0x10c] sm:$0xf]
      %v3896 = vld [vmem:[%s5 + $0x110] sm:$0xf]
      %v3897 = vld [vmem:[%s5 + $0x114] sm:$0xf]
      %v3898 = vld [vmem:[%s5 + $0x118] sm:$0xf]
      %v3899 = vld [vmem:[%s5 + $0x11c] sm:$0xf]
      %v3900 = vld [vmem:[%s6] sm:$0x1]
      %v3902 = vlaneseq
      %v3903 = vshrl.u32 %v3902, 7
      %v3904 = vsub.s32 0, %v3903
      %v3905 = vrot.slane %v3900, %v3904
      %v3979 = vunpack.c.l.b16 %v3828
      %v3980 = vunpack.c.l.b16 %v3829
      %v3981 = vunpack.c.l.b16 %v3830
      %v3982 = vunpack.c.l.b16 %v3831
      %v3983 = vunpack.c.l.b16 %v3832
      %v3984 = vunpack.c.l.b16 %v3833
      %v3985 = vunpack.c.l.b16 %v3834
      %v3986 = vunpack.c.l.b16 %v3835
      %v3987 = vunpack.c.l.b16 %v3836
      %v3988 = vunpack.c.l.b16 %v3837
      %v3989 = vunpack.c.l.b16 %v3838
      %v3990 = vunpack.c.l.b16 %v3839
      %v3991 = vunpack.c.l.b16 %v3840
      %v3992 = vunpack.c.l.b16 %v3841
      %v3993 = vunpack.c.l.b16 %v3842
      %v3994 = vunpack.c.l.b16 %v3843
      %v3995 = vunpack.c.l.b16 %v3844
      %v3996 = vunpack.c.l.b16 %v3845
      %v3997 = vunpack.c.l.b16 %v3846
      %v3998 = vunpack.c.l.b16 %v3847
      %v3999 = vunpack.c.l.b16 %v3848
      %v4000 = vunpack.c.l.b16 %v3849
      %v4001 = vunpack.c.l.b16 %v3850
      %v4002 = vunpack.c.l.b16 %v3851
      %v4003 = vunpack.c.l.b16 %v3852
      %v4004 = vunpack.c.l.b16 %v3853
      %v4005 = vunpack.c.l.b16 %v3854
      %v4006 = vunpack.c.l.b16 %v3855
      %v4007 = vunpack.c.l.b16 %v3856
      %v4008 = vunpack.c.l.b16 %v3857
      %v4009 = vunpack.c.l.b16 %v3858
      %v4010 = vunpack.c.l.b16 %v3859
      %v4011 = vunpack.c.l.b16 %v3860
      %v4012 = vunpack.c.l.b16 %v3861
      %v4013 = vunpack.c.l.b16 %v3862
      %v4014 = vunpack.c.l.b16 %v3863
      %v4015 = vunpack.c.l.b16 %v3864
      %v4016 = vunpack.c.l.b16 %v3865
      %v4017 = vunpack.c.l.b16 %v3866
      %v4018 = vunpack.c.l.b16 %v3867
      %v4019 = vunpack.c.l.b16 %v3868
      %v4020 = vunpack.c.l.b16 %v3869
      %v4021 = vunpack.c.l.b16 %v3870
      %v4022 = vunpack.c.l.b16 %v3871
      %v4023 = vunpack.c.l.b16 %v3872
      %v4024 = vunpack.c.l.b16 %v3873
      %v4025 = vunpack.c.l.b16 %v3874
      %v4026 = vunpack.c.l.b16 %v3875
      %v4027 = vunpack.c.l.b16 %v3876
      %v4028 = vunpack.c.l.b16 %v3877
      %v4029 = vunpack.c.l.b16 %v3878
      %v4030 = vunpack.c.l.b16 %v3879
      %v4031 = vunpack.c.l.b16 %v3880
      %v4032 = vunpack.c.l.b16 %v3881
      %v4033 = vunpack.c.l.b16 %v3882
      %v4034 = vunpack.c.l.b16 %v3883
      %v4035 = vunpack.c.l.b16 %v3884
      %v4036 = vunpack.c.l.b16 %v3885
      %v4037 = vunpack.c.l.b16 %v3886
      %v4038 = vunpack.c.l.b16 %v3887
      %v4039 = vunpack.c.l.b16 %v3888
      %v4040 = vunpack.c.l.b16 %v3889
      %v4041 = vunpack.c.l.b16 %v3890
      %v4042 = vunpack.c.l.b16 %v3891
      %v4043 = vunpack.c.l.b16 %v3892
      %v4044 = vunpack.c.l.b16 %v3893
      %v4045 = vunpack.c.l.b16 %v3894
      %v4046 = vunpack.c.l.b16 %v3895
      %v4047 = vunpack.c.l.b16 %v3896
      %v4048 = vunpack.c.l.b16 %v3897
      %v4049 = vunpack.c.l.b16 %v3898
      %v4050 = vunpack.c.l.b16 %v3899
      %v4051 = vpack.c.b16 %v3980, %v3979
      %v4052 = vpack.c.b16 %v3982, %v3981
      %v4053 = vpack.c.b16 %v3984, %v3983
      %v4054 = vpack.c.b16 %v3986, %v3985
      %v4055 = vpack.c.b16 %v3988, %v3987
      %v4056 = vpack.c.b16 %v3990, %v3989
      %v4057 = vpack.c.b16 %v3992, %v3991
      %v4058 = vpack.c.b16 %v3994, %v3993
      %v4059 = vpack.c.b16 %v3996, %v3995
      %v4060 = vpack.c.b16 %v3998, %v3997
      %v4061 = vpack.c.b16 %v4000, %v3999
      %v4062 = vpack.c.b16 %v4002, %v4001
      %v4063 = vpack.c.b16 %v4004, %v4003
      %v4064 = vpack.c.b16 %v4006, %v4005
      %v4065 = vpack.c.b16 %v4008, %v4007
      %v4066 = vpack.c.b16 %v4010, %v4009
      %v4067 = vpack.c.b16 %v4012, %v4011
      %v4068 = vpack.c.b16 %v4014, %v4013
      %v4069 = vpack.c.b16 %v4016, %v4015
      %v4070 = vpack.c.b16 %v4018, %v4017
      %v4071 = vpack.c.b16 %v4020, %v4019
      %v4072 = vpack.c.b16 %v4022, %v4021
      %v4073 = vpack.c.b16 %v4024, %v4023
      %v4074 = vpack.c.b16 %v4026, %v4025
      %v4075 = vpack.c.b16 %v4028, %v4027
      %v4076 = vpack.c.b16 %v4030, %v4029
      %v4077 = vpack.c.b16 %v4032, %v4031
      %v4078 = vpack.c.b16 %v4034, %v4033
      %v4079 = vpack.c.b16 %v4036, %v4035
      %v4080 = vpack.c.b16 %v4038, %v4037
      %v4081 = vpack.c.b16 %v4040, %v4039
      %v4082 = vpack.c.b16 %v4042, %v4041
      %v4083 = vpack.c.b16 %v4044, %v4043
      %v4084 = vpack.c.b16 %v4046, %v4045
      %v4085 = vpack.c.b16 %v4048, %v4047
      %v4086 = vpack.c.b16 %v4050, %v4049
      %v4124 = vsel %vm2564, %v3815, 0
      %v4127 = vsel %vm2564, %v3819, 0
      %v4130 = vsel %vm2564, %v3823, 0
      %v4133 = vsel %vm2564, %v3827, 0
      %4135 = vmatprep.subr.bf16.mxu0 0
      %4136 = vmatpush1.bf16.msra.mxu0 %v4058
      %4137 = vmatprep.subr.bf16.mxu0 0
      %4138 = vmatpush1.bf16.msra.mxu0 %v4057
      %4139 = vmatprep.subr.bf16.mxu0 0
      %4140 = vmatpush1.bf16.msra.mxu0 %v4056
      %4141 = vmatprep.subr.bf16.mxu0 0
      %4142 = vmatpush1.bf16.msra.mxu0 %v4055
      %4143 = vmatprep.subr.bf16.mxu0 0
      %4144 = vmatpush1.bf16.msra.mxu0 %v4054
      %4145 = vmatprep.subr.bf16.mxu0 0
      %4146 = vmatpush1.bf16.msra.mxu0 %v4053
      %4147 = vmatprep.subr.bf16.mxu0 0
      %4148 = vmatpush1.bf16.msra.mxu0 %v4052
      %4149 = vmatprep.subr.bf16.mxu0 0
      %4150 = vmatpush1.bf16.msra.mxu0 %v4051
      %4151 = vmatprep.subr.bf16.mxu0 0
      %4152 = vmatpush2.bf16.msra.mxu0 %v4066
      %4153 = vmatprep.subr.bf16.mxu0 0
      %4154 = vmatpush2.bf16.msra.mxu0 %v4065
      %4155 = vmatprep.subr.bf16.mxu0 0
      %4156 = vmatpush2.bf16.msra.mxu0 %v4064
      %4157 = vmatprep.subr.bf16.mxu0 0
      %4158 = vmatpush2.bf16.msra.mxu0 %v4063
      %4159 = vmatprep.subr.bf16.mxu0 0
      %4160 = vmatpush2.bf16.msra.mxu0 %v4062
      %4161 = vmatprep.subr.bf16.mxu0 0
      %4162 = vmatpush2.bf16.msra.mxu0 %v4061
      %4163 = vmatprep.subr.bf16.mxu0 0
      %4164 = vmatpush2.bf16.msra.mxu0 %v4060
      %4165 = vmatprep.subr.bf16.mxu0 0
      %4166 = vmatpush2.bf16.msra.mxu0 %v4059
      %4167 = vmatprep.mubr.bf16.mxu0 %v3812
      %4168 = vmatmul.mubr.bf16.gmra.mxu0 %v3811
      %v4169 = vpop.f32.mrf.mxu0
      %v4170 = vadd.f32 %v3905, %v4169
      %v4171 = vpop.f32.mrf.mxu0
      %v4172 = vpop.f32.mrf.mxu0
      %v4173 = vadd.f32 %v3905, %v4172
      %v4174 = vpop.f32.mrf.mxu0
      %4175 = vmatprep.mubr.bf16.mxu0 %v3816
      %4176 = vmatmul.mubr.bf16.gmra.mxu0 %v3814
      %v4177 = vpop.f32.mrf.mxu0
      %v4178 = vadd.f32 %v3905, %v4177
      %v4179 = vpop.f32.mrf.mxu0
      %v4180 = vpop.f32.mrf.mxu0
      %v4181 = vadd.f32 %v3905, %v4180
      %v4182 = vpop.f32.mrf.mxu0
      %4183 = vmatprep.mubr.bf16.mxu0 %v3820
      %4184 = vmatmul.mubr.bf16.gmra.mxu0 %v3818
      %v4185 = vpop.f32.mrf.mxu0
      %v4186 = vadd.f32 %v3905, %v4185
      %v4187 = vpop.f32.mrf.mxu0
      %v4188 = vpop.f32.mrf.mxu0
      %v4189 = vadd.f32 %v3905, %v4188
      %v4190 = vpop.f32.mrf.mxu0
      %4191 = vmatprep.mubr.bf16.mxu0 %v3824
      %4192 = vmatmul.mubr.bf16.gmra.mxu0 %v3822
      %v4193 = vpop.f32.mrf.mxu0
      %v4194 = vadd.f32 %v3905, %v4193
      %v4195 = vpop.f32.mrf.mxu0
      %v4196 = vpop.f32.mrf.mxu0
      %v4197 = vadd.f32 %v3905, %v4196
      %v4198 = vpop.f32.mrf.mxu0
      %4199 = vdwg.mxu0
      %4200 = vmatprep.subr.bf16.mxu0 0
      %4201 = vmatpush1.bf16.msra.mxu0 %v4074
      %4202 = vmatprep.subr.bf16.mxu0 0
      %4203 = vmatpush1.bf16.msra.mxu0 %v4073
      %4204 = vmatprep.subr.bf16.mxu0 0
      %4205 = vmatpush1.bf16.msra.mxu0 %v4072
      %4206 = vmatprep.subr.bf16.mxu0 0
      %4207 = vmatpush1.bf16.msra.mxu0 %v4071
      %4208 = vmatprep.subr.bf16.mxu0 0
      %4209 = vmatpush1.bf16.msra.mxu0 %v4070
      %4210 = vmatprep.subr.bf16.mxu0 0
      %4211 = vmatpush1.bf16.msra.mxu0 %v4069
      %4212 = vmatprep.subr.bf16.mxu0 0
      %4213 = vmatpush1.bf16.msra.mxu0 %v4068
      %4214 = vmatprep.subr.bf16.mxu0 0
      %4215 = vmatpush1.bf16.msra.mxu0 %v4067
      %4216 = vmatprep.subr.bf16.mxu0 0
      %4217 = vmatpush2.bf16.msra.mxu0 %v4082
      %4218 = vmatprep.subr.bf16.mxu0 0
      %4219 = vmatpush2.bf16.msra.mxu0 %v4081
      %4220 = vmatprep.subr.bf16.mxu0 0
      %4221 = vmatpush2.bf16.msra.mxu0 %v4080
      %4222 = vmatprep.subr.bf16.mxu0 0
      %4223 = vmatpush2.bf16.msra.mxu0 %v4079
      %4224 = vmatprep.subr.bf16.mxu0 0
      %4225 = vmatpush2.bf16.msra.mxu0 %v4078
      %4226 = vmatprep.subr.bf16.mxu0 0
      %4227 = vmatpush2.bf16.msra.mxu0 %v4077
      %4228 = vmatprep.subr.bf16.mxu0 0
      %4229 = vmatpush2.bf16.msra.mxu0 %v4076
      %4230 = vmatprep.subr.bf16.mxu0 0
      %4231 = vmatpush2.bf16.msra.mxu0 %v4075
      %4232 = vmatprep.mubr.bf16.mxu0 %v3814
      %4233 = vmatmul.mubr.bf16.gmra.mxu0 %v3813
      %v4234 = vpop.f32.mrf.mxu0
      %v4235 = vadd.f32 %v4170, %v4234
      %v4236 = vpop.f32.mrf.mxu0
      %v4237 = vpop.f32.mrf.mxu0
      %v4238 = vadd.f32 %v4173, %v4237
      %v4239 = vpop.f32.mrf.mxu0
      %4240 = vmatprep.mubr.bf16.mxu0 %v3818
      %4241 = vmatmul.mubr.bf16.gmra.mxu0 %v3817
      %v4242 = vpop.f32.mrf.mxu0
      %v4243 = vadd.f32 %v4178, %v4242
      %v4244 = vpop.f32.mrf.mxu0
      %v4245 = vpop.f32.mrf.mxu0
      %v4246 = vadd.f32 %v4181, %v4245
      %v4247 = vpop.f32.mrf.mxu0
      %4248 = vmatprep.mubr.bf16.mxu0 %v3822
      %4249 = vmatmul.mubr.bf16.gmra.mxu0 %v3821
      %v4250 = vpop.f32.mrf.mxu0
      %v4251 = vadd.f32 %v4186, %v4250
      %v4252 = vpop.f32.mrf.mxu0
      %v4253 = vpop.f32.mrf.mxu0
      %v4254 = vadd.f32 %v4189, %v4253
      %v4255 = vpop.f32.mrf.mxu0
      %4256 = vmatprep.mubr.bf16.mxu0 %v3826
      %4257 = vmatmul.mubr.bf16.gmra.mxu0 %v3825
      %v4258 = vpop.f32.mrf.mxu0
      %v4259 = vadd.f32 %v4194, %v4258
      %v4260 = vpop.f32.mrf.mxu0
      %v4261 = vpop.f32.mrf.mxu0
      %v4262 = vadd.f32 %v4197, %v4261
      %v4263 = vpop.f32.mrf.mxu0
      %4264 = vdwg.mxu0
      %4265 = vmatprep.subr.bf16.mxu0 0
      %4266 = vmatpush1.bf16.msra.mxu0 0
      %4267 = vmatprep.subr.bf16.mxu0 0
      %4268 = vmatpush1.bf16.msra.mxu0 0
      %4269 = vmatprep.subr.bf16.mxu0 0
      %4270 = vmatpush1.bf16.msra.mxu0 0
      %4271 = vmatprep.subr.bf16.mxu0 0
      %4272 = vmatpush1.bf16.msra.mxu0 0
      %4273 = vmatprep.subr.bf16.mxu0 0
      %4274 = vmatpush1.bf16.msra.mxu0 %v4086
      %4275 = vmatprep.subr.bf16.mxu0 0
      %4276 = vmatpush1.bf16.msra.mxu0 %v4085
      %4277 = vmatprep.subr.bf16.mxu0 0
      %4278 = vmatpush1.bf16.msra.mxu0 %v4084
      %4279 = vmatprep.subr.bf16.mxu0 0
      %4280 = vmatpush1.bf16.msra.mxu0 %v4083
      %4281 = vmatprep.subr.bf16.mxu0 0
      %4282 = vmatpush2.bf16.msra.mxu0 0
      %4283 = vmatprep.subr.bf16.mxu0 0
      %4284 = vmatpush2.bf16.msra.mxu0 0
      %4285 = vmatprep.subr.bf16.mxu0 0
      %4286 = vmatpush2.bf16.msra.mxu0 0
      %4287 = vmatprep.subr.bf16.mxu0 0
      %4288 = vmatpush2.bf16.msra.mxu0 0
      %4289 = vmatprep.subr.bf16.mxu0 0
      %4290 = vmatpush2.bf16.msra.mxu0 0
      %4291 = vmatprep.subr.bf16.mxu0 0
      %4292 = vmatpush2.bf16.msra.mxu0 0
      %4293 = vmatprep.subr.bf16.mxu0 0
      %4294 = vmatpush2.bf16.msra.mxu0 0
      %4295 = vmatprep.subr.bf16.mxu0 0
      %4296 = vmatpush2.bf16.msra.mxu0 0
      %4297 = vmatprep.mubr.bf16.mxu0 0
      %4298 = vmatmul.mubr.bf16.gmra.mxu0 %v4124
      %v4299 = vpop.f32.mrf.mxu0
      %v4300 = vadd.f32 %v4235, %v4299
      %v4301 = vpop.f32.mrf.mxu0
      %v4302 = vpop.f32.mrf.mxu0
      %v4303 = vadd.f32 %v4238, %v4302
      %v4304 = vpop.f32.mrf.mxu0
      %4305 = vmatprep.mubr.bf16.mxu0 0
      %4306 = vmatmul.mubr.bf16.gmra.mxu0 %v4127
      %v4307 = vpop.f32.mrf.mxu0
      %v4308 = vadd.f32 %v4243, %v4307
      %v4309 = vpop.f32.mrf.mxu0
      %v4310 = vpop.f32.mrf.mxu0
      %v4311 = vadd.f32 %v4246, %v4310
      %v4312 = vpop.f32.mrf.mxu0
      %4313 = vmatprep.mubr.bf16.mxu0 0
      %4314 = vmatmul.mubr.bf16.gmra.mxu0 %v4130
      %v4315 = vpop.f32.mrf.mxu0
      %v4316 = vadd.f32 %v4251, %v4315
      %v4317 = vpop.f32.mrf.mxu0
      %v4318 = vpop.f32.mrf.mxu0
      %v4319 = vadd.f32 %v4254, %v4318
      %v4320 = vpop.f32.mrf.mxu0
      %4321 = vmatprep.mubr.bf16.mxu0 0
      %4322 = vmatmul.mubr.bf16.gmra.mxu0 %v4133
      %v4323 = vpop.f32.mrf.mxu0
      %v4324 = vadd.f32 %v4259, %v4323
      %v4325 = vpop.f32.mrf.mxu0
      %v4326 = vpop.f32.mrf.mxu0
      %v4327 = vadd.f32 %v4262, %v4326
      %v4328 = vpop.f32.mrf.mxu0
      %4329 = vdwg.mxu0
      %v4330 = vmax.f32 %v4300, 0.0
      %v4331 = vmax.f32 %v4303, 0.0
      %v4332 = vmax.f32 %v4308, 0.0
      %v4333 = vmax.f32 %v4311, 0.0
      %v4334 = vmax.f32 %v4316, 0.0
      %v4335 = vmax.f32 %v4319, 0.0
      %v4336 = vmax.f32 %v4324, 0.0
      %v4337 = vmax.f32 %v4327, 0.0
      %v4338 = vrot.slane %v4330, 7
      %v4339 = vrot.slane %v4331, 7
      %v4340 = vrot.slane %v4332, 7
      %v4341 = vrot.slane %v4333, 7
      %v4342 = vrot.slane %v4334, 7
      %v4343 = vrot.slane %v4335, 7
      %v4344 = vrot.slane %v4336, 7
      %v4345 = vrot.slane %v4337, 7
      %v4346 = vsel %vm369, 0.0, %v4338
      %v4347 = vsel %vm369, 0.0, %v4339
      %v4348 = vsel %vm369, 0.0, %v4340
      %v4349 = vsel %vm369, 0.0, %v4341
      %v4350 = vsel %vm369, 0.0, %v4342
      %v4351 = vsel %vm369, 0.0, %v4343
      %v4352 = vsel %vm369, 0.0, %v4344
      %v4353 = vsel %vm369, 0.0, %v4345
      %v4354 = vrot.slane %v4330, 1
      %v4355 = vrot.slane %v4331, 1
      %v4356 = vrot.slane %v4332, 1
      %v4357 = vrot.slane %v4333, 1
      %v4358 = vrot.slane %v4334, 1
      %v4359 = vrot.slane %v4335, 1
      %v4360 = vrot.slane %v4336, 1
      %v4361 = vrot.slane %v4337, 1
      %v4362 = vsel %vm3673, 0.0, %v4354
      %v4363 = vsel %vm3673, 0.0, %v4355
      %v4364 = vsel %vm3673, 0.0, %v4356
      %v4365 = vsel %vm3673, 0.0, %v4357
      %v4366 = vsel %vm3673, 0.0, %v4358
      %v4367 = vsel %vm3673, 0.0, %v4359
      %v4368 = vsel %vm3673, 0.0, %v4360
      %v4369 = vsel %vm3673, 0.0, %v4361
      %v4370 = vpack.c.bf16 %v4346, %v436
      %v4371 = vpack.c.bf16 %v4330, 0.0
      %v4372 = vpack.c.bf16 %v4362, %v3682
      %v4373 = vpack.c.bf16 %v4347, %v4346
      %v4374 = vpack.c.bf16 %v4331, %v4330
      %v4375 = vpack.c.bf16 %v4363, %v4362
      %v4376 = vpack.c.bf16 %v4348, %v4347
      %v4377 = vpack.c.bf16 %v4332, %v4331
      %v4378 = vpack.c.bf16 %v4364, %v4363
      %v4379 = vpack.c.bf16 %v4349, %v4348
      %v4380 = vpack.c.bf16 %v4333, %v4332
      %v4381 = vpack.c.bf16 %v4365, %v4364
      %v4382 = vpack.c.bf16 %v4350, %v4349
      %v4383 = vpack.c.bf16 %v4334, %v4333
      %v4384 = vpack.c.bf16 %v4366, %v4365
      %v4385 = vpack.c.bf16 %v4351, %v4350
      %v4386 = vpack.c.bf16 %v4335, %v4334
      %v4387 = vpack.c.bf16 %v4367, %v4366
      %v4388 = vpack.c.bf16 %v4352, %v4351
      %v4389 = vpack.c.bf16 %v4336, %v4335
      %v4390 = vpack.c.bf16 %v4368, %v4367
      %v4391 = vpack.c.bf16 %v4353, %v4352
      %v4392 = vpack.c.bf16 %v4337, %v4336
      %v4393 = vpack.c.bf16 %v4369, %v4368
      %v4394 = vpack.c.bf16 %v436, %v4353
      %v4395 = vpack.c.bf16 0.0, %v4337
      %v4396 = vpack.c.bf16 %v3682, %v4369
      %v4397 = vld [vmem:[%s7] sm:$0xf]
      %v4398 = vld [vmem:[%s7 + $0x4] sm:$0xf]
      %v4399 = vld [vmem:[%s7 + $0x8] sm:$0xf]
      %v4400 = vld [vmem:[%s7 + $0xc] sm:$0xf]
      %v4401 = vld [vmem:[%s7 + $0x10] sm:$0xf]
      %v4402 = vld [vmem:[%s7 + $0x14] sm:$0xf]
      %v4403 = vld [vmem:[%s7 + $0x18] sm:$0xf]
      %v4404 = vld [vmem:[%s7 + $0x1c] sm:$0xf]
      %v4405 = vld [vmem:[%s7 + $0x20] sm:$0xf]
      %v4406 = vld [vmem:[%s7 + $0x24] sm:$0xf]
      %v4407 = vld [vmem:[%s7 + $0x28] sm:$0xf]
      %v4408 = vld [vmem:[%s7 + $0x2c] sm:$0xf]
      %v4409 = vld [vmem:[%s7 + $0x30] sm:$0xf]
      %v4410 = vld [vmem:[%s7 + $0x34] sm:$0xf]
      %v4411 = vld [vmem:[%s7 + $0x38] sm:$0xf]
      %v4412 = vld [vmem:[%s7 + $0x3c] sm:$0xf]
      %v4413 = vld [vmem:[%s7 + $0x40] sm:$0xf]
      %v4414 = vld [vmem:[%s7 + $0x44] sm:$0xf]
      %v4415 = vld [vmem:[%s7 + $0x48] sm:$0xf]
      %v4416 = vld [vmem:[%s7 + $0x4c] sm:$0xf]
      %v4417 = vld [vmem:[%s7 + $0x50] sm:$0xf]
      %v4418 = vld [vmem:[%s7 + $0x54] sm:$0xf]
      %v4419 = vld [vmem:[%s7 + $0x58] sm:$0xf]
      %v4420 = vld [vmem:[%s7 + $0x5c] sm:$0xf]
      %v4421 = vld [vmem:[%s7 + $0x60] sm:$0xf]
      %v4422 = vld [vmem:[%s7 + $0x64] sm:$0xf]
      %v4423 = vld [vmem:[%s7 + $0x68] sm:$0xf]
      %v4424 = vld [vmem:[%s7 + $0x6c] sm:$0xf]
      %v4425 = vld [vmem:[%s7 + $0x70] sm:$0xf]
      %v4426 = vld [vmem:[%s7 + $0x74] sm:$0xf]
      %v4427 = vld [vmem:[%s7 + $0x78] sm:$0xf]
      %v4428 = vld [vmem:[%s7 + $0x7c] sm:$0xf]
      %v4429 = vld [vmem:[%s7 + $0x80] sm:$0xf]
      %v4430 = vld [vmem:[%s7 + $0x84] sm:$0xf]
      %v4431 = vld [vmem:[%s7 + $0x88] sm:$0xf]
      %v4432 = vld [vmem:[%s7 + $0x8c] sm:$0xf]
      %v4433 = vld [vmem:[%s7 + $0x90] sm:$0xf]
      %v4434 = vld [vmem:[%s7 + $0x94] sm:$0xf]
      %v4435 = vld [vmem:[%s7 + $0x98] sm:$0xf]
      %v4436 = vld [vmem:[%s7 + $0x9c] sm:$0xf]
      %v4437 = vld [vmem:[%s7 + $0xa0] sm:$0xf]
      %v4438 = vld [vmem:[%s7 + $0xa4] sm:$0xf]
      %v4439 = vld [vmem:[%s7 + $0xa8] sm:$0xf]
      %v4440 = vld [vmem:[%s7 + $0xac] sm:$0xf]
      %v4441 = vld [vmem:[%s7 + $0xb0] sm:$0xf]
      %v4442 = vld [vmem:[%s7 + $0xb4] sm:$0xf]
      %v4443 = vld [vmem:[%s7 + $0xb8] sm:$0xf]
      %v4444 = vld [vmem:[%s7 + $0xbc] sm:$0xf]
      %v4445 = vld [vmem:[%s7 + $0xc0] sm:$0xf]
      %v4446 = vld [vmem:[%s7 + $0xc4] sm:$0xf]
      %v4447 = vld [vmem:[%s7 + $0xc8] sm:$0xf]
      %v4448 = vld [vmem:[%s7 + $0xcc] sm:$0xf]
      %v4449 = vld [vmem:[%s7 + $0xd0] sm:$0xf]
      %v4450 = vld [vmem:[%s7 + $0xd4] sm:$0xf]
      %v4451 = vld [vmem:[%s7 + $0xd8] sm:$0xf]
      %v4452 = vld [vmem:[%s7 + $0xdc] sm:$0xf]
      %v4453 = vld [vmem:[%s7 + $0xe0] sm:$0xf]
      %v4454 = vld [vmem:[%s7 + $0xe4] sm:$0xf]
      %v4455 = vld [vmem:[%s7 + $0xe8] sm:$0xf]
      %v4456 = vld [vmem:[%s7 + $0xec] sm:$0xf]
      %v4457 = vld [vmem:[%s7 + $0xf0] sm:$0xf]
      %v4458 = vld [vmem:[%s7 + $0xf4] sm:$0xf]
      %v4459 = vld [vmem:[%s7 + $0xf8] sm:$0xf]
      %v4460 = vld [vmem:[%s7 + $0xfc] sm:$0xf]
      %v4461 = vld [vmem:[%s7 + $0x100] sm:$0xf]
      %v4462 = vld [vmem:[%s7 + $0x104] sm:$0xf]
      %v4463 = vld [vmem:[%s7 + $0x108] sm:$0xf]
      %v4464 = vld [vmem:[%s7 + $0x10c] sm:$0xf]
      %v4465 = vld [vmem:[%s7 + $0x110] sm:$0xf]
      %v4466 = vld [vmem:[%s7 + $0x114] sm:$0xf]
      %v4467 = vld [vmem:[%s7 + $0x118] sm:$0xf]
      %v4468 = vld [vmem:[%s7 + $0x11c] sm:$0xf]
      %v4469 = vld [vmem:[%s7 + $0x120] sm:$0xf]
      %v4470 = vld [vmem:[%s7 + $0x124] sm:$0xf]
      %v4471 = vld [vmem:[%s7 + $0x128] sm:$0xf]
      %v4472 = vld [vmem:[%s7 + $0x12c] sm:$0xf]
      %v4473 = vld [vmem:[%s7 + $0x130] sm:$0xf]
      %v4474 = vld [vmem:[%s7 + $0x134] sm:$0xf]
      %v4475 = vld [vmem:[%s7 + $0x138] sm:$0xf]
      %v4476 = vld [vmem:[%s7 + $0x13c] sm:$0xf]
      %v4477 = vld [vmem:[%s7 + $0x140] sm:$0xf]
      %v4478 = vld [vmem:[%s7 + $0x144] sm:$0xf]
      %v4479 = vld [vmem:[%s7 + $0x148] sm:$0xf]
      %v4480 = vld [vmem:[%s7 + $0x14c] sm:$0xf]
      %v4481 = vld [vmem:[%s7 + $0x150] sm:$0xf]
      %v4482 = vld [vmem:[%s7 + $0x154] sm:$0xf]
      %v4483 = vld [vmem:[%s7 + $0x158] sm:$0xf]
      %v4484 = vld [vmem:[%s7 + $0x15c] sm:$0xf]
      %v4485 = vld [vmem:[%s7 + $0x160] sm:$0xf]
      %v4486 = vld [vmem:[%s7 + $0x164] sm:$0xf]
      %v4487 = vld [vmem:[%s7 + $0x168] sm:$0xf]
      %v4488 = vld [vmem:[%s7 + $0x16c] sm:$0xf]
      %v4489 = vld [vmem:[%s7 + $0x170] sm:$0xf]
      %v4490 = vld [vmem:[%s7 + $0x174] sm:$0xf]
      %v4491 = vld [vmem:[%s7 + $0x178] sm:$0xf]
      %v4492 = vld [vmem:[%s7 + $0x17c] sm:$0xf]
      %v4493 = vld [vmem:[%s7 + $0x180] sm:$0xf]
      %v4494 = vld [vmem:[%s7 + $0x184] sm:$0xf]
      %v4495 = vld [vmem:[%s7 + $0x188] sm:$0xf]
      %v4496 = vld [vmem:[%s7 + $0x18c] sm:$0xf]
      %v4497 = vld [vmem:[%s7 + $0x190] sm:$0xf]
      %v4498 = vld [vmem:[%s7 + $0x194] sm:$0xf]
      %v4499 = vld [vmem:[%s7 + $0x198] sm:$0xf]
      %v4500 = vld [vmem:[%s7 + $0x19c] sm:$0xf]
      %v4501 = vld [vmem:[%s7 + $0x1a0] sm:$0xf]
      %v4502 = vld [vmem:[%s7 + $0x1a4] sm:$0xf]
      %v4503 = vld [vmem:[%s7 + $0x1a8] sm:$0xf]
      %v4504 = vld [vmem:[%s7 + $0x1ac] sm:$0xf]
      %v4505 = vld [vmem:[%s7 + $0x1b0] sm:$0xf]
      %v4506 = vld [vmem:[%s7 + $0x1b4] sm:$0xf]
      %v4507 = vld [vmem:[%s7 + $0x1b8] sm:$0xf]
      %v4508 = vld [vmem:[%s7 + $0x1bc] sm:$0xf]
      %v4509 = vld [vmem:[%s7 + $0x1c0] sm:$0xf]
      %v4510 = vld [vmem:[%s7 + $0x1c4] sm:$0xf]
      %v4511 = vld [vmem:[%s7 + $0x1c8] sm:$0xf]
      %v4512 = vld [vmem:[%s7 + $0x1cc] sm:$0xf]
      %v4513 = vld [vmem:[%s7 + $0x1d0] sm:$0xf]
      %v4514 = vld [vmem:[%s7 + $0x1d4] sm:$0xf]
      %v4515 = vld [vmem:[%s7 + $0x1d8] sm:$0xf]
      %v4516 = vld [vmem:[%s7 + $0x1dc] sm:$0xf]
      %v4517 = vld [vmem:[%s7 + $0x1e0] sm:$0xf]
      %v4518 = vld [vmem:[%s7 + $0x1e4] sm:$0xf]
      %v4519 = vld [vmem:[%s7 + $0x1e8] sm:$0xf]
      %v4520 = vld [vmem:[%s7 + $0x1ec] sm:$0xf]
      %v4521 = vld [vmem:[%s7 + $0x1f0] sm:$0xf]
      %v4522 = vld [vmem:[%s7 + $0x1f4] sm:$0xf]
      %v4523 = vld [vmem:[%s7 + $0x1f8] sm:$0xf]
      %v4524 = vld [vmem:[%s7 + $0x1fc] sm:$0xf]
      %v4525 = vld [vmem:[%s7 + $0x200] sm:$0xf]
      %v4526 = vld [vmem:[%s7 + $0x204] sm:$0xf]
      %v4527 = vld [vmem:[%s7 + $0x208] sm:$0xf]
      %v4528 = vld [vmem:[%s7 + $0x20c] sm:$0xf]
      %v4529 = vld [vmem:[%s7 + $0x210] sm:$0xf]
      %v4530 = vld [vmem:[%s7 + $0x214] sm:$0xf]
      %v4531 = vld [vmem:[%s7 + $0x218] sm:$0xf]
      %v4532 = vld [vmem:[%s7 + $0x21c] sm:$0xf]
      %v4533 = vld [vmem:[%s7 + $0x220] sm:$0xf]
      %v4534 = vld [vmem:[%s7 + $0x224] sm:$0xf]
      %v4535 = vld [vmem:[%s7 + $0x228] sm:$0xf]
      %v4536 = vld [vmem:[%s7 + $0x22c] sm:$0xf]
      %v4537 = vld [vmem:[%s7 + $0x230] sm:$0xf]
      %v4538 = vld [vmem:[%s7 + $0x234] sm:$0xf]
      %v4539 = vld [vmem:[%s7 + $0x238] sm:$0xf]
      %v4540 = vld [vmem:[%s7 + $0x23c] sm:$0xf]
      %v4541 = vld [vmem:[%s8] sm:$0x1]
      %v4543 = vlaneseq
      %v4544 = vshrl.u32 %v4543, 7
      %v4545 = vsub.s32 0, %v4544
      %v4546 = vrot.slane %v4541, %v4545
      %v4692 = vunpack.c.l.b16 %v4397
      %v4693 = vunpack.c.l.b16 %v4398
      %v4694 = vunpack.c.l.b16 %v4399
      %v4695 = vunpack.c.l.b16 %v4400
      %v4696 = vunpack.c.l.b16 %v4401
      %v4697 = vunpack.c.l.b16 %v4402
      %v4698 = vunpack.c.l.b16 %v4403
      %v4699 = vunpack.c.l.b16 %v4404
      %v4700 = vunpack.c.l.b16 %v4405
      %v4701 = vunpack.c.l.b16 %v4406
      %v4702 = vunpack.c.l.b16 %v4407
      %v4703 = vunpack.c.l.b16 %v4408
      %v4704 = vunpack.c.l.b16 %v4409
      %v4705 = vunpack.c.l.b16 %v4410
      %v4706 = vunpack.c.l.b16 %v4411
      %v4707 = vunpack.c.l.b16 %v4412
      %v4708 = vunpack.c.l.b16 %v4413
      %v4709 = vunpack.c.l.b16 %v4414
      %v4710 = vunpack.c.l.b16 %v4415
      %v4711 = vunpack.c.l.b16 %v4416
      %v4712 = vunpack.c.l.b16 %v4417
      %v4713 = vunpack.c.l.b16 %v4418
      %v4714 = vunpack.c.l.b16 %v4419
      %v4715 = vunpack.c.l.b16 %v4420
      %v4716 = vunpack.c.l.b16 %v4421
      %v4717 = vunpack.c.l.b16 %v4422
      %v4718 = vunpack.c.l.b16 %v4423
      %v4719 = vunpack.c.l.b16 %v4424
      %v4720 = vunpack.c.l.b16 %v4425
      %v4721 = vunpack.c.l.b16 %v4426
      %v4722 = vunpack.c.l.b16 %v4427
      %v4723 = vunpack.c.l.b16 %v4428
      %v4724 = vunpack.c.l.b16 %v4429
      %v4725 = vunpack.c.l.b16 %v4430
      %v4726 = vunpack.c.l.b16 %v4431
      %v4727 = vunpack.c.l.b16 %v4432
      %v4728 = vunpack.c.l.b16 %v4433
      %v4729 = vunpack.c.l.b16 %v4434
      %v4730 = vunpack.c.l.b16 %v4435
      %v4731 = vunpack.c.l.b16 %v4436
      %v4732 = vunpack.c.l.b16 %v4437
      %v4733 = vunpack.c.l.b16 %v4438
      %v4734 = vunpack.c.l.b16 %v4439
      %v4735 = vunpack.c.l.b16 %v4440
      %v4736 = vunpack.c.l.b16 %v4441
      %v4737 = vunpack.c.l.b16 %v4442
      %v4738 = vunpack.c.l.b16 %v4443
      %v4739 = vunpack.c.l.b16 %v4444
      %v4740 = vunpack.c.l.b16 %v4445
      %v4741 = vunpack.c.l.b16 %v4446
      %v4742 = vunpack.c.l.b16 %v4447
      %v4743 = vunpack.c.l.b16 %v4448
      %v4744 = vunpack.c.l.b16 %v4449
      %v4745 = vunpack.c.l.b16 %v4450
      %v4746 = vunpack.c.l.b16 %v4451
      %v4747 = vunpack.c.l.b16 %v4452
      %v4748 = vunpack.c.l.b16 %v4453
      %v4749 = vunpack.c.l.b16 %v4454
      %v4750 = vunpack.c.l.b16 %v4455
      %v4751 = vunpack.c.l.b16 %v4456
      %v4752 = vunpack.c.l.b16 %v4457
      %v4753 = vunpack.c.l.b16 %v4458
      %v4754 = vunpack.c.l.b16 %v4459
      %v4755 = vunpack.c.l.b16 %v4460
      %v4756 = vunpack.c.l.b16 %v4461
      %v4757 = vunpack.c.l.b16 %v4462
      %v4758 = vunpack.c.l.b16 %v4463
      %v4759 = vunpack.c.l.b16 %v4464
      %v4760 = vunpack.c.l.b16 %v4465
      %v4761 = vunpack.c.l.b16 %v4466
      %v4762 = vunpack.c.l.b16 %v4467
      %v4763 = vunpack.c.l.b16 %v4468
      %v4764 = vunpack.c.l.b16 %v4469
      %v4765 = vunpack.c.l.b16 %v4470
      %v4766 = vunpack.c.l.b16 %v4471
      %v4767 = vunpack.c.l.b16 %v4472
      %v4768 = vunpack.c.l.b16 %v4473
      %v4769 = vunpack.c.l.b16 %v4474
      %v4770 = vunpack.c.l.b16 %v4475
      %v4771 = vunpack.c.l.b16 %v4476
      %v4772 = vunpack.c.l.b16 %v4477
      %v4773 = vunpack.c.l.b16 %v4478
      %v4774 = vunpack.c.l.b16 %v4479
      %v4775 = vunpack.c.l.b16 %v4480
      %v4776 = vunpack.c.l.b16 %v4481
      %v4777 = vunpack.c.l.b16 %v4482
      %v4778 = vunpack.c.l.b16 %v4483
      %v4779 = vunpack.c.l.b16 %v4484
      %v4780 = vunpack.c.l.b16 %v4485
      %v4781 = vunpack.c.l.b16 %v4486
      %v4782 = vunpack.c.l.b16 %v4487
      %v4783 = vunpack.c.l.b16 %v4488
      %v4784 = vunpack.c.l.b16 %v4489
      %v4785 = vunpack.c.l.b16 %v4490
      %v4786 = vunpack.c.l.b16 %v4491
      %v4787 = vunpack.c.l.b16 %v4492
      %v4788 = vunpack.c.l.b16 %v4493
      %v4789 = vunpack.c.l.b16 %v4494
      %v4790 = vunpack.c.l.b16 %v4495
      %v4791 = vunpack.c.l.b16 %v4496
      %v4792 = vunpack.c.l.b16 %v4497
      %v4793 = vunpack.c.l.b16 %v4498
      %v4794 = vunpack.c.l.b16 %v4499
      %v4795 = vunpack.c.l.b16 %v4500
      %v4796 = vunpack.c.l.b16 %v4501
      %v4797 = vunpack.c.l.b16 %v4502
      %v4798 = vunpack.c.l.b16 %v4503
      %v4799 = vunpack.c.l.b16 %v4504
      %v4800 = vunpack.c.l.b16 %v4505
      %v4801 = vunpack.c.l.b16 %v4506
      %v4802 = vunpack.c.l.b16 %v4507
      %v4803 = vunpack.c.l.b16 %v4508
      %v4804 = vunpack.c.l.b16 %v4509
      %v4805 = vunpack.c.l.b16 %v4510
      %v4806 = vunpack.c.l.b16 %v4511
      %v4807 = vunpack.c.l.b16 %v4512
      %v4808 = vunpack.c.l.b16 %v4513
      %v4809 = vunpack.c.l.b16 %v4514
      %v4810 = vunpack.c.l.b16 %v4515
      %v4811 = vunpack.c.l.b16 %v4516
      %v4812 = vunpack.c.l.b16 %v4517
      %v4813 = vunpack.c.l.b16 %v4518
      %v4814 = vunpack.c.l.b16 %v4519
      %v4815 = vunpack.c.l.b16 %v4520
      %v4816 = vunpack.c.l.b16 %v4521
      %v4817 = vunpack.c.l.b16 %v4522
      %v4818 = vunpack.c.l.b16 %v4523
      %v4819 = vunpack.c.l.b16 %v4524
      %v4820 = vunpack.c.l.b16 %v4525
      %v4821 = vunpack.c.l.b16 %v4526
      %v4822 = vunpack.c.l.b16 %v4527
      %v4823 = vunpack.c.l.b16 %v4528
      %v4824 = vunpack.c.l.b16 %v4529
      %v4825 = vunpack.c.l.b16 %v4530
      %v4826 = vunpack.c.l.b16 %v4531
      %v4827 = vunpack.c.l.b16 %v4532
      %v4828 = vunpack.c.l.b16 %v4533
      %v4829 = vunpack.c.l.b16 %v4534
      %v4830 = vunpack.c.l.b16 %v4535
      %v4831 = vunpack.c.l.b16 %v4536
      %v4832 = vunpack.c.l.b16 %v4537
      %v4833 = vunpack.c.l.b16 %v4538
      %v4834 = vunpack.c.l.b16 %v4539
      %v4835 = vunpack.c.l.b16 %v4540
      %v4836 = vpack.c.b16 %v4693, %v4692
      %v4837 = vpack.c.b16 %v4695, %v4694
      %v4838 = vpack.c.b16 %v4697, %v4696
      %v4839 = vpack.c.b16 %v4699, %v4698
      %v4840 = vpack.c.b16 %v4701, %v4700
      %v4841 = vpack.c.b16 %v4703, %v4702
      %v4842 = vpack.c.b16 %v4705, %v4704
      %v4843 = vpack.c.b16 %v4707, %v4706
      %v4844 = vpack.c.b16 %v4709, %v4708
      %v4845 = vpack.c.b16 %v4711, %v4710
      %v4846 = vpack.c.b16 %v4713, %v4712
      %v4847 = vpack.c.b16 %v4715, %v4714
      %v4848 = vpack.c.b16 %v4717, %v4716
      %v4849 = vpack.c.b16 %v4719, %v4718
      %v4850 = vpack.c.b16 %v4721, %v4720
      %v4851 = vpack.c.b16 %v4723, %v4722
      %v4852 = vpack.c.b16 %v4725, %v4724
      %v4853 = vpack.c.b16 %v4727, %v4726
      %v4854 = vpack.c.b16 %v4729, %v4728
      %v4855 = vpack.c.b16 %v4731, %v4730
      %v4856 = vpack.c.b16 %v4733, %v4732
      %v4857 = vpack.c.b16 %v4735, %v4734
      %v4858 = vpack.c.b16 %v4737, %v4736
      %v4859 = vpack.c.b16 %v4739, %v4738
      %v4860 = vpack.c.b16 %v4741, %v4740
      %v4861 = vpack.c.b16 %v4743, %v4742
      %v4862 = vpack.c.b16 %v4745, %v4744
      %v4863 = vpack.c.b16 %v4747, %v4746
      %v4864 = vpack.c.b16 %v4749, %v4748
      %v4865 = vpack.c.b16 %v4751, %v4750
      %v4866 = vpack.c.b16 %v4753, %v4752
      %v4867 = vpack.c.b16 %v4755, %v4754
      %v4868 = vpack.c.b16 %v4757, %v4756
      %v4869 = vpack.c.b16 %v4759, %v4758
      %v4870 = vpack.c.b16 %v4761, %v4760
      %v4871 = vpack.c.b16 %v4763, %v4762
      %v4872 = vpack.c.b16 %v4765, %v4764
      %v4873 = vpack.c.b16 %v4767, %v4766
      %v4874 = vpack.c.b16 %v4769, %v4768
      %v4875 = vpack.c.b16 %v4771, %v4770
      %v4876 = vpack.c.b16 %v4773, %v4772
      %v4877 = vpack.c.b16 %v4775, %v4774
      %v4878 = vpack.c.b16 %v4777, %v4776
      %v4879 = vpack.c.b16 %v4779, %v4778
      %v4880 = vpack.c.b16 %v4781, %v4780
      %v4881 = vpack.c.b16 %v4783, %v4782
      %v4882 = vpack.c.b16 %v4785, %v4784
      %v4883 = vpack.c.b16 %v4787, %v4786
      %v4884 = vpack.c.b16 %v4789, %v4788
      %v4885 = vpack.c.b16 %v4791, %v4790
      %v4886 = vpack.c.b16 %v4793, %v4792
      %v4887 = vpack.c.b16 %v4795, %v4794
      %v4888 = vpack.c.b16 %v4797, %v4796
      %v4889 = vpack.c.b16 %v4799, %v4798
      %v4890 = vpack.c.b16 %v4801, %v4800
      %v4891 = vpack.c.b16 %v4803, %v4802
      %v4892 = vpack.c.b16 %v4805, %v4804
      %v4893 = vpack.c.b16 %v4807, %v4806
      %v4894 = vpack.c.b16 %v4809, %v4808
      %v4895 = vpack.c.b16 %v4811, %v4810
      %v4896 = vpack.c.b16 %v4813, %v4812
      %v4897 = vpack.c.b16 %v4815, %v4814
      %v4898 = vpack.c.b16 %v4817, %v4816
      %v4899 = vpack.c.b16 %v4819, %v4818
      %v4900 = vpack.c.b16 %v4821, %v4820
      %v4901 = vpack.c.b16 %v4823, %v4822
      %v4902 = vpack.c.b16 %v4825, %v4824
      %v4903 = vpack.c.b16 %v4827, %v4826
      %v4904 = vpack.c.b16 %v4829, %v4828
      %v4905 = vpack.c.b16 %v4831, %v4830
      %v4906 = vpack.c.b16 %v4833, %v4832
      %v4907 = vpack.c.b16 %v4835, %v4834
      %4980 = vmatprep.subr.bf16.mxu0 0
      %4981 = vmatpush1.bf16.msra.mxu0 %v4843
      %4982 = vmatprep.subr.bf16.mxu0 0
      %4983 = vmatpush1.bf16.msra.mxu0 %v4842
      %4984 = vmatprep.subr.bf16.mxu0 0
      %4985 = vmatpush1.bf16.msra.mxu0 %v4841
      %4986 = vmatprep.subr.bf16.mxu0 0
      %4987 = vmatpush1.bf16.msra.mxu0 %v4840
      %4988 = vmatprep.subr.bf16.mxu0 0
      %4989 = vmatpush1.bf16.msra.mxu0 %v4839
      %4990 = vmatprep.subr.bf16.mxu0 0
      %4991 = vmatpush1.bf16.msra.mxu0 %v4838
      %4992 = vmatprep.subr.bf16.mxu0 0
      %4993 = vmatpush1.bf16.msra.mxu0 %v4837
      %4994 = vmatprep.subr.bf16.mxu0 0
      %4995 = vmatpush1.bf16.msra.mxu0 %v4836
      %4996 = vmatprep.subr.bf16.mxu0 0
      %4997 = vmatpush2.bf16.msra.mxu0 %v4851
      %4998 = vmatprep.subr.bf16.mxu0 0
      %4999 = vmatpush2.bf16.msra.mxu0 %v4850
      %5000 = vmatprep.subr.bf16.mxu0 0
      %5001 = vmatpush2.bf16.msra.mxu0 %v4849
      %5002 = vmatprep.subr.bf16.mxu0 0
      %5003 = vmatpush2.bf16.msra.mxu0 %v4848
      %5004 = vmatprep.subr.bf16.mxu0 0
      %5005 = vmatpush2.bf16.msra.mxu0 %v4847
      %5006 = vmatprep.subr.bf16.mxu0 0
      %5007 = vmatpush2.bf16.msra.mxu0 %v4846
      %5008 = vmatprep.subr.bf16.mxu0 0
      %5009 = vmatpush2.bf16.msra.mxu0 %v4845
      %5010 = vmatprep.subr.bf16.mxu0 0
      %5011 = vmatpush2.bf16.msra.mxu0 %v4844
      %5012 = vmatprep.mubr.bf16.mxu0 %v4371
      %5013 = vmatmul.mubr.bf16.gmra.mxu0 %v4370
      %v5014 = vpop.f32.mrf.mxu0
      %v5015 = vadd.f32 %v4546, %v5014
      %v5016 = vpop.f32.mrf.mxu0
      %v5017 = vpop.f32.mrf.mxu0
      %v5018 = vadd.f32 %v4546, %v5017
      %v5019 = vpop.f32.mrf.mxu0
      %5020 = vmatprep.mubr.bf16.mxu0 %v4377
      %5021 = vmatmul.mubr.bf16.gmra.mxu0 %v4376
      %v5022 = vpop.f32.mrf.mxu0
      %v5023 = vadd.f32 %v4546, %v5022
      %v5024 = vpop.f32.mrf.mxu0
      %v5025 = vpop.f32.mrf.mxu0
      %v5026 = vadd.f32 %v4546, %v5025
      %v5027 = vpop.f32.mrf.mxu0
      %5028 = vmatprep.mubr.bf16.mxu0 %v4383
      %5029 = vmatmul.mubr.bf16.gmra.mxu0 %v4382
      %v5030 = vpop.f32.mrf.mxu0
      %v5031 = vadd.f32 %v4546, %v5030
      %v5032 = vpop.f32.mrf.mxu0
      %v5033 = vpop.f32.mrf.mxu0
      %v5034 = vadd.f32 %v4546, %v5033
      %v5035 = vpop.f32.mrf.mxu0
      %5036 = vmatprep.mubr.bf16.mxu0 %v4389
      %5037 = vmatmul.mubr.bf16.gmra.mxu0 %v4388
      %v5038 = vpop.f32.mrf.mxu0
      %v5039 = vadd.f32 %v4546, %v5038
      %v5040 = vpop.f32.mrf.mxu0
      %v5041 = vpop.f32.mrf.mxu0
      %v5042 = vadd.f32 %v4546, %v5041
      %v5043 = vpop.f32.mrf.mxu0
      %5044 = vdwg.mxu0
      %5045 = vmatprep.subr.bf16.mxu0 0
      %5046 = vmatpush1.bf16.msra.mxu0 %v4859
      %5047 = vmatprep.subr.bf16.mxu0 0
      %5048 = vmatpush1.bf16.msra.mxu0 %v4858
      %5049 = vmatprep.subr.bf16.mxu0 0
      %5050 = vmatpush1.bf16.msra.mxu0 %v4857
      %5051 = vmatprep.subr.bf16.mxu0 0
      %5052 = vmatpush1.bf16.msra.mxu0 %v4856
      %5053 = vmatprep.subr.bf16.mxu0 0
      %5054 = vmatpush1.bf16.msra.mxu0 %v4855
      %5055 = vmatprep.subr.bf16.mxu0 0
      %5056 = vmatpush1.bf16.msra.mxu0 %v4854
      %5057 = vmatprep.subr.bf16.mxu0 0
      %5058 = vmatpush1.bf16.msra.mxu0 %v4853
      %5059 = vmatprep.subr.bf16.mxu0 0
      %5060 = vmatpush1.bf16.msra.mxu0 %v4852
      %5061 = vmatprep.subr.bf16.mxu0 0
      %5062 = vmatpush2.bf16.msra.mxu0 %v4867
      %5063 = vmatprep.subr.bf16.mxu0 0
      %5064 = vmatpush2.bf16.msra.mxu0 %v4866
      %5065 = vmatprep.subr.bf16.mxu0 0
      %5066 = vmatpush2.bf16.msra.mxu0 %v4865
      %5067 = vmatprep.subr.bf16.mxu0 0
      %5068 = vmatpush2.bf16.msra.mxu0 %v4864
      %5069 = vmatprep.subr.bf16.mxu0 0
      %5070 = vmatpush2.bf16.msra.mxu0 %v4863
      %5071 = vmatprep.subr.bf16.mxu0 0
      %5072 = vmatpush2.bf16.msra.mxu0 %v4862
      %5073 = vmatprep.subr.bf16.mxu0 0
      %5074 = vmatpush2.bf16.msra.mxu0 %v4861
      %5075 = vmatprep.subr.bf16.mxu0 0
      %5076 = vmatpush2.bf16.msra.mxu0 %v4860
      %5077 = vmatprep.mubr.bf16.mxu0 %v4373
      %5078 = vmatmul.mubr.bf16.gmra.mxu0 %v4372
      %v5079 = vpop.f32.mrf.mxu0
      %v5080 = vadd.f32 %v5015, %v5079
      %v5081 = vpop.f32.mrf.mxu0
      %v5082 = vpop.f32.mrf.mxu0
      %v5083 = vadd.f32 %v5018, %v5082
      %v5084 = vpop.f32.mrf.mxu0
      %5085 = vmatprep.mubr.bf16.mxu0 %v4379
      %5086 = vmatmul.mubr.bf16.gmra.mxu0 %v4378
      %v5087 = vpop.f32.mrf.mxu0
      %v5088 = vadd.f32 %v5023, %v5087
      %v5089 = vpop.f32.mrf.mxu0
      %v5090 = vpop.f32.mrf.mxu0
      %v5091 = vadd.f32 %v5026, %v5090
      %v5092 = vpop.f32.mrf.mxu0
      %5093 = vmatprep.mubr.bf16.mxu0 %v4385
      %5094 = vmatmul.mubr.bf16.gmra.mxu0 %v4384
      %v5095 = vpop.f32.mrf.mxu0
      %v5096 = vadd.f32 %v5031, %v5095
      %v5097 = vpop.f32.mrf.mxu0
      %v5098 = vpop.f32.mrf.mxu0
      %v5099 = vadd.f32 %v5034, %v5098
      %v5100 = vpop.f32.mrf.mxu0
      %5101 = vmatprep.mubr.bf16.mxu0 %v4391
      %5102 = vmatmul.mubr.bf16.gmra.mxu0 %v4390
      %v5103 = vpop.f32.mrf.mxu0
      %v5104 = vadd.f32 %v5039, %v5103
      %v5105 = vpop.f32.mrf.mxu0
      %v5106 = vpop.f32.mrf.mxu0
      %v5107 = vadd.f32 %v5042, %v5106
      %v5108 = vpop.f32.mrf.mxu0
      %5109 = vdwg.mxu0
      %5110 = vmatprep.subr.bf16.mxu0 0
      %5111 = vmatpush1.bf16.msra.mxu0 %v4875
      %5112 = vmatprep.subr.bf16.mxu0 0
      %5113 = vmatpush1.bf16.msra.mxu0 %v4874
      %5114 = vmatprep.subr.bf16.mxu0 0
      %5115 = vmatpush1.bf16.msra.mxu0 %v4873
      %5116 = vmatprep.subr.bf16.mxu0 0
      %5117 = vmatpush1.bf16.msra.mxu0 %v4872
      %5118 = vmatprep.subr.bf16.mxu0 0
      %5119 = vmatpush1.bf16.msra.mxu0 %v4871
      %5120 = vmatprep.subr.bf16.mxu0 0
      %5121 = vmatpush1.bf16.msra.mxu0 %v4870
      %5122 = vmatprep.subr.bf16.mxu0 0
      %5123 = vmatpush1.bf16.msra.mxu0 %v4869
      %5124 = vmatprep.subr.bf16.mxu0 0
      %5125 = vmatpush1.bf16.msra.mxu0 %v4868
      %5126 = vmatprep.subr.bf16.mxu0 0
      %5127 = vmatpush2.bf16.msra.mxu0 %v4883
      %5128 = vmatprep.subr.bf16.mxu0 0
      %5129 = vmatpush2.bf16.msra.mxu0 %v4882
      %5130 = vmatprep.subr.bf16.mxu0 0
      %5131 = vmatpush2.bf16.msra.mxu0 %v4881
      %5132 = vmatprep.subr.bf16.mxu0 0
      %5133 = vmatpush2.bf16.msra.mxu0 %v4880
      %5134 = vmatprep.subr.bf16.mxu0 0
      %5135 = vmatpush2.bf16.msra.mxu0 %v4879
      %5136 = vmatprep.subr.bf16.mxu0 0
      %5137 = vmatpush2.bf16.msra.mxu0 %v4878
      %5138 = vmatprep.subr.bf16.mxu0 0
      %5139 = vmatpush2.bf16.msra.mxu0 %v4877
      %5140 = vmatprep.subr.bf16.mxu0 0
      %5141 = vmatpush2.bf16.msra.mxu0 %v4876
      %5142 = vmatprep.mubr.bf16.mxu0 %v4375
      %5143 = vmatmul.mubr.bf16.gmra.mxu0 %v4374
      %v5144 = vpop.f32.mrf.mxu0
      %v5145 = vadd.f32 %v5080, %v5144
      %v5146 = vpop.f32.mrf.mxu0
      %v5147 = vpop.f32.mrf.mxu0
      %v5148 = vadd.f32 %v5083, %v5147
      %v5149 = vpop.f32.mrf.mxu0
      %5150 = vmatprep.mubr.bf16.mxu0 %v4381
      %5151 = vmatmul.mubr.bf16.gmra.mxu0 %v4380
      %v5152 = vpop.f32.mrf.mxu0
      %v5153 = vadd.f32 %v5088, %v5152
      %v5154 = vpop.f32.mrf.mxu0
      %v5155 = vpop.f32.mrf.mxu0
      %v5156 = vadd.f32 %v5091, %v5155
      %v5157 = vpop.f32.mrf.mxu0
      %5158 = vmatprep.mubr.bf16.mxu0 %v4387
      %5159 = vmatmul.mubr.bf16.gmra.mxu0 %v4386
      %v5160 = vpop.f32.mrf.mxu0
      %v5161 = vadd.f32 %v5096, %v5160
      %v5162 = vpop.f32.mrf.mxu0
      %v5163 = vpop.f32.mrf.mxu0
      %v5164 = vadd.f32 %v5099, %v5163
      %v5165 = vpop.f32.mrf.mxu0
      %5166 = vmatprep.mubr.bf16.mxu0 %v4393
      %5167 = vmatmul.mubr.bf16.gmra.mxu0 %v4392
      %v5168 = vpop.f32.mrf.mxu0
      %v5169 = vadd.f32 %v5104, %v5168
      %v5170 = vpop.f32.mrf.mxu0
      %v5171 = vpop.f32.mrf.mxu0
      %v5172 = vadd.f32 %v5107, %v5171
      %v5173 = vpop.f32.mrf.mxu0
      %5174 = vdwg.mxu0
      %5175 = vmatprep.subr.bf16.mxu0 0
      %5176 = vmatpush1.bf16.msra.mxu0 %v4891
      %5177 = vmatprep.subr.bf16.mxu0 0
      %5178 = vmatpush1.bf16.msra.mxu0 %v4890
      %5179 = vmatprep.subr.bf16.mxu0 0
      %5180 = vmatpush1.bf16.msra.mxu0 %v4889
      %5181 = vmatprep.subr.bf16.mxu0 0
      %5182 = vmatpush1.bf16.msra.mxu0 %v4888
      %5183 = vmatprep.subr.bf16.mxu0 0
      %5184 = vmatpush1.bf16.msra.mxu0 %v4887
      %5185 = vmatprep.subr.bf16.mxu0 0
      %5186 = vmatpush1.bf16.msra.mxu0 %v4886
      %5187 = vmatprep.subr.bf16.mxu0 0
      %5188 = vmatpush1.bf16.msra.mxu0 %v4885
      %5189 = vmatprep.subr.bf16.mxu0 0
      %5190 = vmatpush1.bf16.msra.mxu0 %v4884
      %5191 = vmatprep.subr.bf16.mxu0 0
      %5192 = vmatpush2.bf16.msra.mxu0 %v4899
      %5193 = vmatprep.subr.bf16.mxu0 0
      %5194 = vmatpush2.bf16.msra.mxu0 %v4898
      %5195 = vmatprep.subr.bf16.mxu0 0
      %5196 = vmatpush2.bf16.msra.mxu0 %v4897
      %5197 = vmatprep.subr.bf16.mxu0 0
      %5198 = vmatpush2.bf16.msra.mxu0 %v4896
      %5199 = vmatprep.subr.bf16.mxu0 0
      %5200 = vmatpush2.bf16.msra.mxu0 %v4895
      %5201 = vmatprep.subr.bf16.mxu0 0
      %5202 = vmatpush2.bf16.msra.mxu0 %v4894
      %5203 = vmatprep.subr.bf16.mxu0 0
      %5204 = vmatpush2.bf16.msra.mxu0 %v4893
      %5205 = vmatprep.subr.bf16.mxu0 0
      %5206 = vmatpush2.bf16.msra.mxu0 %v4892
      %5207 = vmatprep.mubr.bf16.mxu0 %v4377
      %5208 = vmatmul.mubr.bf16.gmra.mxu0 %v4376
      %v5209 = vpop.f32.mrf.mxu0
      %v5210 = vadd.f32 %v5145, %v5209
      %v5211 = vpop.f32.mrf.mxu0
      %v5212 = vpop.f32.mrf.mxu0
      %v5213 = vadd.f32 %v5148, %v5212
      %v5214 = vpop.f32.mrf.mxu0
      %5215 = vmatprep.mubr.bf16.mxu0 %v4383
      %5216 = vmatmul.mubr.bf16.gmra.mxu0 %v4382
      %v5217 = vpop.f32.mrf.mxu0
      %v5218 = vadd.f32 %v5153, %v5217
      %v5219 = vpop.f32.mrf.mxu0
      %v5220 = vpop.f32.mrf.mxu0
      %v5221 = vadd.f32 %v5156, %v5220
      %v5222 = vpop.f32.mrf.mxu0
      %5223 = vmatprep.mubr.bf16.mxu0 %v4389
      %5224 = vmatmul.mubr.bf16.gmra.mxu0 %v4388
      %v5225 = vpop.f32.mrf.mxu0
      %v5226 = vadd.f32 %v5161, %v5225
      %v5227 = vpop.f32.mrf.mxu0
      %v5228 = vpop.f32.mrf.mxu0
      %v5229 = vadd.f32 %v5164, %v5228
      %v5230 = vpop.f32.mrf.mxu0
      %5231 = vmatprep.mubr.bf16.mxu0 %v4395
      %5232 = vmatmul.mubr.bf16.gmra.mxu0 %v4394
      %v5233 = vpop.f32.mrf.mxu0
      %v5234 = vadd.f32 %v5169, %v5233
      %v5235 = vpop.f32.mrf.mxu0
      %v5236 = vpop.f32.mrf.mxu0
      %v5237 = vadd.f32 %v5172, %v5236
      %v5238 = vpop.f32.mrf.mxu0
      %5239 = vdwg.mxu0
      %5240 = vmatprep.subr.bf16.mxu0 0
      %5241 = vmatpush1.bf16.msra.mxu0 %v4907
      %5242 = vmatprep.subr.bf16.mxu0 0
      %5243 = vmatpush1.bf16.msra.mxu0 %v4906
      %5244 = vmatprep.subr.bf16.mxu0 0
      %5245 = vmatpush1.bf16.msra.mxu0 %v4905
      %5246 = vmatprep.subr.bf16.mxu0 0
      %5247 = vmatpush1.bf16.msra.mxu0 %v4904
      %5248 = vmatprep.subr.bf16.mxu0 0
      %5249 = vmatpush1.bf16.msra.mxu0 %v4903
      %5250 = vmatprep.subr.bf16.mxu0 0
      %5251 = vmatpush1.bf16.msra.mxu0 %v4902
      %5252 = vmatprep.subr.bf16.mxu0 0
      %5253 = vmatpush1.bf16.msra.mxu0 %v4901
      %5254 = vmatprep.subr.bf16.mxu0 0
      %5255 = vmatpush1.bf16.msra.mxu0 %v4900
      %5256 = vmatprep.subr.bf16.mxu0 0
      %5257 = vmatpush2.bf16.msra.mxu0 0
      %5258 = vmatprep.subr.bf16.mxu0 0
      %5259 = vmatpush2.bf16.msra.mxu0 0
      %5260 = vmatprep.subr.bf16.mxu0 0
      %5261 = vmatpush2.bf16.msra.mxu0 0
      %5262 = vmatprep.subr.bf16.mxu0 0
      %5263 = vmatpush2.bf16.msra.mxu0 0
      %5264 = vmatprep.subr.bf16.mxu0 0
      %5265 = vmatpush2.bf16.msra.mxu0 0
      %5266 = vmatprep.subr.bf16.mxu0 0
      %5267 = vmatpush2.bf16.msra.mxu0 0
      %5268 = vmatprep.subr.bf16.mxu0 0
      %5269 = vmatpush2.bf16.msra.mxu0 0
      %5270 = vmatprep.subr.bf16.mxu0 0
      %5271 = vmatpush2.bf16.msra.mxu0 0
      %5272 = vmatprep.mubr.bf16.mxu0 0
      %5273 = vmatmul.mubr.bf16.gmra.mxu0 %v4378
      %v5274 = vpop.f32.mrf.mxu0
      %v5275 = vadd.f32 %v5210, %v5274
      %v5276 = vpop.f32.mrf.mxu0
      %v5277 = vpop.f32.mrf.mxu0
      %v5278 = vadd.f32 %v5213, %v5277
      %v5279 = vpop.f32.mrf.mxu0
      %5280 = vmatprep.mubr.bf16.mxu0 0
      %5281 = vmatmul.mubr.bf16.gmra.mxu0 %v4384
      %v5282 = vpop.f32.mrf.mxu0
      %v5283 = vadd.f32 %v5218, %v5282
      %v5284 = vpop.f32.mrf.mxu0
      %v5285 = vpop.f32.mrf.mxu0
      %v5286 = vadd.f32 %v5221, %v5285
      %v5287 = vpop.f32.mrf.mxu0
      %5288 = vmatprep.mubr.bf16.mxu0 0
      %5289 = vmatmul.mubr.bf16.gmra.mxu0 %v4390
      %v5290 = vpop.f32.mrf.mxu0
      %v5291 = vadd.f32 %v5226, %v5290
      %v5292 = vpop.f32.mrf.mxu0
      %v5293 = vpop.f32.mrf.mxu0
      %v5294 = vadd.f32 %v5229, %v5293
      %v5295 = vpop.f32.mrf.mxu0
      %5296 = vmatprep.mubr.bf16.mxu0 0
      %5297 = vmatmul.mubr.bf16.gmra.mxu0 %v4396
      %v5298 = vpop.f32.mrf.mxu0
      %v5299 = vadd.f32 %v5234, %v5298
      %v5300 = vpop.f32.mrf.mxu0
      %v5301 = vpop.f32.mrf.mxu0
      %v5302 = vadd.f32 %v5237, %v5301
      %v5303 = vpop.f32.mrf.mxu0
      %5304 = vdwg.mxu0
      %v5305 = vmax.f32 %v5275, 0.0
      %v5306 = vmax.f32 %v5278, 0.0
      %v5307 = vmax.f32 %v5283, 0.0
      %v5308 = vmax.f32 %v5286, 0.0
      %v5309 = vmax.f32 %v5291, 0.0
      %v5310 = vmax.f32 %v5294, 0.0
      %v5311 = vmax.f32 %v5299, 0.0
      %v5312 = vmax.f32 %v5302, 0.0
      %v5313 = vmax.f32 %v5305, %v5306
      %v5314 = vmax.f32 %v5307, %v5308
      %v5315 = vmax.f32 %v5309, %v5310
      %v5316 = vmax.f32 %v5311, %v5312
      %5317 = vst [vmem:[#allocation3] sm:$0xff] %v5313
      %5318 = vst [vmem:[#allocation3 + $0x8] sm:$0xff] %v5314
      %5319 = vst [vmem:[#allocation3 + $0x10] sm:$0xff] %v5315
      %5320 = vst [vmem:[#allocation3 + $0x18] sm:$0xff] %v5316
      %v5321 = vld [vmem:[#allocation3] ss:$2 sm:$0xff]
      %s5322 = scalar_lea.vmem [#allocation3], 16
      %v5323 = vld [vmem:[%s5322] ss:$2 sm:$0xff]
      %s5324 = scalar_lea.vmem [#allocation3], 1
      %v5325 = vld [vmem:[%s5324] ss:$2 sm:$0xff]
      %s5326 = scalar_lea.vmem [#allocation3], 17
      %v5327 = vld [vmem:[%s5326] ss:$2 sm:$0xff]
      %v5328 = vmax.f32 %v5321, %v5325
      %v5329 = vmax.f32 %v5323, %v5327
      %5330 = vst [vmem:[%s332] sm:$0xff] %v5328
      %5331 = vst [vmem:[%s332 + $0x8] sm:$0xff] %v5329
      %p5332 = scmp.lt.s32.totalorder %s20, 1
      %s5333 = scalar_select %p5332, %s20, 1
      %s5334 = smul.addr %s5333, 2
      %s5335 = smul.addr %s5334, 8
      %s5336 = scalar_lea.vmem %s9, %s5335
      // Predicated region
      $region57: #{net_forward.2} parent=55 // pred_check
        %p5337 = pneg %p232
      $region58: #{net_forward.2} parent=55 // pred_check_branch
        %5339 = sbr.rel (%p5337) target = $region60
      $region59: #{net_forward.2} parent=55 // pred_region
        _
      $region60: #{net_forward.2} parent=55 // pred_fallthru
        _
    $region56: #{net_forward.2} parent=5 // pred_fallthru
      _
    %p5340 = scmp.le.s32.totalorder 2, %s15
    // Predicated region
    $region61: #{net_forward.2} parent=5 // pred_check
      %p5341 = pneg %p5340
    $region62: #{net_forward.2} parent=5 // pred_check_branch
      %5343 = sbr.rel (%p5341) target = $region64
    $region63: #{net_forward.2} parent=5 // pred_region
      %s5344 = ssub.s32 %s15, 2
      // Predicated region
      $region65: #{net_forward.2} parent=63 // pred_check
        %p5345 = pneg %p238
      $region66: #{net_forward.2} parent=63 // pred_check_branch
        %5347 = sbr.rel (%p5345) target = $region68
      $region67: #{net_forward.2} parent=63 // pred_region
        %p5348 = scmp.lt.s32.totalorder %s21, 1
        %s5349 = scalar_select %p5348, %s21, 1
        %s5350 = smul.addr %s5349, 2
        %s5351 = smul.addr %s5350, 8
        %s5352 = scalar_lea.vmem %s9, %s5351
      $region68: #{net_forward.2} parent=63 // pred_fallthru
        _
    $region64: #{net_forward.2} parent=5 // pred_fallthru
      _
  $region6: #{net_forward.2} parent=0 // loop_footer
    %s19 = sadd.s32 1, %s15
  $region7: #{net_forward.2} parent=0 // loop_footer_branch
    %14 = sbr.rel target = $region3
  $region8: #{net_forward.2} parent=0 // loop_exit
    _

</llo_original>
